<compile_context>
chip_gen: v7x
topology: tpu7x:2x2x1
jax: 0.10.0
libtpu: 0.0.40
codegen_flags: <defaults>
</compile_context>

<pallas_src>
import math
import functools

import jax
import jax.numpy as jnp
from jax.experimental import pallas as pl
from jax.experimental.pallas import tpu as pltpu

EXPANSION = 4
_BN_EPS = 1e-5
_VMEM_LIMIT = 48 * 1024 * 1024   # safe on v7x (64 MiB physical), plenty of room on v5e/v6e


# ----------------------------------------------------------------------------
# Helpers
# ----------------------------------------------------------------------------


def _rup(x, m):
    return ((x + m - 1) // m) * m


def _pick_tm(mp):
    """Largest row block that divides mp while leaving >=8 (else >=4, >=2) grid steps,
    so both TensorCores get a pipelined stream of work."""
    for min_blocks in (8, 4, 2):
        for c in (2048, 1024, 512, 256, 128, 64, 32, 16, 8):
            if mp % c == 0 and mp // c >= min_blocks:
                return c
    return mp


def _pick_row_tile(hout, wout, cout):
    """Output-row group for the 3x3 conv: keep the f32 accumulator <= ~96 KiB (well
    under the vreg file) while leaving >=4 (else >=2) row groups per image."""
    budget = max(1, (96 * 1024) // max(1, wout * cout * 4))
    divs = [d for d in range(1, hout + 1) if hout % d == 0]
    for want in (4, 2, 1):
        cand = [d for d in divs if d <= budget and hout // d >= want]
        if cand:
            return max(cand)
    return 1


# ----------------------------------------------------------------------------
# Pallas kernels
# ----------------------------------------------------------------------------


def _conv1x1_kernel(a_ref, b_ref, o_ref, sum_ref, ssq_ref):
    """o = a @ b (bf16 MXU operands / f32 acc) + per-block per-channel BN partial stats."""
    y = jnp.dot(a_ref[...].astype(jnp.bfloat16), b_ref[...],
                preferred_element_type=jnp.float32)
    o_ref[...] = y.astype(o_ref.dtype)
    sum_ref[...] = jnp.sum(y, axis=0).reshape(sum_ref.shape)
    ssq_ref[...] = jnp.sum(y * y, axis=0).reshape(ssq_ref.shape)


def _conv1x1_affine_kernel(a_ref, s_ref, t_ref, b_ref, o_ref, sum_ref, ssq_ref, *,
                           tm, m_valid):
    """o = relu(a*scale + shift) @ b: the previous BN's apply + ReLU is fused into this
    conv's operand path (f32 affine math, bf16 MXU operands).  Padded rows (if any) are
    masked so they never enter this conv's own BN partial stats."""
    a = a_ref[...].astype(jnp.float32) * s_ref[...] + t_ref[...]
    a = jnp.maximum(a, 0.0)
    if m_valid is not None:
        row = pl.program_id(0) * tm + jax.lax.broadcasted_iota(jnp.int32, a.shape, 0)
        a = jnp.where(row < m_valid, a, 0.0)
    y = jnp.dot(a.astype(jnp.bfloat16), b_ref[...], preferred_element_type=jnp.float32)
    o_ref[...] = y.astype(o_ref.dtype)
    sum_ref[...] = jnp.sum(y, axis=0).reshape(sum_ref.shape)
    ssq_ref[...] = jnp.sum(y * y, axis=0).reshape(ssq_ref.shape)


def _conv3x3_kernel(x_ref, w_ref, s_ref, t_ref, o_ref, sum_ref, ssq_ref, *,
                    stride, th, wout, h, w):
    """Fused relu(bn(x)) -> 3x3 conv for one (image, output-row-group) grid step.

    x_ref: (s*s, Hq, Wq, Cin) stride-phase-split *raw* (pre-BN) padded image, bf16.
    The BN affine + ReLU is applied in-kernel to the row window actually needed; pad
    positions (zeros of the raw tensor) are re-zeroed afterwards via an index mask so
    conv2's zero padding semantics are preserved.
    """
    s = stride
    e = 2 // s                       # extra window rows in phase space
    win = th + e
    cin = x_ref.shape[-1]
    cout = o_ref.shape[-1]
    g = pl.program_id(1)
    r0 = g * th
    if th & (th - 1) == 0:
        r0 = pl.multiple_of(r0, th)

    cache = {}

    def phase(py, px):
        key = (py, px)
        if key not in cache:
            raw = x_ref[py * s + px, pl.ds(r0, win), :, :].astype(jnp.float32)
            a = jnp.maximum(raw * s_ref[...] + t_ref[...], 0.0)
            ri = jax.lax.broadcasted_iota(jnp.int32, a.shape, 0)
            ci = jax.lax.broadcasted_iota(jnp.int32, a.shape, 1)
            prow = s * (r0 + ri) + py        # row in the zero-padded image
            pcol = s * ci + px               # col in the zero-padded image
            ok = (prow >= 1) & (prow <= h) & (pcol >= 1) & (pcol <= w)
            cache[key] = jnp.where(ok, a, 0.0).astype(jnp.bfloat16)
        return cache[key]

    acc = jnp.zeros((th * wout, cout), jnp.float32)
    for dy in range(3):
        for dx in range(3):
            py, qy = dy % s, dy // s
            px, qx = dx % s, dx // s
            a = phase(py, px)
            patch = a[qy:qy + th, qx:qx + wout, :].reshape(th * wout, cin)
            acc = acc + jnp.dot(patch, w_ref[dy * 3 + dx],
                                preferred_element_type=jnp.float32)

    o_ref[...] = acc.reshape(1, th, wout, cout).astype(o_ref.dtype)
    sum_ref[...] = jnp.sum(acc, axis=0).reshape(sum_ref.shape)
    ssq_ref[...] = jnp.sum(acc * acc, axis=0).reshape(ssq_ref.shape)


def _res_kernel(x_ref, r_ref, s_ref, t_ref, o_ref):
    """out = relu(x*scale + shift + residual): bn3 apply + identity add + ReLU."""
    y = x_ref[...].astype(jnp.float32) * s_ref[...] + t_ref[...] \
        + r_ref[...].astype(jnp.float32)
    o_ref[...] = jnp.maximum(y, 0.0).astype(o_ref.dtype)


def _res_ds_kernel(x_ref, r_ref, s_ref, t_ref, rs_ref, rt_ref, o_ref):
    """out = relu(x*s3 + b3 + r*sd + bd): bn3 AND downsample-BN fused with the add."""
    y = (x_ref[...].astype(jnp.float32) * s_ref[...] + t_ref[...]
         + r_ref[...].astype(jnp.float32) * rs_ref[...] + rt_ref[...])
    o_ref[...] = jnp.maximum(y, 0.0).astype(o_ref.dtype)


# ----------------------------------------------------------------------------
# Pallas wrappers
# ----------------------------------------------------------------------------


def conv1x1_bn(x2d, w, in_scale=None, in_shift=None):
    """1x1 conv (bias=False) as a tiled matmul.

    Returns (y_bf16 (M, Cout), partial_sum (gm,1,Cout), partial_sumsq (gm,1,Cout)).
    If (in_scale, in_shift) are given, relu(x*scale+shift) is applied in-kernel to the
    operand before the dot (fused BN-apply of the previous layer).
    """
    M, K = x2d.shape
    cout = w.shape[0]
    wm = jnp.transpose(w.reshape(cout, K), (1, 0)).astype(jnp.bfloat16)

    Mp = _rup(M, 8)
    xm = x2d if Mp == M else jnp.pad(x2d, ((0, Mp - M), (0, 0)))
    tm = _pick_tm(Mp)
    tn = 256 if cout % 256 == 0 else (128 if cout % 128 == 0 else cout)
    gm, gn = Mp // tm, cout // tn

    a_spec = pl.BlockSpec((tm, K), lambda i, j: (i, 0))
    b_spec = pl.BlockSpec((K, tn), lambda i, j: (0, j))
    v_spec = pl.BlockSpec((1, K), lambda i, j: (0, 0))

    if in_scale is None:
        kern = _conv1x1_kernel
        args = (xm, wm)
        in_specs = [a_spec, b_spec]
    else:
        kern = functools.partial(_conv1x1_affine_kernel, tm=tm,
                                 m_valid=(M if Mp != M else None))
        args = (xm, in_scale, in_shift, wm)
        in_specs = [a_spec, v_spec, v_spec, b_spec]

    y, ssum, ssq = pl.pallas_call(
        kern,
        out_shape=(jax.ShapeDtypeStruct((Mp, cout), jnp.bfloat16),
                   jax.ShapeDtypeStruct((gm, 1, cout), jnp.float32),
                   jax.ShapeDtypeStruct((gm, 1, cout), jnp.float32)),
        grid=(gm, gn),
        in_specs=in_specs,
        out_specs=(pl.BlockSpec((tm, tn), lambda i, j: (i, j)),
                   pl.BlockSpec((1, 1, tn), lambda i, j: (i, 0, j)),
                   pl.BlockSpec((1, 1, tn), lambda i, j: (i, 0, j))),
        compiler_params=pltpu.CompilerParams(
            dimension_semantics=("parallel", "parallel"),
            vmem_limit_bytes=_VMEM_LIMIT),
    )(*args)
    if Mp != M:
        y = y[:M]
    return y, ssum, ssq


def conv3x3_bn(x_nhwc, w, in_scale, in_shift, stride=1):
    """3x3 conv, padding=1, bias=False, with the previous BN's apply+ReLU fused in-kernel.

    x_nhwc: raw (pre-BN) producer output, bf16.  Returns
    (y_bf16 (N,Ho,Wo,Cout), partial_sum, partial_sumsq, (Ho, Wo)).
    """
    N, H, W, cin = x_nhwc.shape
    cout = w.shape[0]
    s = stride
    Hout = (H - 1) // s + 1
    Wout = (W - 1) // s + 1

    xp = jnp.pad(x_nhwc, ((0, 0), (1, 1), (1, 1), (0, 0)))
    Hp, Wp = H + 2, W + 2
    if s == 1:
        Hq, Wq = Hp, Wp
        phases = xp                                   # no phase-split copy for stride 1
    else:
        Hp_r, Wp_r = _rup(Hp, s), _rup(Wp, s)
        if (Hp_r, Wp_r) != (Hp, Wp):
            xp = jnp.pad(xp, ((0, 0), (0, Hp_r - Hp), (0, Wp_r - Wp), (0, 0)))
        Hq, Wq = Hp_r // s, Wp_r // s
        # phases[n*s*s + py*s + px, i, j, c] == xp[n, s*i + py, s*j + px, c]
        phases = xp.reshape(N, Hq, s, Wq, s, cin).transpose(0, 2, 4, 1, 3, 5)
        phases = phases.reshape(N * s * s, Hq, Wq, cin)

    wk = jnp.transpose(w, (2, 3, 1, 0)).reshape(9, cin, cout).astype(jnp.bfloat16)

    th = _pick_row_tile(Hout, Wout, cout)
    G = Hout // th

    kern = functools.partial(_conv3x3_kernel, stride=s, th=th, wout=Wout, h=H, w=W)
    y, ssum, ssq = pl.pallas_call(
        kern,
        out_shape=(jax.ShapeDtypeStruct((N, Hout, Wout, cout), jnp.bfloat16),
                   jax.ShapeDtypeStruct((N * G, 1, cout), jnp.float32),
                   jax.ShapeDtypeStruct((N * G, 1, cout), jnp.float32)),
        grid=(N, G),
        in_specs=[pl.BlockSpec((s * s, Hq, Wq, cin), lambda n, g: (n, 0, 0, 0)),
                  pl.BlockSpec((9, cin, cout), lambda n, g: (0, 0, 0)),
                  pl.BlockSpec((1, cin), lambda n, g: (0, 0)),
                  pl.BlockSpec((1, cin), lambda n, g: (0, 0))],
        out_specs=(pl.BlockSpec((1, th, Wout, cout), lambda n, g: (n, g, 0, 0)),
                   pl.BlockSpec((1, 1, cout), lambda n, g: (n * G + g, 0, 0)),
                   pl.BlockSpec((1, 1, cout), lambda n, g: (n * G + g, 0, 0))),
        compiler_params=pltpu.CompilerParams(
            dimension_semantics=("parallel", "arbitrary"),
            vmem_limit_bytes=_VMEM_LIMIT),
    )(phases, wk, in_scale, in_shift)
    return y, ssum, ssq, (Hout, Wout)


def bn_add_relu(y3, scale3, shift3, residual, ds_scale=None, ds_shift=None):
    """Final fused epilogue: relu(y3*s3+b3 + identity) or relu(y3*s3+b3 + yds*sd+bd)."""
    M, C = y3.shape
    Mp = _rup(M, 8)
    x = y3
    r = residual.reshape(M, C)
    if Mp != M:
        x = jnp.pad(x, ((0, Mp - M), (0, 0)))
        r = jnp.pad(r, ((0, Mp - M), (0, 0)))
    tm = _pick_tm(Mp)
    xspec = pl.BlockSpec((tm, C), lambda i: (i, 0))
    vspec = pl.BlockSpec((1, C), lambda i: (0, 0))
    cp = pltpu.CompilerParams(dimension_semantics=("parallel",),
                              vmem_limit_bytes=_VMEM_LIMIT)
    if ds_scale is None:
        out = pl.pallas_call(
            _res_kernel,
            out_shape=jax.ShapeDtypeStruct((Mp, C), jnp.float32),
            grid=(Mp // tm,),
            in_specs=[xspec, xspec, vspec, vspec],
            out_specs=xspec,
            compiler_params=cp,
        )(x, r, scale3, shift3)
    else:
        out = pl.pallas_call(
            _res_ds_kernel,
            out_shape=jax.ShapeDtypeStruct((Mp, C), jnp.float32),
            grid=(Mp // tm,),
            in_specs=[xspec, xspec, vspec, vspec, vspec, vspec],
            out_specs=xspec,
            compiler_params=cp,
        )(x, r, scale3, shift3, ds_scale, ds_shift)
    if Mp != M:
        out = out[:M]
    return out


def _finalize_bn(ssum, ssq, count, gamma, beta, eps=_BN_EPS):
    """Tiny XLA finalize of in-kernel partial stats (training-mode, biased variance)."""
    s = jnp.sum(ssum, axis=(0, 1))
    q = jnp.sum(ssq, axis=(0, 1))
    mean = s / count
    var = jnp.maximum(q / count - mean * mean, 0.0)
    scale = gamma * jax.lax.rsqrt(var + eps)
    shift = beta - mean * scale
    return (scale.reshape(1, -1).astype(jnp.float32),
            shift.reshape(1, -1).astype(jnp.float32))


# ----------------------------------------------------------------------------
# Bottleneck forward (NCHW at the API boundary, NHWC internally)
# ----------------------------------------------------------------------------


def bottleneck_forward(params, x_nchw, stride=1, eps=_BN_EPS):
    x = jnp.transpose(x_nchw, (0, 2, 3, 1))            # NCHW -> NHWC (boundary only)
    N, H, W, cin = x.shape
    x2d = x.reshape(N * H * W, cin)

    # conv1 (1x1): raw bf16 output + in-kernel partial BN1 stats.
    y1, s1, q1 = conv1x1_bn(x2d, params['conv1_w'])
    c1 = params['conv1_w'].shape[0]
    scale1, shift1 = _finalize_bn(s1, q1, N * H * W,
                                  params['bn1_g'], params['bn1_b'], eps)

    # conv2 (3x3, stride): bn1 apply + ReLU fused on the operand path in-kernel.
    y2, s2, q2, (Ho, Wo) = conv3x3_bn(y1.reshape(N, H, W, c1), params['conv2_w'],
                                      scale1, shift1, stride)
    scale2, shift2 = _finalize_bn(s2, q2, N * Ho * Wo,
                                  params['bn2_g'], params['bn2_b'], eps)

    # conv3 (1x1): bn2 apply + ReLU fused on the operand path in-kernel.
    c3 = params['conv3_w'].shape[0]
    y3, s3, q3 = conv1x1_bn(y2.reshape(N * Ho * Wo, c1), params['conv3_w'],
                            in_scale=scale2, in_shift=shift2)
    scale3, shift3 = _finalize_bn(s3, q3, N * Ho * Wo,
                                  params['bn3_g'], params['bn3_b'], eps)

    if 'ds_w' in params:                                # downsample = conv1x1 + BN
        xs = x[:, ::stride, ::stride, :] if stride != 1 else x
        yd, sd, qd = conv1x1_bn(xs.reshape(N * Ho * Wo, cin), params['ds_w'])
        ds_scale, ds_shift = _finalize_bn(sd, qd, N * Ho * Wo,
                                          params['ds_g'], params['ds_b'], eps)
        out2d = bn_add_relu(y3, scale3, shift3, yd, ds_scale, ds_shift)
    else:
        out2d = bn_add_relu(y3, scale3, shift3, x2d)

    out = out2d.reshape(N, Ho, Wo, c3)
    return jnp.transpose(out, (0, 3, 1, 2))             # back to NCHW


# ----------------------------------------------------------------------------
# Pure-JAX reference (tolerance check for the bf16-MXU / bf16-activation path)
# ----------------------------------------------------------------------------


def _conv_ref(x_nhwc, w, stride, padding):
    return jax.lax.conv_general_dilated(
        x_nhwc, jnp.transpose(w, (2, 3, 1, 0)),
        window_strides=(stride, stride),
        padding=((padding, padding), (padding, padding)),
        dimension_numbers=('NHWC', 'HWIO', 'NHWC'))


def _bn_ref(x, g, b, eps=_BN_EPS):
    mean = jnp.mean(x, axis=(0, 1, 2))
    var = jnp.mean(jnp.square(x - mean), axis=(0, 1, 2))
    return (x - mean) * jax.lax.rsqrt(var + eps) * g + b


def bottleneck_ref(params, x_nchw, stride=1):
    x = jnp.transpose(x_nchw, (0, 2, 3, 1))
    idn = x
    out = jax.nn.relu(_bn_ref(_conv_ref(x, params['conv1_w'], 1, 0),
                              params['bn1_g'], params['bn1_b']))
    out = jax.nn.relu(_bn_ref(_conv_ref(out, params['conv2_w'], stride, 1),
                              params['bn2_g'], params['bn2_b']))
    out = _bn_ref(_conv_ref(out, params['conv3_w'], 1, 0),
                  params['bn3_g'], params['bn3_b'])
    if 'ds_w' in params:
        idn = _bn_ref(_conv_ref(x, params['ds_w'], stride, 0),
                      params['ds_g'], params['ds_b'])
    out = jax.nn.relu(out + idn)
    return jnp.transpose(out, (0, 3, 1, 2))


# ----------------------------------------------------------------------------
# Deterministic parameter init (mirrors module __init__ shapes)
# ----------------------------------------------------------------------------


def _kaiming_conv(key, cout, cin, kh, kw):
    fan_out = cout * kh * kw
    std = math.sqrt(2.0 / fan_out)
    return std * jax.random.normal(key, (cout, cin, kh, kw), jnp.float32)


def init_bottleneck_params(key, in_channel, out_channel, stride=1):
    keys = jax.random.split(key, 4)
    oc4 = out_channel * EXPANSION
    p = {
        'conv1_w': _kaiming_conv(keys[0], out_channel, in_channel, 1, 1),
        'bn1_g': jnp.ones((out_channel,), jnp.float32),
        'bn1_b': jnp.zeros((out_channel,), jnp.float32),
        'conv2_w': _kaiming_conv(keys[1], out_channel, out_channel, 3, 3),
        'bn2_g': jnp.ones((out_channel,), jnp.float32),
        'bn2_b': jnp.zeros((out_channel,), jnp.float32),
        'conv3_w': _kaiming_conv(keys[2], oc4, out_channel, 1, 1),
        'bn3_g': jnp.ones((oc4,), jnp.float32),
        'bn3_b': jnp.zeros((oc4,), jnp.float32),
    }
    if stride != 1 or in_channel != oc4:
        p['ds_w'] = _kaiming_conv(keys[3], oc4, in_channel, 1, 1)
        p['ds_g'] = jnp.ones((oc4,), jnp.float32)
        p['ds_b'] = jnp.zeros((oc4,), jnp.float32)
    return p


# ----------------------------------------------------------------------------


if __name__ == "__main__":
    key = jax.random.PRNGKey(0)
    kp1, kx1, kp2, kx2 = jax.random.split(key, 4)

    # Case 1: stride=1, identity shortcut (in_channel == out_channel * expansion).
    p1 = init_bottleneck_params(kp1, in_channel=128, out_channel=32, stride=1)
    x1 = jax.random.normal(kx1, (2, 128, 16, 16), jnp.float32)
    fwd1 = jax.jit(lambda p, x: bottleneck_forward(p, x, stride=1))
    out1 = jax.block_until_ready(fwd1(p1, x1))
    assert out1.shape == (2, 128, 16, 16), out1.shape
    assert bool(jnp.all(jnp.isfinite(out1)))
    ref1 = bottleneck_ref(p1, x1, stride=1)
    assert bool(jnp.allclose(out1, ref1, atol=1e-1, rtol=1e-1)), \
        float(jnp.max(jnp.abs(out1 - ref1)))

    # Case 2: stride=2 with conv1x1+BN downsample on the identity path.
    p2 = init_bottleneck_params(kp2, in_channel=64, out_channel=32, stride=2)
    x2 = jax.random.normal(kx2, (2, 64, 16, 16), jnp.float32)
    fwd2 = jax.jit(lambda p, x: bottleneck_forward(p, x, stride=2))
    out2 = jax.block_until_ready(fwd2(p2, x2))
    assert out2.shape == (2, 128, 8, 8), out2.shape
    assert bool(jnp.all(jnp.isfinite(out2)))
    ref2 = bottleneck_ref(p2, x2, stride=2)
    assert bool(jnp.allclose(out2, ref2, atol=1e-1, rtol=1e-1)), \
        float(jnp.max(jnp.abs(out2 - ref2)))

    print("KERNEL_OK")
</pallas_src>

<mosaic_0001>
module attributes {stable_mosaic.version = 11 : i64} {
  func.func @_conv1x1_kernel(%arg0: i32, %arg1: i32, %arg2: memref<64x128xf32, #tpu.memory_space<vmem>>, %arg3: memref<128x32xbf16, #tpu.memory_space<vmem>>, %arg4: memref<64x32xbf16, #tpu.memory_space<vmem>>, %arg5: memref<1x1x32xf32, #tpu.memory_space<vmem>>, %arg6: memref<1x1x32xf32, #tpu.memory_space<vmem>>) attributes {dimension_semantics = [#tpu.dimension_semantics<parallel>, #tpu.dimension_semantics<parallel>], iteration_bounds = array<i64: 8, 1>, scalar_prefetch = 0 : i64, scratch_operands = 0 : i64, tpu.core_type = #tpu.core_type<tc>, window_params = [{transform_indices = @transform_0, window_bounds = array<i64: 64, 128>}, {transform_indices = @transform_1, window_bounds = array<i64: 128, 32>}, {transform_indices = @transform_2, window_bounds = array<i64: 64, 32>}, {transform_indices = @transform_3, window_bounds = array<i64: 1, 1, 32>}, {transform_indices = @transform_4, window_bounds = array<i64: 1, 1, 32>}]} {
    %c0 = arith.constant 0 : index
    %c0_0 = arith.constant 0 : index
    %0 = vector.load %arg2[%c0, %c0_0] : memref<64x128xf32, #tpu.memory_space<vmem>>, vector<64x128xf32>
    %1 = arith.truncf %0 : vector<64x128xf32> to vector<64x128xbf16>
    %c0_1 = arith.constant 0 : index
    %c0_2 = arith.constant 0 : index
    %2 = vector.load %arg3[%c0_1, %c0_2] : memref<128x32xbf16, #tpu.memory_space<vmem>>, vector<128x32xbf16>
    %cst = arith.constant dense<0.000000e+00> : vector<64x32xf32>
    %3 = tpu.matmul %1, %2, %cst {dimension_numbers = #tpu.dot_dimension_numbers<[1], [0], [0], [1], [0, 0, 1, 1], [], []>} : vector<64x128xbf16>, vector<128x32xbf16>, vector<64x32xf32> -> vector<64x32xf32>
    %4 = arith.truncf %3 : vector<64x32xf32> to vector<64x32xbf16>
    %c0_3 = arith.constant 0 : index
    %c0_4 = arith.constant 0 : index
    %5 = vector.load %arg4[%c0_3, %c0_4] : memref<64x32xbf16, #tpu.memory_space<vmem>>, vector<64x32xbf16>
    tpu.vector_store %arg4[%c0_3, %c0_4], %4 {strides = array<i32>} : memref<64x32xbf16, #tpu.memory_space<vmem>>, vector<64x32xbf16>,
    %cst_5 = arith.constant dense<0.000000e+00> : vector<32xf32>
    %6 = vector.multi_reduction <add>, %3, %cst_5 [0] : vector<64x32xf32> to vector<32xf32>
    %7 = vector.shape_cast %6 : vector<32xf32> to vector<1x1x32xf32>
    %c0_6 = arith.constant 0 : index
    %c0_7 = arith.constant 0 : index
    %c0_8 = arith.constant 0 : index
    %8 = vector.load %arg5[%c0_6, %c0_7, %c0_8] : memref<1x1x32xf32, #tpu.memory_space<vmem>>, vector<1x1x32xf32>
    tpu.vector_store %arg5[%c0_6, %c0_7, %c0_8], %7 {strides = array<i32>} : memref<1x1x32xf32, #tpu.memory_space<vmem>>, vector<1x1x32xf32>,
    %9 = arith.mulf %3, %3 : vector<64x32xf32>
    %cst_9 = arith.constant dense<0.000000e+00> : vector<32xf32>
    %10 = vector.multi_reduction <add>, %9, %cst_9 [0] : vector<64x32xf32> to vector<32xf32>
    %11 = vector.shape_cast %10 : vector<32xf32> to vector<1x1x32xf32>
    %c0_10 = arith.constant 0 : index
    %c0_11 = arith.constant 0 : index
    %c0_12 = arith.constant 0 : index
    %12 = vector.load %arg6[%c0_10, %c0_11, %c0_12] : memref<1x1x32xf32, #tpu.memory_space<vmem>>, vector<1x1x32xf32>
    tpu.vector_store %arg6[%c0_10, %c0_11, %c0_12], %11 {strides = array<i32>} : memref<1x1x32xf32, #tpu.memory_space<vmem>>, vector<1x1x32xf32>,
    return
  }
  func.func @transform_0(%arg0: i32, %arg1: i32) -> (i32, i32) {
    %c0_i32 = arith.constant 0 : i32
    %c0_i32_0 = arith.constant 0 : i32
    return %arg0, %c0_i32 : i32, i32
  }
  func.func @transform_1(%arg0: i32, %arg1: i32) -> (i32, i32) {
    %c0_i32 = arith.constant 0 : i32
    %c0_i32_0 = arith.constant 0 : i32
    return %c0_i32, %arg1 : i32, i32
  }
  func.func @transform_2(%arg0: i32, %arg1: i32) -> (i32, i32) {
    %c0_i32 = arith.constant 0 : i32
    return %arg0, %arg1 : i32, i32
  }
  func.func @transform_3(%arg0: i32, %arg1: i32) -> (i32, i32, i32) {
    %c0_i32 = arith.constant 0 : i32
    %c0_i32_0 = arith.constant 0 : i32
    return %arg0, %c0_i32, %arg1 : i32, i32, i32
  }
  func.func @transform_4(%arg0: i32, %arg1: i32) -> (i32, i32, i32) {
    %c0_i32 = arith.constant 0 : i32
    %c0_i32_0 = arith.constant 0 : i32
    return %arg0, %c0_i32, %arg1 : i32, i32, i32
  }
}

module attributes {stable_mosaic.version = 11 : i64} {
  func.func @_conv3x3_kernel(%arg0: i32, %arg1: i32, %arg2: memref<1x18x18x32xbf16, #tpu.memory_space<vmem>>, %arg3: memref<9x32x32xbf16, #tpu.memory_space<vmem>>, %arg4: memref<1x32xf32, #tpu.memory_space<vmem>>, %arg5: memref<1x32xf32, #tpu.memory_space<vmem>>, %arg6: memref<1x4x16x32xbf16, #tpu.memory_space<vmem>>, %arg7: memref<1x1x32xf32, #tpu.memory_space<vmem>>, %arg8: memref<1x1x32xf32, #tpu.memory_space<vmem>>) attributes {dimension_semantics = [#tpu.dimension_semantics<parallel>, #tpu.dimension_semantics<arbitrary>], iteration_bounds = array<i64: 2, 4>, scalar_prefetch = 0 : i64, scratch_operands = 0 : i64, tpu.core_type = #tpu.core_type<tc>, window_params = [{transform_indices = @transform_0, window_bounds = array<i64: 1, 18, 18, 32>}, {pipeline_mode = #tpu.pipeline_mode<synchronous>, transform_indices = @transform_1, window_bounds = array<i64: 9, 32, 32>}, {pipeline_mode = #tpu.pipeline_mode<synchronous>, transform_indices = @transform_2, window_bounds = array<i64: 1, 32>}, {pipeline_mode = #tpu.pipeline_mode<synchronous>, transform_indices = @transform_3, window_bounds = array<i64: 1, 32>}, {transform_indices = @transform_4, window_bounds = array<i64: 1, 4, 16, 32>}, {transform_indices = @transform_5, window_bounds = array<i64: 1, 1, 32>}, {transform_indices = @transform_6, window_bounds = array<i64: 1, 1, 32>}]} {
    %c4_i32 = arith.constant 4 : i32
    %0 = arith.muli %arg1, %c4_i32 : i32
    %1 = tpu.assume_multiple %0, 4 : i32
    %cst = arith.constant 0.000000e+00 : f32
    %2 = vector.broadcast %cst : f32 to vector<64x32xf32>
    %c0 = arith.constant 0 : index
    %3 = arith.index_cast %1 : i32 to index
    %c0_0 = arith.constant 0 : index
    %c0_1 = arith.constant 0 : index
    %4 = vector.load %arg2[%c0, %3, %c0_0, %c0_1] : memref<1x18x18x32xbf16, #tpu.memory_space<vmem>>, vector<1x6x18x32xbf16>
    %5 = vector.shape_cast %4 : vector<1x6x18x32xbf16> to vector<6x18x32xbf16>
    %6 = arith.extf %5 : vector<6x18x32xbf16> to vector<6x18x32xf32>
    %c0_2 = arith.constant 0 : index
    %c0_3 = arith.constant 0 : index
    %7 = vector.load %arg4[%c0_2, %c0_3] : memref<1x32xf32, #tpu.memory_space<vmem>>, vector<1x32xf32>
    %8 = vector.shape_cast %7 : vector<1x32xf32> to vector<1x1x32xf32>
    %9 = vector.broadcast %8 : vector<1x1x32xf32> to vector<6x18x32xf32>
    %10 = arith.mulf %6, %9 : vector<6x18x32xf32>
    %c0_4 = arith.constant 0 : index
    %c0_5 = arith.constant 0 : index
    %11 = vector.load %arg5[%c0_4, %c0_5] : memref<1x32xf32, #tpu.memory_space<vmem>>, vector<1x32xf32>
    %12 = vector.shape_cast %11 : vector<1x32xf32> to vector<1x1x32xf32>
    %13 = vector.broadcast %12 : vector<1x1x32xf32> to vector<6x18x32xf32>
    %14 = arith.addf %10, %13 : vector<6x18x32xf32>
    %cst_6 = arith.constant 0.000000e+00 : f32
    %15 = vector.broadcast %cst_6 : f32 to vector<6x18x32xf32>
    %16 = arith.maximumf %14, %15 : vector<6x18x32xf32>
    %17 = tpu.iota {dimensions = array<i32: 0>} : vector<6x18x32xi32>
    %18 = tpu.iota {dimensions = array<i32: 1>} : vector<6x18x32xi32>
    %19 = vector.broadcast %1 : i32 to vector<6x18x32xi32>
    %20 = arith.addi %19, %17 : vector<6x18x32xi32>
    %c1_i32 = arith.constant 1 : i32
    %21 = vector.broadcast %c1_i32 : i32 to vector<6x18x32xi32>
    %22 = arith.muli %21, %20 : vector<6x18x32xi32>
    %c0_i32 = arith.constant 0 : i32
    %23 = vector.broadcast %c0_i32 : i32 to vector<6x18x32xi32>
    %24 = arith.addi %22, %23 : vector<6x18x32xi32>
    %c1_i32_7 = arith.constant 1 : i32
    %25 = vector.broadcast %c1_i32_7 : i32 to vector<6x18x32xi32>
    %26 = arith.muli %25, %18 : vector<6x18x32xi32>
    %c0_i32_8 = arith.constant 0 : i32
    %27 = vector.broadcast %c0_i32_8 : i32 to vector<6x18x32xi32>
    %28 = arith.addi %26, %27 : vector<6x18x32xi32>
    %c1_i32_9 = arith.constant 1 : i32
    %29 = vector.broadcast %c1_i32_9 : i32 to vector<6x18x32xi32>
    %30 = arith.cmpi sge, %24, %29 : vector<6x18x32xi32>
    %c16_i32 = arith.constant 16 : i32
    %31 = vector.broadcast %c16_i32 : i32 to vector<6x18x32xi32>
    %32 = arith.cmpi sle, %24, %31 : vector<6x18x32xi32>
    %33 = arith.andi %30, %32 : vector<6x18x32xi1>
    %c1_i32_10 = arith.constant 1 : i32
    %34 = vector.broadcast %c1_i32_10 : i32 to vector<6x18x32xi32>
    %35 = arith.cmpi sge, %28, %34 : vector<6x18x32xi32>
    %36 = arith.andi %33, %35 : vector<6x18x32xi1>
    %c16_i32_11 = arith.constant 16 : i32
    %37 = vector.broadcast %c16_i32_11 : i32 to vector<6x18x32xi32>
    %38 = arith.cmpi sle, %28, %37 : vector<6x18x32xi32>
    %39 = arith.andi %36, %38 : vector<6x18x32xi1>
    %cst_12 = arith.constant 0.000000e+00 : f32
    %40 = vector.broadcast %cst_12 : f32 to vector<6x18x32xf32>
    %41 = arith.select %39, %16, %40 : vector<6x18x32xi1>, vector<6x18x32xf32>
    %42 = arith.truncf %41 : vector<6x18x32xf32> to vector<6x18x32xbf16>
    %43 = vector.extract_strided_slice %42 {offsets = [0, 0, 0], sizes = [4, 16, 32], strides = [1, 1, 1]} : vector<6x18x32xbf16> to vector<4x16x32xbf16>
    %44 = vector.shape_cast %43 : vector<4x16x32xbf16> to vector<64x32xbf16>
    %c0_13 = arith.constant 0 : index
    %c0_14 = arith.constant 0 : index
    %c0_15 = arith.constant 0 : index
    %45 = vector.load %arg3[%c0_13, %c0_14, %c0_15] : memref<9x32x32xbf16, #tpu.memory_space<vmem>>, vector<1x32x32xbf16>
    %46 = vector.shape_cast %45 : vector<1x32x32xbf16> to vector<32x32xbf16>
    %cst_16 = arith.constant dense<0.000000e+00> : vector<64x32xf32>
    %47 = tpu.matmul %44, %46, %cst_16 {dimension_numbers = #tpu.dot_dimension_numbers<[1], [0], [0], [1], [0, 0, 1, 1], [], []>} : vector<64x32xbf16>, vector<32x32xbf16>, vector<64x32xf32> -> vector<64x32xf32>
    %48 = arith.addf %2, %47 : vector<64x32xf32>
    %49 = vector.extract_strided_slice %42 {offsets = [0, 1, 0], sizes = [4, 16, 32], strides = [1, 1, 1]} : vector<6x18x32xbf16> to vector<4x16x32xbf16>
    %50 = vector.shape_cast %49 : vector<4x16x32xbf16> to vector<64x32xbf16>
    %c1 = arith.constant 1 : index
    %c0_17 = arith.constant 0 : index
    %c0_18 = arith.constant 0 : index
    %51 = vector.load %arg3[%c1, %c0_17, %c0_18] : memref<9x32x32xbf16, #tpu.memory_space<vmem>>, vector<1x32x32xbf16>
    %52 = vector.shape_cast %51 : vector<1x32x32xbf16> to vector<32x32xbf16>
    %cst_19 = arith.constant dense<0.000000e+00> : vector<64x32xf32>
    %53 = tpu.matmul %50, %52, %cst_19 {dimension_numbers = #tpu.dot_dimension_numbers<[1], [0], [0], [1], [0, 0, 1, 1], [], []>} : vector<64x32xbf16>, vector<32x32xbf16>, vector<64x32xf32> -> vector<64x32xf32>
    %54 = arith.addf %48, %53 : vector<64x32xf32>
    %55 = vector.extract_strided_slice %42 {offsets = [0, 2, 0], sizes = [4, 16, 32], strides = [1, 1, 1]} : vector<6x18x32xbf16> to vector<4x16x32xbf16>
    %56 = vector.shape_cast %55 : vector<4x16x32xbf16> to vector<64x32xbf16>
    %c2 = arith.constant 2 : index
    %c0_20 = arith.constant 0 : index
    %c0_21 = arith.constant 0 : index
    %57 = vector.load %arg3[%c2, %c0_20, %c0_21] : memref<9x32x32xbf16, #tpu.memory_space<vmem>>, vector<1x32x32xbf16>
    %58 = vector.shape_cast %57 : vector<1x32x32xbf16> to vector<32x32xbf16>
    %cst_22 = arith.constant dense<0.000000e+00> : vector<64x32xf32>
    %59 = tpu.matmul %56, %58, %cst_22 {dimension_numbers = #tpu.dot_dimension_numbers<[1], [0], [0], [1], [0, 0, 1, 1], [], []>} : vector<64x32xbf16>, vector<32x32xbf16>, vector<64x32xf32> -> vector<64x32xf32>
    %60 = arith.addf %54, %59 : vector<64x32xf32>
    %61 = vector.extract_strided_slice %42 {offsets = [1, 0, 0], sizes = [4, 16, 32], strides = [1, 1, 1]} : vector<6x18x32xbf16> to vector<4x16x32xbf16>
    %62 = vector.shape_cast %61 : vector<4x16x32xbf16> to vector<64x32xbf16>
    %c3 = arith.constant 3 : index
    %c0_23 = arith.constant 0 : index
    %c0_24 = arith.constant 0 : index
    %63 = vector.load %arg3[%c3, %c0_23, %c0_24] : memref<9x32x32xbf16, #tpu.memory_space<vmem>>, vector<1x32x32xbf16>
    %64 = vector.shape_cast %63 : vector<1x32x32xbf16> to vector<32x32xbf16>
    %cst_25 = arith.constant dense<0.000000e+00> : vector<64x32xf32>
    %65 = tpu.matmul %62, %64, %cst_25 {dimension_numbers = #tpu.dot_dimension_numbers<[1], [0], [0], [1], [0, 0, 1, 1], [], []>} : vector<64x32xbf16>, vector<32x32xbf16>, vector<64x32xf32> -> vector<64x32xf32>
    %66 = arith.addf %60, %65 : vector<64x32xf32>
    %67 = vector.extract_strided_slice %42 {offsets = [1, 1, 0], sizes = [4, 16, 32], strides = [1, 1, 1]} : vector<6x18x32xbf16> to vector<4x16x32xbf16>
    %68 = vector.shape_cast %67 : vector<4x16x32xbf16> to vector<64x32xbf16>
    %c4 = arith.constant 4 : index
    %c0_26 = arith.constant 0 : index
    %c0_27 = arith.constant 0 : index
    %69 = vector.load %arg3[%c4, %c0_26, %c0_27] : memref<9x32x32xbf16, #tpu.memory_space<vmem>>, vector<1x32x32xbf16>
    %70 = vector.shape_cast %69 : vector<1x32x32xbf16> to vector<32x32xbf16>
    %cst_28 = arith.constant dense<0.000000e+00> : vector<64x32xf32>
    %71 = tpu.matmul %68, %70, %cst_28 {dimension_numbers = #tpu.dot_dimension_numbers<[1], [0], [0], [1], [0, 0, 1, 1], [], []>} : vector<64x32xbf16>, vector<32x32xbf16>, vector<64x32xf32> -> vector<64x32xf32>
    %72 = arith.addf %66, %71 : vector<64x32xf32>
    %73 = vector.extract_strided_slice %42 {offsets = [1, 2, 0], sizes = [4, 16, 32], strides = [1, 1, 1]} : vector<6x18x32xbf16> to vector<4x16x32xbf16>
    %74 = vector.shape_cast %73 : vector<4x16x32xbf16> to vector<64x32xbf16>
    %c5 = arith.constant 5 : index
    %c0_29 = arith.constant 0 : index
    %c0_30 = arith.constant 0 : index
    %75 = vector.load %arg3[%c5, %c0_29, %c0_30] : memref<9x32x32xbf16, #tpu.memory_space<vmem>>, vector<1x32x32xbf16>
    %76 = vector.shape_cast %75 : vector<1x32x32xbf16> to vector<32x32xbf16>
    %cst_31 = arith.constant dense<0.000000e+00> : vector<64x32xf32>
    %77 = tpu.matmul %74, %76, %cst_31 {dimension_numbers = #tpu.dot_dimension_numbers<[1], [0], [0], [1], [0, 0, 1, 1], [], []>} : vector<64x32xbf16>, vector<32x32xbf16>, vector<64x32xf32> -> vector<64x32xf32>
    %78 = arith.addf %72, %77 : vector<64x32xf32>
    %79 = vector.extract_strided_slice %42 {offsets = [2, 0, 0], sizes = [4, 16, 32], strides = [1, 1, 1]} : vector<6x18x32xbf16> to vector<4x16x32xbf16>
    %80 = vector.shape_cast %79 : vector<4x16x32xbf16> to vector<64x32xbf16>
    %c6 = arith.constant 6 : index
    %c0_32 = arith.constant 0 : index
    %c0_33 = arith.constant 0 : index
    %81 = vector.load %arg3[%c6, %c0_32, %c0_33] : memref<9x32x32xbf16, #tpu.memory_space<vmem>>, vector<1x32x32xbf16>
    %82 = vector.shape_cast %81 : vector<1x32x32xbf16> to vector<32x32xbf16>
    %cst_34 = arith.constant dense<0.000000e+00> : vector<64x32xf32>
    %83 = tpu.matmul %80, %82, %cst_34 {dimension_numbers = #tpu.dot_dimension_numbers<[1], [0], [0], [1], [0, 0, 1, 1], [], []>} : vector<64x32xbf16>, vector<32x32xbf16>, vector<64x32xf32> -> vector<64x32xf32>
    %84 = arith.addf %78, %83 : vector<64x32xf32>
    %85 = vector.extract_strided_slice %42 {offsets = [2, 1, 0], sizes = [4, 16, 32], strides = [1, 1, 1]} : vector<6x18x32xbf16> to vector<4x16x32xbf16>
    %86 = vector.shape_cast %85 : vector<4x16x32xbf16> to vector<64x32xbf16>
    %c7 = arith.constant 7 : index
    %c0_35 = arith.constant 0 : index
    %c0_36 = arith.constant 0 : index
    %87 = vector.load %arg3[%c7, %c0_35, %c0_36] : memref<9x32x32xbf16, #tpu.memory_space<vmem>>, vector<1x32x32xbf16>
    %88 = vector.shape_cast %87 : vector<1x32x32xbf16> to vector<32x32xbf16>
    %cst_37 = arith.constant dense<0.000000e+00> : vector<64x32xf32>
    %89 = tpu.matmul %86, %88, %cst_37 {dimension_numbers = #tpu.dot_dimension_numbers<[1], [0], [0], [1], [0, 0, 1, 1], [], []>} : vector<64x32xbf16>, vector<32x32xbf16>, vector<64x32xf32> -> vector<64x32xf32>
    %90 = arith.addf %84, %89 : vector<64x32xf32>
    %91 = vector.extract_strided_slice %42 {offsets = [2, 2, 0], sizes = [4, 16, 32], strides = [1, 1, 1]} : vector<6x18x32xbf16> to vector<4x16x32xbf16>
    %92 = vector.shape_cast %91 : vector<4x16x32xbf16> to vector<64x32xbf16>
    %c8 = arith.constant 8 : index
    %c0_38 = arith.constant 0 : index
    %c0_39 = arith.constant 0 : index
    %93 = vector.load %arg3[%c8, %c0_38, %c0_39] : memref<9x32x32xbf16, #tpu.memory_space<vmem>>, vector<1x32x32xbf16>
    %94 = vector.shape_cast %93 : vector<1x32x32xbf16> to vector<32x32xbf16>
    %cst_40 = arith.constant dense<0.000000e+00> : vector<64x32xf32>
    %95 = tpu.matmul %92, %94, %cst_40 {dimension_numbers = #tpu.dot_dimension_numbers<[1], [0], [0], [1], [0, 0, 1, 1], [], []>} : vector<64x32xbf16>, vector<32x32xbf16>, vector<64x32xf32> -> vector<64x32xf32>
    %96 = arith.addf %90, %95 : vector<64x32xf32>
    %97 = vector.shape_cast %96 : vector<64x32xf32> to vector<1x4x16x32xf32>
    %98 = arith.truncf %97 : vector<1x4x16x32xf32> to vector<1x4x16x32xbf16>
    %c0_41 = arith.constant 0 : index
    %c0_42 = arith.constant 0 : index
    %c0_43 = arith.constant 0 : index
    %c0_44 = arith.constant 0 : index
    %99 = vector.load %arg6[%c0_41, %c0_42, %c0_43, %c0_44] : memref<1x4x16x32xbf16, #tpu.memory_space<vmem>>, vector<1x4x16x32xbf16>
    tpu.vector_store %arg6[%c0_41, %c0_42, %c0_43, %c0_44], %98 {strides = array<i32>} : memref<1x4x16x32xbf16, #tpu.memory_space<vmem>>, vector<1x4x16x32xbf16>,
    %cst_45 = arith.constant dense<0.000000e+00> : vector<32xf32>
    %100 = vector.multi_reduction <add>, %96, %cst_45 [0] : vector<64x32xf32> to vector<32xf32>
    %101 = vector.shape_cast %100 : vector<32xf32> to vector<1x1x32xf32>
    %c0_46 = arith.constant 0 : index
    %c0_47 = arith.constant 0 : index
    %c0_48 = arith.constant 0 : index
    %102 = vector.load %arg7[%c0_46, %c0_47, %c0_48] : memref<1x1x32xf32, #tpu.memory_space<vmem>>, vector<1x1x32xf32>
    tpu.vector_store %arg7[%c0_46, %c0_47, %c0_48], %101 {strides = array<i32>} : memref<1x1x32xf32, #tpu.memory_space<vmem>>, vector<1x1x32xf32>,
    %103 = arith.mulf %96, %96 : vector<64x32xf32>
    %cst_49 = arith.constant dense<0.000000e+00> : vector<32xf32>
    %104 = vector.multi_reduction <add>, %103, %cst_49 [0] : vector<64x32xf32> to vector<32xf32>
    %105 = vector.shape_cast %104 : vector<32xf32> to vector<1x1x32xf32>
    %c0_50 = arith.constant 0 : index
    %c0_51 = arith.constant 0 : index
    %c0_52 = arith.constant 0 : index
    %106 = vector.load %arg8[%c0_50, %c0_51, %c0_52] : memref<1x1x32xf32, #tpu.memory_space<vmem>>, vector<1x1x32xf32>
    tpu.vector_store %arg8[%c0_50, %c0_51, %c0_52], %105 {strides = array<i32>} : memref<1x1x32xf32, #tpu.memory_space<vmem>>, vector<1x1x32xf32>,
    return
  }
  func.func @transform_0(%arg0: i32, %arg1: i32) -> (i32, i32, i32, i32) {
    %c0_i32 = arith.constant 0 : i32
    %c0_i32_0 = arith.constant 0 : i32
    %c0_i32_1 = arith.constant 0 : i32
    %c0_i32_2 = arith.constant 0 : i32
    return %arg0, %c0_i32, %c0_i32_0, %c0_i32_1 : i32, i32, i32, i32
  }
  func.func @transform_1(%arg0: i32, %arg1: i32) -> (i32, i32, i32) {
    %c0_i32 = arith.constant 0 : i32
    %c0_i32_0 = arith.constant 0 : i32
    %c0_i32_1 = arith.constant 0 : i32
    %c0_i32_2 = arith.constant 0 : i32
    return %c0_i32, %c0_i32_0, %c0_i32_1 : i32, i32, i32
  }
  func.func @transform_2(%arg0: i32, %arg1: i32) -> (i32, i32) {
    %c0_i32 = arith.constant 0 : i32
    %c0_i32_0 = arith.constant 0 : i32
    %c0_i32_1 = arith.constant 0 : i32
    return %c0_i32, %c0_i32_0 : i32, i32
  }
  func.func @transform_3(%arg0: i32, %arg1: i32) -> (i32, i32) {
    %c0_i32 = arith.constant 0 : i32
    %c0_i32_0 = arith.constant 0 : i32
    %c0_i32_1 = arith.constant 0 : i32
    return %c0_i32, %c0_i32_0 : i32, i32
  }
  func.func @transform_4(%arg0: i32, %arg1: i32) -> (i32, i32, i32, i32) {
    %c0_i32 = arith.constant 0 : i32
    %c0_i32_0 = arith.constant 0 : i32
    %c0_i32_1 = arith.constant 0 : i32
    return %arg0, %arg1, %c0_i32, %c0_i32_0 : i32, i32, i32, i32
  }
  func.func @transform_5(%arg0: i32, %arg1: i32) -> (i32, i32, i32) {
    %c4_i32 = arith.constant 4 : i32
    %0 = arith.muli %arg0, %c4_i32 : i32
    %1 = arith.addi %0, %arg1 : i32
    %c0_i32 = arith.constant 0 : i32
    %c0_i32_0 = arith.constant 0 : i32
    %c0_i32_1 = arith.constant 0 : i32
    return %1, %c0_i32, %c0_i32_0 : i32, i32, i32
  }
  func.func @transform_6(%arg0: i32, %arg1: i32) -> (i32, i32, i32) {
    %c4_i32 = arith.constant 4 : i32
    %0 = arith.muli %arg0, %c4_i32 : i32
    %1 = arith.addi %0, %arg1 : i32
    %c0_i32 = arith.constant 0 : i32
    %c0_i32_0 = arith.constant 0 : i32
    %c0_i32_1 = arith.constant 0 : i32
    return %1, %c0_i32, %c0_i32_0 : i32, i32, i32
  }
}

module attributes {stable_mosaic.version = 11 : i64} {
  func.func @_res_kernel(%arg0: i32, %arg1: memref<64x128xbf16, #tpu.memory_space<vmem>>, %arg2: memref<64x128xf32, #tpu.memory_space<vmem>>, %arg3: memref<1x128xf32, #tpu.memory_space<vmem>>, %arg4: memref<1x128xf32, #tpu.memory_space<vmem>>, %arg5: memref<64x128xf32, #tpu.memory_space<vmem>>) attributes {dimension_semantics = [#tpu.dimension_semantics<parallel>], iteration_bounds = array<i64: 8>, scalar_prefetch = 0 : i64, scratch_operands = 0 : i64, tpu.core_type = #tpu.core_type<tc>, window_params = [{transform_indices = @transform_0, window_bounds = array<i64: 64, 128>}, {transform_indices = @transform_1, window_bounds = array<i64: 64, 128>}, {pipeline_mode = #tpu.pipeline_mode<synchronous>, transform_indices = @transform_2, window_bounds = array<i64: 1, 128>}, {pipeline_mode = #tpu.pipeline_mode<synchronous>, transform_indices = @transform_3, window_bounds = array<i64: 1, 128>}, {transform_indices = @transform_4, window_bounds = array<i64: 64, 128>}]} {
    %c0 = arith.constant 0 : index
    %c0_0 = arith.constant 0 : index
    %0 = vector.load %arg1[%c0, %c0_0] : memref<64x128xbf16, #tpu.memory_space<vmem>>, vector<64x128xbf16>
    %1 = arith.extf %0 : vector<64x128xbf16> to vector<64x128xf32>
    %c0_1 = arith.constant 0 : index
    %c0_2 = arith.constant 0 : index
    %2 = vector.load %arg3[%c0_1, %c0_2] : memref<1x128xf32, #tpu.memory_space<vmem>>, vector<1x128xf32>
    %3 = vector.broadcast %2 : vector<1x128xf32> to vector<64x128xf32>
    %4 = arith.mulf %1, %3 : vector<64x128xf32>
    %c0_3 = arith.constant 0 : index
    %c0_4 = arith.constant 0 : index
    %5 = vector.load %arg4[%c0_3, %c0_4] : memref<1x128xf32, #tpu.memory_space<vmem>>, vector<1x128xf32>
    %6 = vector.broadcast %5 : vector<1x128xf32> to vector<64x128xf32>
    %7 = arith.addf %4, %6 : vector<64x128xf32>
    %c0_5 = arith.constant 0 : index
    %c0_6 = arith.constant 0 : index
    %8 = vector.load %arg2[%c0_5, %c0_6] : memref<64x128xf32, #tpu.memory_space<vmem>>, vector<64x128xf32>
    %9 = arith.addf %7, %8 : vector<64x128xf32>
    %cst = arith.constant 0.000000e+00 : f32
    %10 = vector.broadcast %cst : f32 to vector<64x128xf32>
    %11 = arith.maximumf %9, %10 : vector<64x128xf32>
    %c0_7 = arith.constant 0 : index
    %c0_8 = arith.constant 0 : index
    %12 = vector.load %arg5[%c0_7, %c0_8] : memref<64x128xf32, #tpu.memory_space<vmem>>, vector<64x128xf32>
    tpu.vector_store %arg5[%c0_7, %c0_8], %11 {strides = array<i32>} : memref<64x128xf32, #tpu.memory_space<vmem>>, vector<64x128xf32>,
    return
  }
  func.func @transform_0(%arg0: i32) -> (i32, i32) {
    %c0_i32 = arith.constant 0 : i32
    %c0_i32_0 = arith.constant 0 : i32
    return %arg0, %c0_i32 : i32, i32
  }
  func.func @transform_1(%arg0: i32) -> (i32, i32) {
    %c0_i32 = arith.constant 0 : i32
    %c0_i32_0 = arith.constant 0 : i32
    return %arg0, %c0_i32 : i32, i32
  }
  func.func @transform_2(%arg0: i32) -> (i32, i32) {
    %c0_i32 = arith.constant 0 : i32
    %c0_i32_0 = arith.constant 0 : i32
    %c0_i32_1 = arith.constant 0 : i32
    return %c0_i32, %c0_i32_0 : i32, i32
  }
  func.func @transform_3(%arg0: i32) -> (i32, i32) {
    %c0_i32 = arith.constant 0 : i32
    %c0_i32_0 = arith.constant 0 : i32
    %c0_i32_1 = arith.constant 0 : i32
    return %c0_i32, %c0_i32_0 : i32, i32
  }
  func.func @transform_4(%arg0: i32) -> (i32, i32) {
    %c0_i32 = arith.constant 0 : i32
    %c0_i32_0 = arith.constant 0 : i32
    return %arg0, %c0_i32 : i32, i32
  }
}

module attributes {stable_mosaic.version = 11 : i64} {
  func.func @_conv1x1_affine_kernel(%arg0: i32, %arg1: i32, %arg2: memref<64x32xbf16, #tpu.memory_space<vmem>>, %arg3: memref<1x32xf32, #tpu.memory_space<vmem>>, %arg4: memref<1x32xf32, #tpu.memory_space<vmem>>, %arg5: memref<32x128xbf16, #tpu.memory_space<vmem>>, %arg6: memref<64x128xbf16, #tpu.memory_space<vmem>>, %arg7: memref<1x1x128xf32, #tpu.memory_space<vmem>>, %arg8: memref<1x1x128xf32, #tpu.memory_space<vmem>>) attributes {dimension_semantics = [#tpu.dimension_semantics<parallel>, #tpu.dimension_semantics<parallel>], iteration_bounds = array<i64: 8, 1>, scalar_prefetch = 0 : i64, scratch_operands = 0 : i64, tpu.core_type = #tpu.core_type<tc>, window_params = [{transform_indices = @transform_0, window_bounds = array<i64: 64, 32>}, {pipeline_mode = #tpu.pipeline_mode<synchronous>, transform_indices = @transform_1, window_bounds = array<i64: 1, 32>}, {pipeline_mode = #tpu.pipeline_mode<synchronous>, transform_indices = @transform_2, window_bounds = array<i64: 1, 32>}, {transform_indices = @transform_3, window_bounds = array<i64: 32, 128>}, {transform_indices = @transform_4, window_bounds = array<i64: 64, 128>}, {transform_indices = @transform_5, window_bounds = array<i64: 1, 1, 128>}, {transform_indices = @transform_6, window_bounds = array<i64: 1, 1, 128>}]} {
    %c0 = arith.constant 0 : index
    %c0_0 = arith.constant 0 : index
    %0 = vector.load %arg2[%c0, %c0_0] : memref<64x32xbf16, #tpu.memory_space<vmem>>, vector<64x32xbf16>
    %1 = arith.extf %0 : vector<64x32xbf16> to vector<64x32xf32>
    %c0_1 = arith.constant 0 : index
    %c0_2 = arith.constant 0 : index
    %2 = vector.load %arg3[%c0_1, %c0_2] : memref<1x32xf32, #tpu.memory_space<vmem>>, vector<1x32xf32>
    %3 = vector.broadcast %2 : vector<1x32xf32> to vector<64x32xf32>
    %4 = arith.mulf %1, %3 : vector<64x32xf32>
    %c0_3 = arith.constant 0 : index
    %c0_4 = arith.constant 0 : index
    %5 = vector.load %arg4[%c0_3, %c0_4] : memref<1x32xf32, #tpu.memory_space<vmem>>, vector<1x32xf32>
    %6 = vector.broadcast %5 : vector<1x32xf32> to vector<64x32xf32>
    %7 = arith.addf %4, %6 : vector<64x32xf32>
    %cst = arith.constant 0.000000e+00 : f32
    %8 = vector.broadcast %cst : f32 to vector<64x32xf32>
    %9 = arith.maximumf %7, %8 : vector<64x32xf32>
    %10 = arith.truncf %9 : vector<64x32xf32> to vector<64x32xbf16>
    %c0_5 = arith.constant 0 : index
    %c0_6 = arith.constant 0 : index
    %11 = vector.load %arg5[%c0_5, %c0_6] : memref<32x128xbf16, #tpu.memory_space<vmem>>, vector<32x128xbf16>
    %cst_7 = arith.constant dense<0.000000e+00> : vector<64x128xf32>
    %12 = tpu.matmul %10, %11, %cst_7 {dimension_numbers = #tpu.dot_dimension_numbers<[1], [0], [0], [1], [0, 0, 1, 1], [], []>} : vector<64x32xbf16>, vector<32x128xbf16>, vector<64x128xf32> -> vector<64x128xf32>
    %13 = arith.truncf %12 : vector<64x128xf32> to vector<64x128xbf16>
    %c0_8 = arith.constant 0 : index
    %c0_9 = arith.constant 0 : index
    %14 = vector.load %arg6[%c0_8, %c0_9] : memref<64x128xbf16, #tpu.memory_space<vmem>>, vector<64x128xbf16>
    tpu.vector_store %arg6[%c0_8, %c0_9], %13 {strides = array<i32>} : memref<64x128xbf16, #tpu.memory_space<vmem>>, vector<64x128xbf16>,
    %cst_10 = arith.constant dense<0.000000e+00> : vector<128xf32>
    %15 = vector.multi_reduction <add>, %12, %cst_10 [0] : vector<64x128xf32> to vector<128xf32>
    %16 = vector.shape_cast %15 : vector<128xf32> to vector<1x1x128xf32>
    %c0_11 = arith.constant 0 : index
    %c0_12 = arith.constant 0 : index
    %c0_13 = arith.constant 0 : index
    %17 = vector.load %arg7[%c0_11, %c0_12, %c0_13] : memref<1x1x128xf32, #tpu.memory_space<vmem>>, vector<1x1x128xf32>
    tpu.vector_store %arg7[%c0_11, %c0_12, %c0_13], %16 {strides = array<i32>} : memref<1x1x128xf32, #tpu.memory_space<vmem>>, vector<1x1x128xf32>,
    %18 = arith.mulf %12, %12 : vector<64x128xf32>
    %cst_14 = arith.constant dense<0.000000e+00> : vector<128xf32>
    %19 = vector.multi_reduction <add>, %18, %cst_14 [0] : vector<64x128xf32> to vector<128xf32>
    %20 = vector.shape_cast %19 : vector<128xf32> to vector<1x1x128xf32>
    %c0_15 = arith.constant 0 : index
    %c0_16 = arith.constant 0 : index
    %c0_17 = arith.constant 0 : index
    %21 = vector.load %arg8[%c0_15, %c0_16, %c0_17] : memref<1x1x128xf32, #tpu.memory_space<vmem>>, vector<1x1x128xf32>
    tpu.vector_store %arg8[%c0_15, %c0_16, %c0_17], %20 {strides = array<i32>} : memref<1x1x128xf32, #tpu.memory_space<vmem>>, vector<1x1x128xf32>,
    return
  }
  func.func @transform_0(%arg0: i32, %arg1: i32) -> (i32, i32) {
    %c0_i32 = arith.constant 0 : i32
    %c0_i32_0 = arith.constant 0 : i32
    return %arg0, %c0_i32 : i32, i32
  }
  func.func @transform_1(%arg0: i32, %arg1: i32) -> (i32, i32) {
    %c0_i32 = arith.constant 0 : i32
    %c0_i32_0 = arith.constant 0 : i32
    %c0_i32_1 = arith.constant 0 : i32
    return %c0_i32, %c0_i32_0 : i32, i32
  }
  func.func @transform_2(%arg0: i32, %arg1: i32) -> (i32, i32) {
    %c0_i32 = arith.constant 0 : i32
    %c0_i32_0 = arith.constant 0 : i32
    %c0_i32_1 = arith.constant 0 : i32
    return %c0_i32, %c0_i32_0 : i32, i32
  }
  func.func @transform_3(%arg0: i32, %arg1: i32) -> (i32, i32) {
    %c0_i32 = arith.constant 0 : i32
    %c0_i32_0 = arith.constant 0 : i32
    return %c0_i32, %arg1 : i32, i32
  }
  func.func @transform_4(%arg0: i32, %arg1: i32) -> (i32, i32) {
    %c0_i32 = arith.constant 0 : i32
    return %arg0, %arg1 : i32, i32
  }
  func.func @transform_5(%arg0: i32, %arg1: i32) -> (i32, i32, i32) {
    %c0_i32 = arith.constant 0 : i32
    %c0_i32_0 = arith.constant 0 : i32
    return %arg0, %c0_i32, %arg1 : i32, i32, i32
  }
  func.func @transform_6(%arg0: i32, %arg1: i32) -> (i32, i32, i32) {
    %c0_i32 = arith.constant 0 : i32
    %c0_i32_0 = arith.constant 0 : i32
    return %arg0, %c0_i32, %arg1 : i32, i32, i32
  }
}

</mosaic_0001>

<llo_original>
// kernel: _lambda_.4
$region0: #{_lambda_.4}
  #allocation0 [shape = 'u32[]', space=smem, size = 0x4, offset = 0x4, fixed_abs, tag = 'smem constant byte address 0x4 - core index']
  #allocation1 [shape = 'u32[144,128]{1,0:T(1,128)}', space=vmem, size = 0x12000, scoped, tag = 'internal scratch']
  %s0 = inlined_call_operand.hbm [shape: f32[512,128], index: 0, kind: input, shape index: {}]
  %s1 = inlined_call_operand.vmem [shape: bf16[128,32], index: 1, kind: input, shape index: {}]
  %s2 = inlined_call_operand.vmem [shape: bf16[512,32], index: 2, kind: output, shape index: {0}]
  %s3 = inlined_call_operand.vmem [shape: f32[8,1,32], index: 3, kind: output, shape index: {1}]
  %s4 = inlined_call_operand.vmem [shape: f32[8,1,32], index: 4, kind: output, shape index: {2}]
  %5 = xla_tuple %s2, %s3, %s4
  %s6 = sld [smem:[#allocation0]]
  $region61: #{_lambda_.4} parent=0
    _
  %s8 = ssub.s32 1, %s6
  %s9 = scalar_select 0, %s8, %s6
  $region1: #{_lambda_.4} parent=0
    #allocation2 [shape = 'u8[65536]{0}', space=vmem, size = 0x10000, scoped, tag = 'input window, operand 0']
    #allocation3 [shape = 's32[2]{0}', space=sflag, size = 0x8, scoped, tag = 'scoped memory for _lambda_.4']
    %10 = vsyncpa [#allocation3], 0
    %s11 = scalar_lea.sflag [#allocation3], 1
    %12 = vsyncpa %s11, 0
    loop: start=0, step=1, limit=10
    $region2: #{_lambda_.4} parent=1 // loop_pre_header
      _
    $region3: #{_lambda_.4} parent=1 // loop_header
      %s14 = sphi 0, %s18
      %p15 = scmp.ge.s32.totalorder %s14, 10
      %s21 = sphi 0, %s33
      %s22 = sphi 0, %s29
      %s23 = sphi 0, %s21
      %s24 = sphi 0, %s22
      %s25 = sphi 0, %s23
      %s26 = sphi 0, %s24
      %s36 = sphi 0, %s38
      %s39 = sphi 0, %s36
      %s40 = sphi 0, %s39
      %s56 = sphi 0, %s40
      %s62 = sphi 0, %s64
      %s65 = sphi 0, %s62
      %s66 = sphi 0, %s65
      %s82 = sphi 0, %s66
      %s90 = sphi 0, %s92
      %s93 = sphi 0, %s90
      %s94 = sphi 0, %s93
      %s110 = sphi 0, %s94
      %s118 = sphi 0, %s120
      %s121 = sphi 0, %s118
      %s122 = sphi 0, %s121
      %s138 = sphi 0, %s122
      %s146 = sphi 0, %s148
      %s149 = sphi 0, %s146
      %s150 = sphi 0, %s149
      %s166 = sphi 0, %s150
    $region4: #{_lambda_.4} parent=1 // loop_header_branch
      %17 = sbr.rel (%p15) target = $region8
    $region5: #{_lambda_.4} parent=1 // loop_body
      %s19 = ssub.s32 %s14, 1
      %s20 = ssub.s32 %s14, 2
      %s27 = sadd.s32 1, %s22
      %p28 = scmp.ge.s32.totalorder %s27, 1
      %s29 = scalar_select %p28, 0, %s27
      %s30 = sadd.s32 1, %s21
      %s31 = scalar_select %p28, %s30, %s21
      %p32 = scmp.ge.s32.totalorder %s31, 8
      %s33 = scalar_select %p32, 0, %s31
      %s34 = ssub.s32 %s21, %s33
      %p35 = scmp.eq.s32.totalorder %s34, 0
      %s37 = sadd.s32 %s36, 1
      %s38 = scalar_select %p35, %s36, %s37
      %p41 = pneg %p35
      %p42 = scmp.eq.s32.totalorder %s14, 7
      %p43 = por %p41, %p42
      %p44 = scmp.ne.s32.totalorder %s36, %s39
      %p45 = scmp.eq.s32.totalorder %s14, 0
      %p46 = por %p44, %p45
      %p47 = scmp.ne.s32.totalorder %s36, %s39
      %p48 = scmp.eq.s32.totalorder %s19, 7
      %p49 = por %p47, %p48
      %p50 = scmp.ne.s32.totalorder %s39, %s40
      %p51 = scmp.eq.s32.totalorder %s19, 0
      %p52 = por %p50, %p51
      %p53 = scmp.ne.s32.totalorder %s39, %s40
      %p54 = scmp.eq.s32.totalorder %s20, 7
      %p55 = por %p53, %p54
      %p57 = scmp.ne.s32.totalorder %s40, %s56
      %p58 = scmp.eq.s32.totalorder %s20, 0
      %p59 = por %p57, %p58
      %s60 = ssub.s32 %s22, %s29
      %p61 = scmp.eq.s32.totalorder %s60, 0
      %s63 = sadd.s32 %s62, 1
      %s64 = scalar_select %p61, %s62, %s63
      %p67 = pneg %p61
      %p68 = scmp.eq.s32.totalorder %s14, 7
      %p69 = por %p67, %p68
      %p70 = scmp.ne.s32.totalorder %s62, %s65
      %p71 = scmp.eq.s32.totalorder %s14, 0
      %p72 = por %p70, %p71
      %p73 = scmp.ne.s32.totalorder %s62, %s65
      %p74 = scmp.eq.s32.totalorder %s19, 7
      %p75 = por %p73, %p74
      %p76 = scmp.ne.s32.totalorder %s65, %s66
      %p77 = scmp.eq.s32.totalorder %s19, 0
      %p78 = por %p76, %p77
      %p79 = scmp.ne.s32.totalorder %s65, %s66
      %p80 = scmp.eq.s32.totalorder %s20, 7
      %p81 = por %p79, %p80
      %p83 = scmp.ne.s32.totalorder %s66, %s82
      %p84 = scmp.eq.s32.totalorder %s20, 0
      %p85 = por %p83, %p84
      %s86 = ssub.s32 %s21, %s33
      %s87 = ssub.s32 %s22, %s29
      %s88 = sor.u32 %s86, %s87
      %p89 = scmp.eq.s32.totalorder %s88, 0
      %s91 = sadd.s32 %s90, 1
      %s92 = scalar_select %p89, %s90, %s91
      %p95 = pneg %p89
      %p96 = scmp.eq.s32.totalorder %s14, 7
      %p97 = por %p95, %p96
      %p98 = scmp.ne.s32.totalorder %s90, %s93
      %p99 = scmp.eq.s32.totalorder %s14, 0
      %p100 = por %p98, %p99
      %p101 = scmp.ne.s32.totalorder %s90, %s93
      %p102 = scmp.eq.s32.totalorder %s19, 7
      %p103 = por %p101, %p102
      %p104 = scmp.ne.s32.totalorder %s93, %s94
      %p105 = scmp.eq.s32.totalorder %s19, 0
      %p106 = por %p104, %p105
      %p107 = scmp.ne.s32.totalorder %s93, %s94
      %p108 = scmp.eq.s32.totalorder %s20, 7
      %p109 = por %p107, %p108
      %p111 = scmp.ne.s32.totalorder %s94, %s110
      %p112 = scmp.eq.s32.totalorder %s20, 0
      %p113 = por %p111, %p112
      %s114 = ssub.s32 %s21, %s33
      %s115 = ssub.s32 %s22, %s29
      %s116 = sor.u32 %s114, %s115
      %p117 = scmp.eq.s32.totalorder %s116, 0
      %s119 = sadd.s32 %s118, 1
      %s120 = scalar_select %p117, %s118, %s119
      %p123 = pneg %p117
      %p124 = scmp.eq.s32.totalorder %s14, 7
      %p125 = por %p123, %p124
      %p126 = scmp.ne.s32.totalorder %s118, %s121
      %p127 = scmp.eq.s32.totalorder %s14, 0
      %p128 = por %p126, %p127
      %p129 = scmp.ne.s32.totalorder %s118, %s121
      %p130 = scmp.eq.s32.totalorder %s19, 7
      %p131 = por %p129, %p130
      %p132 = scmp.ne.s32.totalorder %s121, %s122
      %p133 = scmp.eq.s32.totalorder %s19, 0
      %p134 = por %p132, %p133
      %p135 = scmp.ne.s32.totalorder %s121, %s122
      %p136 = scmp.eq.s32.totalorder %s20, 7
      %p137 = por %p135, %p136
      %p139 = scmp.ne.s32.totalorder %s122, %s138
      %p140 = scmp.eq.s32.totalorder %s20, 0
      %p141 = por %p139, %p140
      %s142 = ssub.s32 %s21, %s33
      %s143 = ssub.s32 %s22, %s29
      %s144 = sor.u32 %s142, %s143
      %p145 = scmp.eq.s32.totalorder %s144, 0
      %s147 = sadd.s32 %s146, 1
      %s148 = scalar_select %p145, %s146, %s147
      %p151 = pneg %p145
      %p152 = scmp.eq.s32.totalorder %s14, 7
      %p153 = por %p151, %p152
      %p154 = scmp.ne.s32.totalorder %s146, %s149
      %p155 = scmp.eq.s32.totalorder %s14, 0
      %p156 = por %p154, %p155
      %p157 = scmp.ne.s32.totalorder %s146, %s149
      %p158 = scmp.eq.s32.totalorder %s19, 7
      %p159 = por %p157, %p158
      %p160 = scmp.ne.s32.totalorder %s149, %s150
      %p161 = scmp.eq.s32.totalorder %s19, 0
      %p162 = por %p160, %p161
      %p163 = scmp.ne.s32.totalorder %s149, %s150
      %p164 = scmp.eq.s32.totalorder %s20, 7
      %p165 = por %p163, %p164
      %p167 = scmp.ne.s32.totalorder %s150, %s166
      %p168 = scmp.eq.s32.totalorder %s20, 0
      %p169 = por %p167, %p168
      %p170 = scmp.le.s32.totalorder 1, %s14
      %p171 = scmp.lt.s32.totalorder %s14, 9
      %p172 = pnand %p170, %p171
      %p173 = pneg %p172
      // Predicated region
      $region9: #{_lambda_.4} parent=5 // pred_check
        _
      $region10: #{_lambda_.4} parent=5 // pred_check_branch
        %175 = sbr.rel (%p172) target = $region12
      $region11: #{_lambda_.4} parent=5 // pred_region
        %s176 = ssub.s32 %s14, 1
        // Predicated region
        $region13: #{_lambda_.4} parent=11 // pred_check
          %p177 = pneg %p78
        $region14: #{_lambda_.4} parent=11 // pred_check_branch
          %179 = sbr.rel (%p177) target = $region16
        $region15: #{_lambda_.4} parent=11 // pred_region
          %p180 = scmp.lt.s32.totalorder %s24, 0
          %s181 = scalar_select %p180, %s24, 0
          %s182 = smul.addr %s181, 4
          %s183 = scalar_lea.vmem %s1, %s182
        $region16: #{_lambda_.4} parent=11 // pred_fallthru
          _
      $region12: #{_lambda_.4} parent=5 // pred_fallthru
        _
      %p184 = scmp.lt.s32.totalorder %s14, 8
      // Predicated region
      $region17: #{_lambda_.4} parent=5 // pred_check
        %p185 = pneg %p184
      $region18: #{_lambda_.4} parent=5 // pred_check_branch
        %187 = sbr.rel (%p185) target = $region20
      $region19: #{_lambda_.4} parent=5 // pred_region
        // Predicated region
        $region21: #{_lambda_.4} parent=19 // pred_check
          %p188 = pneg %p46
        $region22: #{_lambda_.4} parent=19 // pred_check_branch
          %190 = sbr.rel (%p188) target = $region24
        $region23: #{_lambda_.4} parent=19 // pred_region
          %s191 = sand.u32 %s36, 1
          %s192 = scalar_lea.sflag [#allocation3], %s191
          %s193 = sand.u32 %s36, 1
          %s194 = smul.addr %s193, 64
          %s195 = scalar_lea.vmem [#allocation2], %s194
          %s196 = smul.u32 8, %s21
          %s198 = ssub.s32 1024, 1024
          %199 = vsyncadd %s192, %s198
          %s200 = smul.addr %s196, 128
          %s201 = scalar_lea.hbm %s0, %s200
          %s202 = sshll.u32 %s195, 4
          %s203 = int_to_ptr.vmem [resolvable:$true] %s202
          %208 = dma.hbm_to_vmem [thread:$0]  %s201, 1024, %s203, %s192, 128, 128, 8
        $region24: #{_lambda_.4} parent=19 // pred_fallthru
          _
      $region20: #{_lambda_.4} parent=5 // pred_fallthru
        _
      %p209 = scmp.le.s32.totalorder 1, %s14
      %p210 = scmp.lt.s32.totalorder %s14, 9
      %p211 = pnand %p209, %p210
      %p212 = pneg %p211
      // Predicated region
      $region25: #{_lambda_.4} parent=5 // pred_check
        _
      $region26: #{_lambda_.4} parent=5 // pred_check_branch
        %214 = sbr.rel (%p211) target = $region28
      $region27: #{_lambda_.4} parent=5 // pred_region
        %s215 = ssub.s32 %s14, 1
        %s216 = sand.u32 %s39, 1
        %s217 = scalar_lea.sflag [#allocation3], %s216
        %s218 = sand.u32 %s39, 1
        %s219 = smul.addr %s218, 64
        %s220 = scalar_lea.vmem [#allocation2], %s219
        // Predicated region
        $region29: #{_lambda_.4} parent=27 // pred_check
          %p221 = pneg %p52
        $region30: #{_lambda_.4} parent=27 // pred_check_branch
          %223 = sbr.rel (%p221) target = $region32
        $region31: #{_lambda_.4} parent=27 // pred_region
          %224 = dma.done %s217, 1024
        $region32: #{_lambda_.4} parent=27 // pred_fallthru
          _
        %s225 = sand.u32 %s39, 1
        %s226 = scalar_lea.sflag [#allocation3], %s225
        %s227 = sand.u32 %s39, 1
        %s228 = smul.addr %s227, 64
        %s229 = scalar_lea.vmem [#allocation2], %s228
        %p230 = pneg %p52
        %p231 = pneg %p49
        %p232 = scmp.lt.s32.totalorder %s24, 0
        %s233 = scalar_select %p232, %s24, 0
        %s234 = smul.addr %s233, 4
        %s235 = scalar_lea.vmem %s1, %s234
        %p236 = pneg %p78
        %p237 = pneg %p75
        %p238 = pneg %p106
        %p239 = pneg %p103
        %s240 = smul.u32 8, %s23
        %p241 = scmp.lt.s32.totalorder %s240, 63
        %s242 = scalar_select %p241, %s240, 63
        %p243 = scmp.lt.s32.totalorder %s24, 0
        %s244 = scalar_select %p243, %s24, 0
        %s245 = sadd.s32 %s244, %s242
        %s246 = smul.addr %s245, 4
        %s247 = scalar_lea.vmem %s2, %s246
        %p248 = pneg %p134
        %p249 = pneg %p131
        %p250 = scmp.lt.s32.totalorder %s23, 7
        %s251 = scalar_select %p250, %s23, 7
        %p252 = scmp.lt.s32.totalorder %s24, 0
        %s253 = scalar_select %p252, %s24, 0
        %s254 = sadd.s32 %s253, %s251
        %s255 = scalar_lea.vmem %s3, %s254
        %p256 = pneg %p162
        %p257 = pneg %p159
        %p258 = scmp.lt.s32.totalorder %s23, 7
        %s259 = scalar_select %p258, %s23, 7
        %p260 = scmp.lt.s32.totalorder %s24, 0
        %s261 = scalar_select %p260, %s24, 0
        %s262 = sadd.s32 %s261, %s259
        %s263 = scalar_lea.vmem %s4, %s262
        %s264 = smul.u32 8, %s23
        %p265 = scmp.lt.s32.totalorder %s24, 0
        %s266 = scalar_select %p265, %s24, 0
        %s267 = smul.addr %s266, 4
        %s268 = scalar_lea.vmem %s1, %s267
        %s269 = smul.u32 8, %s23
        %p270 = scmp.lt.s32.totalorder %s269, 63
        %s271 = scalar_select %p270, %s269, 63
        %p272 = scmp.lt.s32.totalorder %s24, 0
        %s273 = scalar_select %p272, %s24, 0
        %s274 = sadd.s32 %s273, %s271
        %s275 = smul.addr %s274, 4
        %s276 = scalar_lea.vmem %s2, %s275
        %s277 = smul.u32 8, %s23
        %p278 = scmp.lt.s32.totalorder %s23, 7
        %s279 = scalar_select %p278, %s23, 7
        %p280 = scmp.lt.s32.totalorder %s24, 0
        %s281 = scalar_select %p280, %s24, 0
        %s282 = sadd.s32 %s281, %s279
        %s283 = scalar_lea.vmem %s3, %s282
        %p284 = scmp.lt.s32.totalorder %s23, 7
        %s285 = scalar_select %p284, %s23, 7
        %p286 = scmp.lt.s32.totalorder %s24, 0
        %s287 = scalar_select %p286, %s24, 0
        %s288 = sadd.s32 %s287, %s285
        %s289 = scalar_lea.vmem %s4, %s288
        %v291 = vld [vmem:[%s220] sm:$0xff]
        %v292 = vld [vmem:[%s220 + $0x8] sm:$0xff]
        %v293 = vld [vmem:[%s220 + $0x10] sm:$0xff]
        %v294 = vld [vmem:[%s220 + $0x18] sm:$0xff]
        %v295 = vld [vmem:[%s220 + $0x20] sm:$0xff]
        %v296 = vld [vmem:[%s220 + $0x28] sm:$0xff]
        %v297 = vld [vmem:[%s220 + $0x30] sm:$0xff]
        %v298 = vld [vmem:[%s220 + $0x38] sm:$0xff]
        %v299 = vpack.c.bf16 %v292, %v291
        %v300 = vpack.c.bf16 %v294, %v293
        %v301 = vpack.c.bf16 %v296, %v295
        %v302 = vpack.c.bf16 %v298, %v297
        %v303 = vld [vmem:[%s268] sm:$0xf]
        %v304 = vld [vmem:[%s268 + $0x4] sm:$0xf]
        %v305 = vld [vmem:[%s268 + $0x8] sm:$0xf]
        %v306 = vld [vmem:[%s268 + $0xc] sm:$0xf]
        %v307 = vld [vmem:[%s268 + $0x10] sm:$0xf]
        %v308 = vld [vmem:[%s268 + $0x14] sm:$0xf]
        %v309 = vld [vmem:[%s268 + $0x18] sm:$0xf]
        %v310 = vld [vmem:[%s268 + $0x1c] sm:$0xf]
        %v311 = vld [vmem:[%s268 + $0x20] sm:$0xf]
        %v312 = vld [vmem:[%s268 + $0x24] sm:$0xf]
        %v313 = vld [vmem:[%s268 + $0x28] sm:$0xf]
        %v314 = vld [vmem:[%s268 + $0x2c] sm:$0xf]
        %v315 = vld [vmem:[%s268 + $0x30] sm:$0xf]
        %v316 = vld [vmem:[%s268 + $0x34] sm:$0xf]
        %v317 = vld [vmem:[%s268 + $0x38] sm:$0xf]
        %v318 = vld [vmem:[%s268 + $0x3c] sm:$0xf]
        %v335 = vunpack.c.l.b16 %v303
        %v336 = vunpack.c.l.b16 %v304
        %v337 = vunpack.c.l.b16 %v305
        %v338 = vunpack.c.l.b16 %v306
        %v339 = vunpack.c.l.b16 %v307
        %v340 = vunpack.c.l.b16 %v308
        %v341 = vunpack.c.l.b16 %v309
        %v342 = vunpack.c.l.b16 %v310
        %v343 = vunpack.c.l.b16 %v311
        %v344 = vunpack.c.l.b16 %v312
        %v345 = vunpack.c.l.b16 %v313
        %v346 = vunpack.c.l.b16 %v314
        %v347 = vunpack.c.l.b16 %v315
        %v348 = vunpack.c.l.b16 %v316
        %v349 = vunpack.c.l.b16 %v317
        %v350 = vunpack.c.l.b16 %v318
        %v351 = vpack.c.b16 %v336, %v335
        %v352 = vpack.c.b16 %v338, %v337
        %v353 = vpack.c.b16 %v340, %v339
        %v354 = vpack.c.b16 %v342, %v341
        %v355 = vpack.c.b16 %v344, %v343
        %v356 = vpack.c.b16 %v346, %v345
        %v357 = vpack.c.b16 %v348, %v347
        %v358 = vpack.c.b16 %v350, %v349
        %367 = vmatprep.subr.bf16.mxu0 0
        %368 = vmatpush1.bf16.msra.mxu0 %v351
        %369 = vmatprep.subr.bf16.mxu0 0
        %370 = vmatpush1.bf16.msra.mxu0 %v352
        %371 = vmatprep.subr.bf16.mxu0 0
        %372 = vmatpush1.bf16.msra.mxu0 %v353
        %373 = vmatprep.subr.bf16.mxu0 0
        %374 = vmatpush1.bf16.msra.mxu0 %v354
        %375 = vmatprep.subr.bf16.mxu0 0
        %376 = vmatpush1.bf16.msra.mxu0 %v355
        %377 = vmatprep.subr.bf16.mxu0 0
        %378 = vmatpush1.bf16.msra.mxu0 %v356
        %379 = vmatprep.subr.bf16.mxu0 0
        %380 = vmatpush1.bf16.msra.mxu0 %v357
        %381 = vmatprep.subr.bf16.mxu0 0
        %382 = vmatpush1.bf16.msra.mxu0 %v358
        %383 = vmatprep.subr.bf16.mxu0 0
        %384 = vmatpush1.bf16.msra.mxu0 0
        %385 = vmatprep.subr.bf16.mxu0 0
        %386 = vmatpush1.bf16.msra.mxu0 0
        %387 = vmatprep.subr.bf16.mxu0 0
        %388 = vmatpush1.bf16.msra.mxu0 0
        %389 = vmatprep.subr.bf16.mxu0 0
        %390 = vmatpush1.bf16.msra.mxu0 0
        %391 = vmatprep.subr.bf16.mxu0 0
        %392 = vmatpush1.bf16.msra.mxu0 0
        %393 = vmatprep.subr.bf16.mxu0 0
        %394 = vmatpush1.bf16.msra.mxu0 0
        %395 = vmatprep.subr.bf16.mxu0 0
        %396 = vmatpush1.bf16.msra.mxu0 0
        %397 = vmatprep.subr.bf16.mxu0 0
        %398 = vmatpush1.bf16.msra.mxu0 0
        %399 = vmatprep.mubr.bf16.mxu0 0
        %400 = vmatmul.mubr.bf16.gmra.mrb[0].mxu0 %v299
        %v401 = vpop.f32.mrb[0].mxu0
        %v402 = vadd.f32 0.0, %v401
        %v403 = vpop.f32.mrb[0].mxu0
        %v404 = vpop.f32.mrb[0].mxu0
        %v405 = vadd.f32 0.0, %v404
        %v406 = vpop.f32.mrb[0].mxu0
        %407 = vmatprep.mubr.bf16.mxu0 0
        %408 = vmatmul.mubr.bf16.gmra.mrb[0].mxu0 %v300
        %v409 = vpop.f32.mrb[0].mxu0
        %v410 = vadd.f32 0.0, %v409
        %v411 = vpop.f32.mrb[0].mxu0
        %v412 = vpop.f32.mrb[0].mxu0
        %v413 = vadd.f32 0.0, %v412
        %v414 = vpop.f32.mrb[0].mxu0
        %415 = vmatprep.mubr.bf16.mxu0 0
        %416 = vmatmul.mubr.bf16.gmra.mrb[0].mxu0 %v301
        %v417 = vpop.f32.mrb[0].mxu0
        %v418 = vadd.f32 0.0, %v417
        %v419 = vpop.f32.mrb[0].mxu0
        %v420 = vpop.f32.mrb[0].mxu0
        %v421 = vadd.f32 0.0, %v420
        %v422 = vpop.f32.mrb[0].mxu0
        %423 = vmatprep.mubr.bf16.mxu0 0
        %424 = vmatmul.mubr.bf16.gmra.mrb[0].mxu0 %v302
        %v425 = vpop.f32.mrb[0].mxu0
        %v426 = vadd.f32 0.0, %v425
        %v427 = vpop.f32.mrb[0].mxu0
        %v428 = vpop.f32.mrb[0].mxu0
        %v429 = vadd.f32 0.0, %v428
        %v430 = vpop.f32.mrb[0].mxu0
        %431 = vdwg.mxu0
        %v432 = vpack.c.bf16 %v405, %v402
        %v433 = vpack.c.bf16 %v413, %v410
        %v434 = vpack.c.bf16 %v421, %v418
        %v435 = vpack.c.bf16 %v429, %v426
        %v440 = vunpack.c.l.b16 %v432
        %v441 = vunpack.c.h.b16 %v432
        %v442 = vunpack.c.l.b16 %v433
        %v443 = vunpack.c.h.b16 %v433
        %v444 = vunpack.c.l.b16 %v434
        %v445 = vunpack.c.h.b16 %v434
        %v446 = vunpack.c.l.b16 %v435
        %v447 = vunpack.c.h.b16 %v435
        %v448 = vpack.c.b16 %v440, %v440
        %v449 = vpack.c.b16 %v441, %v441
        %v450 = vpack.c.b16 %v442, %v442
        %v451 = vpack.c.b16 %v443, %v443
        %v452 = vpack.c.b16 %v444, %v444
        %v453 = vpack.c.b16 %v445, %v445
        %v454 = vpack.c.b16 %v446, %v446
        %v455 = vpack.c.b16 %v447, %v447
        %vm464 = vcmask 257024
        %465 = vst.msk [vmem:[%s276] sm:$0xf] %vm464, %v448
        %466 = vst.msk [vmem:[%s276 + $0x4] sm:$0xf] %vm464, %v449
        %467 = vst.msk [vmem:[%s276 + $0x8] sm:$0xf] %vm464, %v450
        %468 = vst.msk [vmem:[%s276 + $0xc] sm:$0xf] %vm464, %v451
        %469 = vst.msk [vmem:[%s276 + $0x10] sm:$0xf] %vm464, %v452
        %470 = vst.msk [vmem:[%s276 + $0x14] sm:$0xf] %vm464, %v453
        %471 = vst.msk [vmem:[%s276 + $0x18] sm:$0xf] %vm464, %v454
        %472 = vst.msk [vmem:[%s276 + $0x1c] sm:$0xf] %vm464, %v455
        %vm473 = vcmask 261120
        %v474 = vsel %vm473, %v402, 0.0
        %v475 = vsel %vm473, %v405, 0.0
        %v476 = vadd.f32 %v474, %v475
        %v477 = vsel %vm473, %v410, 0.0
        %v478 = vadd.f32 %v476, %v477
        %v479 = vsel %vm473, %v413, 0.0
        %v480 = vadd.f32 %v478, %v479
        %v481 = vsel %vm473, %v418, 0.0
        %v482 = vadd.f32 %v480, %v481
        %v483 = vsel %vm473, %v421, 0.0
        %v484 = vadd.f32 %v482, %v483
        %v485 = vsel %vm473, %v426, 0.0
        %v486 = vadd.f32 %v484, %v485
        %v487 = vsel %vm473, %v429, 0.0
        %v488 = vadd.f32 %v486, %v487
        %v489 = vrot.slane %v488, 4
        %v490 = vadd.f32 %v488, %v489
        %v491 = vrot.slane %v490, 2
        %v492 = vadd.f32 %v490, %v491
        %v493 = vrot.slane %v492, 1
        %v494 = vadd.f32 %v492, %v493
        %vm495 = vcmask 253952
        %496 = vst.msk [vmem:[%s283] sm:$0x1] %vm495, %v494
        %v497 = vmul.f32 %v402, %v402
        %v498 = vmul.f32 %v405, %v405
        %v499 = vmul.f32 %v410, %v410
        %v500 = vmul.f32 %v413, %v413
        %v501 = vmul.f32 %v418, %v418
        %v502 = vmul.f32 %v421, %v421
        %v503 = vmul.f32 %v426, %v426
        %v504 = vmul.f32 %v429, %v429
        %v505 = vsel %vm473, %v497, 0.0
        %v506 = vsel %vm473, %v498, 0.0
        %v507 = vadd.f32 %v505, %v506
        %v508 = vsel %vm473, %v499, 0.0
        %v509 = vadd.f32 %v507, %v508
        %v510 = vsel %vm473, %v500, 0.0
        %v511 = vadd.f32 %v509, %v510
        %v512 = vsel %vm473, %v501, 0.0
        %v513 = vadd.f32 %v511, %v512
        %v514 = vsel %vm473, %v502, 0.0
        %v515 = vadd.f32 %v513, %v514
        %v516 = vsel %vm473, %v503, 0.0
        %v517 = vadd.f32 %v515, %v516
        %v518 = vsel %vm473, %v504, 0.0
        %v519 = vadd.f32 %v517, %v518
        %v520 = vrot.slane %v519, 4
        %v521 = vadd.f32 %v519, %v520
        %v522 = vrot.slane %v521, 2
        %v523 = vadd.f32 %v521, %v522
        %v524 = vrot.slane %v523, 1
        %v525 = vadd.f32 %v523, %v524
        %526 = vst.msk [vmem:[%s289] sm:$0x1] %vm495, %v525
        %s527 = smul.u32 8, %s23
        %p528 = scmp.lt.s32.totalorder %s527, 63
        %s529 = scalar_select %p528, %s527, 63
        %p530 = scmp.lt.s32.totalorder %s24, 0
        %s531 = scalar_select %p530, %s24, 0
        %s532 = sadd.s32 %s531, %s529
        %s533 = smul.addr %s532, 4
        %s534 = scalar_lea.vmem %s2, %s533
        %p535 = scmp.lt.s32.totalorder %s23, 7
        %s536 = scalar_select %p535, %s23, 7
        %p537 = scmp.lt.s32.totalorder %s24, 0
        %s538 = scalar_select %p537, %s24, 0
        %s539 = sadd.s32 %s538, %s536
        %s540 = scalar_lea.vmem %s3, %s539
        %p541 = scmp.lt.s32.totalorder %s23, 7
        %s542 = scalar_select %p541, %s23, 7
        %p543 = scmp.lt.s32.totalorder %s24, 0
        %s544 = scalar_select %p543, %s24, 0
        %s545 = sadd.s32 %s544, %s542
        %s546 = scalar_lea.vmem %s4, %s545
        // Predicated region
        $region33: #{_lambda_.4} parent=27 // pred_check
          %p547 = pneg %p103
        $region34: #{_lambda_.4} parent=27 // pred_check_branch
          %549 = sbr.rel (%p547) target = $region36
        $region35: #{_lambda_.4} parent=27 // pred_region
          %s550 = smul.u32 8, %s23
        $region36: #{_lambda_.4} parent=27 // pred_fallthru
          _
        // Predicated region
        $region37: #{_lambda_.4} parent=27 // pred_check
          %p551 = pneg %p131
        $region38: #{_lambda_.4} parent=27 // pred_check_branch
          %553 = sbr.rel (%p551) target = $region40
        $region39: #{_lambda_.4} parent=27 // pred_region
          _
        $region40: #{_lambda_.4} parent=27 // pred_fallthru
          _
        // Predicated region
        $region41: #{_lambda_.4} parent=27 // pred_check
          %p554 = pneg %p159
        $region42: #{_lambda_.4} parent=27 // pred_check_branch
          %556 = sbr.rel (%p554) target = $region44
        $region43: #{_lambda_.4} parent=27 // pred_region
          _
        $region44: #{_lambda_.4} parent=27 // pred_fallthru
          _
      $region28: #{_lambda_.4} parent=5 // pred_fallthru
        _
      %p557 = scmp.le.s32.totalorder 2, %s14
      // Predicated region
      $region45: #{_lambda_.4} parent=5 // pred_check
        %p558 = pneg %p557
      $region46: #{_lambda_.4} parent=5 // pred_check_branch
        %560 = sbr.rel (%p558) target = $region48
      $region47: #{_lambda_.4} parent=5 // pred_region
        %s561 = ssub.s32 %s14, 2
        // Predicated region
        $region49: #{_lambda_.4} parent=47 // pred_check
          %p562 = pneg %p109
        $region50: #{_lambda_.4} parent=47 // pred_check_branch
          %564 = sbr.rel (%p562) target = $region52
        $region51: #{_lambda_.4} parent=47 // pred_region
          %s565 = smul.u32 8, %s25
          %p566 = scmp.lt.s32.totalorder %s565, 63
          %s567 = scalar_select %p566, %s565, 63
          %p568 = scmp.lt.s32.totalorder %s26, 0
          %s569 = scalar_select %p568, %s26, 0
          %s570 = sadd.s32 %s569, %s567
          %s571 = smul.addr %s570, 4
          %s572 = scalar_lea.vmem %s2, %s571
        $region52: #{_lambda_.4} parent=47 // pred_fallthru
          _
        // Predicated region
        $region53: #{_lambda_.4} parent=47 // pred_check
          %p573 = pneg %p137
        $region54: #{_lambda_.4} parent=47 // pred_check_branch
          %575 = sbr.rel (%p573) target = $region56
        $region55: #{_lambda_.4} parent=47 // pred_region
          %p576 = scmp.lt.s32.totalorder %s25, 7
          %s577 = scalar_select %p576, %s25, 7
          %p578 = scmp.lt.s32.totalorder %s26, 0
          %s579 = scalar_select %p578, %s26, 0
          %s580 = sadd.s32 %s579, %s577
          %s581 = scalar_lea.vmem %s3, %s580
        $region56: #{_lambda_.4} parent=47 // pred_fallthru
          _
        // Predicated region
        $region57: #{_lambda_.4} parent=47 // pred_check
          %p582 = pneg %p165
        $region58: #{_lambda_.4} parent=47 // pred_check_branch
          %584 = sbr.rel (%p582) target = $region60
        $region59: #{_lambda_.4} parent=47 // pred_region
          %p585 = scmp.lt.s32.totalorder %s25, 7
          %s586 = scalar_select %p585, %s25, 7
          %p587 = scmp.lt.s32.totalorder %s26, 0
          %s588 = scalar_select %p587, %s26, 0
          %s589 = sadd.s32 %s588, %s586
          %s590 = scalar_lea.vmem %s4, %s589
        $region60: #{_lambda_.4} parent=47 // pred_fallthru
          _
      $region48: #{_lambda_.4} parent=5 // pred_fallthru
        _
    $region6: #{_lambda_.4} parent=1 // loop_footer
      %s18 = sadd.s32 1, %s14
    $region7: #{_lambda_.4} parent=1 // loop_footer_branch
      %13 = sbr.rel target = $region3
    $region8: #{_lambda_.4} parent=1 // loop_exit
      _
    %591 = vsyncpa [#allocation3], 1
    %s592 = scalar_lea.sflag [#allocation3], 1
    %593 = vsyncpa %s592, 1

// kernel: _lambda_.7
$region0: #{_lambda_.7}
  #allocation0 [shape = 'u32[]', space=smem, size = 0x4, offset = 0x4, fixed_abs, tag = 'smem constant byte address 0x4 - core index']
  #allocation1 [shape = 'u32[144,128]{1,0:T(1,128)}', space=vmem, size = 0x12000, scoped, tag = 'internal scratch']
  %s0 = inlined_call_operand.vmem [shape: bf16[512,128], index: 0, kind: input, shape index: {}]
  %s1 = inlined_call_operand.vmem [shape: f32[512,128], index: 1, kind: input, shape index: {}]
  %s2 = inlined_call_operand.vmem [shape: f32[1,128], index: 2, kind: input, shape index: {}]
  %s3 = inlined_call_operand.vmem [shape: f32[1,128], index: 3, kind: input, shape index: {}]
  %s4 = inlined_call_operand.hbm [shape: f32[512,128], index: 4, kind: output, shape index: {}]
  %s5 = sld [smem:[#allocation0]]
  $region49: #{_lambda_.7} parent=0
    _
  %s7 = ssub.s32 1, %s5
  %s8 = scalar_select 0, %s7, %s5
  $region1: #{_lambda_.7} parent=0
    #allocation2 [shape = 'u8[65536]{0}', space=vmem, size = 0x10000, scoped, tag = 'output window, operand 0']
    #allocation3 [shape = 's32[2]{0}', space=sflag, size = 0x8, scoped, tag = 'scoped memory for _lambda_.7']
    %9 = vsyncpa [#allocation3], 0
    %s10 = scalar_lea.sflag [#allocation3], 1
    %11 = vsyncpa %s10, 0
    loop: start=0, step=1, limit=10
    $region2: #{_lambda_.7} parent=1 // loop_pre_header
      _
    $region3: #{_lambda_.7} parent=1 // loop_header
      %s13 = sphi 0, %s17
      %p14 = scmp.ge.s32.totalorder %s13, 10
      %s23 = sphi 0, %s25
      %s26 = sphi 0, %s23
      %s27 = sphi 0, %s26
      %s43 = sphi 0, %s27
      %s49 = sphi 0, %s51
      %s52 = sphi 0, %s49
      %s53 = sphi 0, %s52
      %s69 = sphi 0, %s53
      %s73 = sphi 0, %s73
      %s75 = sphi 0, %s73
      %s76 = sphi 0, %s75
      %s90 = sphi 0, %s76
      %s94 = sphi 0, %s94
      %s96 = sphi 0, %s94
      %s97 = sphi 0, %s96
      %s111 = sphi 0, %s97
      %s117 = sphi 0, %s119
      %s120 = sphi 0, %s117
      %s121 = sphi 0, %s120
      %s137 = sphi 0, %s121
    $region4: #{_lambda_.7} parent=1 // loop_header_branch
      %16 = sbr.rel (%p14) target = $region8
    $region5: #{_lambda_.7} parent=1 // loop_body
      %s18 = ssub.s32 %s13, 1
      %s19 = ssub.s32 %s13, 2
      %s20 = sadd.s32 %s13, 1
      %s21 = ssub.s32 %s13, %s20
      %p22 = scmp.eq.s32.totalorder %s21, 0
      %s24 = sadd.s32 %s23, 1
      %s25 = scalar_select %p22, %s23, %s24
      %p28 = pneg %p22
      %p29 = scmp.eq.s32.totalorder %s13, 7
      %p30 = por %p28, %p29
      %p31 = scmp.ne.s32.totalorder %s23, %s26
      %p32 = scmp.eq.s32.totalorder %s13, 0
      %p33 = por %p31, %p32
      %p34 = scmp.ne.s32.totalorder %s23, %s26
      %p35 = scmp.eq.s32.totalorder %s18, 7
      %p36 = por %p34, %p35
      %p37 = scmp.ne.s32.totalorder %s26, %s27
      %p38 = scmp.eq.s32.totalorder %s18, 0
      %p39 = por %p37, %p38
      %p40 = scmp.ne.s32.totalorder %s26, %s27
      %p41 = scmp.eq.s32.totalorder %s19, 7
      %p42 = por %p40, %p41
      %p44 = scmp.ne.s32.totalorder %s27, %s43
      %p45 = scmp.eq.s32.totalorder %s19, 0
      %p46 = por %p44, %p45
      %s47 = ssub.s32 %s13, %s20
      %p48 = scmp.eq.s32.totalorder %s47, 0
      %s50 = sadd.s32 %s49, 1
      %s51 = scalar_select %p48, %s49, %s50
      %p54 = pneg %p48
      %p55 = scmp.eq.s32.totalorder %s13, 7
      %p56 = por %p54, %p55
      %p57 = scmp.ne.s32.totalorder %s49, %s52
      %p58 = scmp.eq.s32.totalorder %s13, 0
      %p59 = por %p57, %p58
      %p60 = scmp.ne.s32.totalorder %s49, %s52
      %p61 = scmp.eq.s32.totalorder %s18, 7
      %p62 = por %p60, %p61
      %p63 = scmp.ne.s32.totalorder %s52, %s53
      %p64 = scmp.eq.s32.totalorder %s18, 0
      %p65 = por %p63, %p64
      %p66 = scmp.ne.s32.totalorder %s52, %s53
      %p67 = scmp.eq.s32.totalorder %s19, 7
      %p68 = por %p66, %p67
      %p70 = scmp.ne.s32.totalorder %s53, %s69
      %p71 = scmp.eq.s32.totalorder %s19, 0
      %p72 = por %p70, %p71
      %s74 = sadd.s32 %s73, 1
      %p77 = scmp.eq.s32.totalorder %s13, 7
      %p78 = scmp.ne.s32.totalorder %s73, %s75
      %p79 = scmp.eq.s32.totalorder %s13, 0
      %p80 = por %p78, %p79
      %p81 = scmp.ne.s32.totalorder %s73, %s75
      %p82 = scmp.eq.s32.totalorder %s18, 7
      %p83 = por %p81, %p82
      %p84 = scmp.ne.s32.totalorder %s75, %s76
      %p85 = scmp.eq.s32.totalorder %s18, 0
      %p86 = por %p84, %p85
      %p87 = scmp.ne.s32.totalorder %s75, %s76
      %p88 = scmp.eq.s32.totalorder %s19, 7
      %p89 = por %p87, %p88
      %p91 = scmp.ne.s32.totalorder %s76, %s90
      %p92 = scmp.eq.s32.totalorder %s19, 0
      %p93 = por %p91, %p92
      %s95 = sadd.s32 %s94, 1
      %p98 = scmp.eq.s32.totalorder %s13, 7
      %p99 = scmp.ne.s32.totalorder %s94, %s96
      %p100 = scmp.eq.s32.totalorder %s13, 0
      %p101 = por %p99, %p100
      %p102 = scmp.ne.s32.totalorder %s94, %s96
      %p103 = scmp.eq.s32.totalorder %s18, 7
      %p104 = por %p102, %p103
      %p105 = scmp.ne.s32.totalorder %s96, %s97
      %p106 = scmp.eq.s32.totalorder %s18, 0
      %p107 = por %p105, %p106
      %p108 = scmp.ne.s32.totalorder %s96, %s97
      %p109 = scmp.eq.s32.totalorder %s19, 7
      %p110 = por %p108, %p109
      %p112 = scmp.ne.s32.totalorder %s97, %s111
      %p113 = scmp.eq.s32.totalorder %s19, 0
      %p114 = por %p112, %p113
      %s115 = ssub.s32 %s13, %s20
      %p116 = scmp.eq.s32.totalorder %s115, 0
      %s118 = sadd.s32 %s117, 1
      %s119 = scalar_select %p116, %s117, %s118
      %p122 = pneg %p116
      %p123 = scmp.eq.s32.totalorder %s13, 7
      %p124 = por %p122, %p123
      %p125 = scmp.ne.s32.totalorder %s117, %s120
      %p126 = scmp.eq.s32.totalorder %s13, 0
      %p127 = por %p125, %p126
      %p128 = scmp.ne.s32.totalorder %s117, %s120
      %p129 = scmp.eq.s32.totalorder %s18, 7
      %p130 = por %p128, %p129
      %p131 = scmp.ne.s32.totalorder %s120, %s121
      %p132 = scmp.eq.s32.totalorder %s18, 0
      %p133 = por %p131, %p132
      %p134 = scmp.ne.s32.totalorder %s120, %s121
      %p135 = scmp.eq.s32.totalorder %s19, 7
      %p136 = por %p134, %p135
      %p138 = scmp.ne.s32.totalorder %s121, %s137
      %p139 = scmp.eq.s32.totalorder %s19, 0
      %p140 = por %p138, %p139
      %p141 = scmp.le.s32.totalorder 1, %s13
      %p142 = scmp.lt.s32.totalorder %s13, 9
      %p143 = pnand %p141, %p142
      %p144 = pneg %p143
      // Predicated region
      $region9: #{_lambda_.7} parent=5 // pred_check
        _
      $region10: #{_lambda_.7} parent=5 // pred_check_branch
        %146 = sbr.rel (%p143) target = $region12
      $region11: #{_lambda_.7} parent=5 // pred_region
        %s147 = ssub.s32 %s13, 1
        // Predicated region
        $region13: #{_lambda_.7} parent=11 // pred_check
          %p148 = pneg %p86
        $region14: #{_lambda_.7} parent=11 // pred_check_branch
          %150 = sbr.rel (%p148) target = $region16
        $region15: #{_lambda_.7} parent=11 // pred_region
          _
        $region16: #{_lambda_.7} parent=11 // pred_fallthru
          _
        // Predicated region
        $region17: #{_lambda_.7} parent=11 // pred_check
          %p151 = pneg %p107
        $region18: #{_lambda_.7} parent=11 // pred_check_branch
          %153 = sbr.rel (%p151) target = $region20
        $region19: #{_lambda_.7} parent=11 // pred_region
          _
        $region20: #{_lambda_.7} parent=11 // pred_fallthru
          _
      $region12: #{_lambda_.7} parent=5 // pred_fallthru
        _
      %p154 = scmp.lt.s32.totalorder %s13, 8
      // Predicated region
      $region21: #{_lambda_.7} parent=5 // pred_check
        %p155 = pneg %p154
      $region22: #{_lambda_.7} parent=5 // pred_check_branch
        %157 = sbr.rel (%p155) target = $region24
      $region23: #{_lambda_.7} parent=5 // pred_region
        // Predicated region
        $region25: #{_lambda_.7} parent=23 // pred_check
          %p158 = pneg %p33
        $region26: #{_lambda_.7} parent=23 // pred_check_branch
          %160 = sbr.rel (%p158) target = $region28
        $region27: #{_lambda_.7} parent=23 // pred_region
          %s161 = smul.u32 8, %s13
          %p162 = scmp.lt.s32.totalorder %s161, 63
          %s163 = scalar_select %p162, %s161, 63
          %s164 = smul.addr %s163, 4
          %s165 = scalar_lea.vmem %s0, %s164
          %s166 = smul.u32 8, %s13
        $region28: #{_lambda_.7} parent=23 // pred_fallthru
          _
        // Predicated region
        $region29: #{_lambda_.7} parent=23 // pred_check
          %p167 = pneg %p59
        $region30: #{_lambda_.7} parent=23 // pred_check_branch
          %169 = sbr.rel (%p167) target = $region32
        $region31: #{_lambda_.7} parent=23 // pred_region
          %s170 = smul.u32 8, %s13
          %p171 = scmp.lt.s32.totalorder %s170, 63
          %s172 = scalar_select %p171, %s170, 63
          %s173 = smul.addr %s172, 8
          %s174 = scalar_lea.vmem %s1, %s173
          %s175 = smul.u32 8, %s13
        $region32: #{_lambda_.7} parent=23 // pred_fallthru
          _
      $region24: #{_lambda_.7} parent=5 // pred_fallthru
        _
      %p176 = scmp.le.s32.totalorder 1, %s13
      %p177 = scmp.lt.s32.totalorder %s13, 9
      %p178 = pnand %p176, %p177
      %p179 = pneg %p178
      // Predicated region
      $region33: #{_lambda_.7} parent=5 // pred_check
        _
      $region34: #{_lambda_.7} parent=5 // pred_check_branch
        %181 = sbr.rel (%p178) target = $region36
      $region35: #{_lambda_.7} parent=5 // pred_region
        %s182 = ssub.s32 %s13, 1
        %s183 = smul.u32 8, %s18
        %p184 = scmp.lt.s32.totalorder %s183, 63
        %s185 = scalar_select %p184, %s183, 63
        %s186 = smul.addr %s185, 4
        %s187 = scalar_lea.vmem %s0, %s186
        %p188 = pneg %p39
        %p189 = pneg %p36
        %s190 = smul.u32 8, %s18
        %p191 = scmp.lt.s32.totalorder %s190, 63
        %s192 = scalar_select %p191, %s190, 63
        %s193 = smul.addr %s192, 8
        %s194 = scalar_lea.vmem %s1, %s193
        %p195 = pneg %p65
        %p196 = pneg %p62
        %p197 = pneg %p86
        %p198 = pneg %p83
        %p199 = pneg %p107
        %p200 = pneg %p104
        %p201 = pneg %p133
        %p202 = pneg %p130
        %s203 = sand.u32 %s120, 1
        %s204 = scalar_lea.sflag [#allocation3], %s203
        %s205 = sand.u32 %s120, 1
        %s206 = smul.addr %s205, 64
        %s207 = scalar_lea.vmem [#allocation2], %s206
        %s208 = smul.u32 8, %s18
        %p209 = scmp.lt.s32.totalorder %s208, 63
        %s210 = scalar_select %p209, %s208, 63
        %s211 = smul.addr %s210, 4
        %s212 = scalar_lea.vmem %s0, %s211
        %s213 = smul.u32 8, %s18
        %s214 = smul.u32 8, %s18
        %p215 = scmp.lt.s32.totalorder %s214, 63
        %s216 = scalar_select %p215, %s214, 63
        %s217 = smul.addr %s216, 8
        %s218 = scalar_lea.vmem %s1, %s217
        %s219 = smul.u32 8, %s18
        %s220 = smul.u32 8, %s18
        %v221 = vld [vmem:[%s212] sm:$0xf]
        %v222 = vld [vmem:[%s212 + $0x4] sm:$0xf]
        %v223 = vld [vmem:[%s212 + $0x8] sm:$0xf]
        %v224 = vld [vmem:[%s212 + $0xc] sm:$0xf]
        %v225 = vld [vmem:[%s212 + $0x10] sm:$0xf]
        %v226 = vld [vmem:[%s212 + $0x14] sm:$0xf]
        %v227 = vld [vmem:[%s212 + $0x18] sm:$0xf]
        %v228 = vld [vmem:[%s212 + $0x1c] sm:$0xf]
        %v229 = vunpack.c.l.bf16 %v221
        %v230 = vunpack.c.l.bf16 %v222
        %v231 = vunpack.c.l.bf16 %v223
        %v232 = vunpack.c.l.bf16 %v224
        %v233 = vunpack.c.l.bf16 %v225
        %v234 = vunpack.c.l.bf16 %v226
        %v235 = vunpack.c.l.bf16 %v227
        %v236 = vunpack.c.l.bf16 %v228
        %v237 = vld [vmem:[%s2] sm:$0x1]
        %v239 = vlaneseq
        %v240 = vshrl.u32 %v239, 7
        %v241 = vsub.s32 0, %v240
        %v242 = vrot.slane %v237, %v241
        %v244 = vmul.f32 %v229, %v242
        %v245 = vmul.f32 %v230, %v242
        %v246 = vmul.f32 %v231, %v242
        %v247 = vmul.f32 %v232, %v242
        %v248 = vmul.f32 %v233, %v242
        %v249 = vmul.f32 %v234, %v242
        %v250 = vmul.f32 %v235, %v242
        %v251 = vmul.f32 %v236, %v242
        %v252 = vld [vmem:[%s3] sm:$0x1]
        %v254 = vlaneseq
        %v255 = vshrl.u32 %v254, 7
        %v256 = vsub.s32 0, %v255
        %v257 = vrot.slane %v252, %v256
        %v259 = vadd.f32 %v244, %v257
        %v260 = vadd.f32 %v245, %v257
        %v261 = vadd.f32 %v246, %v257
        %v262 = vadd.f32 %v247, %v257
        %v263 = vadd.f32 %v248, %v257
        %v264 = vadd.f32 %v249, %v257
        %v265 = vadd.f32 %v250, %v257
        %v266 = vadd.f32 %v251, %v257
        %v267 = vld [vmem:[%s218] sm:$0xff]
        %v268 = vld [vmem:[%s218 + $0x8] sm:$0xff]
        %v269 = vld [vmem:[%s218 + $0x10] sm:$0xff]
        %v270 = vld [vmem:[%s218 + $0x18] sm:$0xff]
        %v271 = vld [vmem:[%s218 + $0x20] sm:$0xff]
        %v272 = vld [vmem:[%s218 + $0x28] sm:$0xff]
        %v273 = vld [vmem:[%s218 + $0x30] sm:$0xff]
        %v274 = vld [vmem:[%s218 + $0x38] sm:$0xff]
        %v275 = vadd.f32 %v259, %v267
        %v276 = vadd.f32 %v260, %v268
        %v277 = vadd.f32 %v261, %v269
        %v278 = vadd.f32 %v262, %v270
        %v279 = vadd.f32 %v263, %v271
        %v280 = vadd.f32 %v264, %v272
        %v281 = vadd.f32 %v265, %v273
        %v282 = vadd.f32 %v266, %v274
        %v283 = vmax.f32 %v275, 0.0
        %v284 = vmax.f32 %v276, 0.0
        %v285 = vmax.f32 %v277, 0.0
        %v286 = vmax.f32 %v278, 0.0
        %v287 = vmax.f32 %v279, 0.0
        %v288 = vmax.f32 %v280, 0.0
        %v289 = vmax.f32 %v281, 0.0
        %v290 = vmax.f32 %v282, 0.0
        %291 = vst [vmem:[%s207] sm:$0xff] %v283
        %292 = vst [vmem:[%s207 + $0x8] sm:$0xff] %v284
        %293 = vst [vmem:[%s207 + $0x10] sm:$0xff] %v285
        %294 = vst [vmem:[%s207 + $0x18] sm:$0xff] %v286
        %295 = vst [vmem:[%s207 + $0x20] sm:$0xff] %v287
        %296 = vst [vmem:[%s207 + $0x28] sm:$0xff] %v288
        %297 = vst [vmem:[%s207 + $0x30] sm:$0xff] %v289
        %298 = vst [vmem:[%s207 + $0x38] sm:$0xff] %v290
        %s299 = sand.u32 %s120, 1
        %s300 = scalar_lea.sflag [#allocation3], %s299
        %s301 = sand.u32 %s120, 1
        %s302 = smul.addr %s301, 64
        %s303 = scalar_lea.vmem [#allocation2], %s302
        // Predicated region
        $region37: #{_lambda_.7} parent=35 // pred_check
          %p304 = pneg %p130
        $region38: #{_lambda_.7} parent=35 // pred_check_branch
          %306 = sbr.rel (%p304) target = $region40
        $region39: #{_lambda_.7} parent=35 // pred_region
          %s307 = smul.u32 8, %s18
          %s309 = ssub.s32 1024, 1024
          %310 = vsyncadd %s300, %s309
          %s311 = smul.addr %s307, 128
          %s312 = scalar_lea.hbm %s4, %s311
          %s313 = sshll.u32 %s303, 4
          %s314 = int_to_ptr.vmem [resolvable:$true] %s313
          %319 = dma.vmem_to_hbm [thread:$0]  %s314, 1024, %s312, %s300, 128, 128, 8
        $region40: #{_lambda_.7} parent=35 // pred_fallthru
          _
      $region36: #{_lambda_.7} parent=5 // pred_fallthru
        _
      %p320 = scmp.le.s32.totalorder 2, %s13
      // Predicated region
      $region41: #{_lambda_.7} parent=5 // pred_check
        %p321 = pneg %p320
      $region42: #{_lambda_.7} parent=5 // pred_check_branch
        %323 = sbr.rel (%p321) target = $region44
      $region43: #{_lambda_.7} parent=5 // pred_region
        %s324 = ssub.s32 %s13, 2
        // Predicated region
        $region45: #{_lambda_.7} parent=43 // pred_check
          %p325 = pneg %p136
        $region46: #{_lambda_.7} parent=43 // pred_check_branch
          %327 = sbr.rel (%p325) target = $region48
        $region47: #{_lambda_.7} parent=43 // pred_region
          %s328 = sand.u32 %s121, 1
          %s329 = scalar_lea.sflag [#allocation3], %s328
          %s330 = sand.u32 %s121, 1
          %s331 = smul.addr %s330, 64
          %s332 = scalar_lea.vmem [#allocation2], %s331
          %333 = dma.done %s329, 1024
        $region48: #{_lambda_.7} parent=43 // pred_fallthru
          _
      $region44: #{_lambda_.7} parent=5 // pred_fallthru
        _
    $region6: #{_lambda_.7} parent=1 // loop_footer
      %s17 = sadd.s32 1, %s13
    $region7: #{_lambda_.7} parent=1 // loop_footer_branch
      %12 = sbr.rel target = $region3
    $region8: #{_lambda_.7} parent=1 // loop_exit
      _
    %334 = vsyncpa [#allocation3], 1
    %s335 = scalar_lea.sflag [#allocation3], 1
    %336 = vsyncpa %s335, 1

// kernel: _lambda_.6
$region0: #{_lambda_.6}
  #allocation0 [shape = 'u32[]', space=smem, size = 0x4, offset = 0x4, fixed_abs, tag = 'smem constant byte address 0x4 - core index']
  #allocation1 [shape = 'u32[144,128]{1,0:T(1,128)}', space=vmem, size = 0x12000, scoped, tag = 'internal scratch']
  %s0 = inlined_call_operand.vmem [shape: bf16[512,32], index: 0, kind: input, shape index: {}]
  %s1 = inlined_call_operand.vmem [shape: f32[1,32], index: 1, kind: input, shape index: {}]
  %s2 = inlined_call_operand.vmem [shape: f32[1,32], index: 2, kind: input, shape index: {}]
  %s3 = inlined_call_operand.vmem [shape: bf16[32,128], index: 3, kind: input, shape index: {}]
  %s4 = inlined_call_operand.vmem [shape: bf16[512,128], index: 4, kind: output, shape index: {0}]
  %s5 = inlined_call_operand.vmem [shape: f32[8,1,128], index: 5, kind: output, shape index: {1}]
  %s6 = inlined_call_operand.vmem [shape: f32[8,1,128], index: 6, kind: output, shape index: {2}]
  %7 = xla_tuple %s4, %s5, %s6
  %s8 = sld [smem:[#allocation0]]
  $region65: #{_lambda_.6} parent=0
    _
  %s10 = ssub.s32 1, %s8
  %s11 = scalar_select 0, %s10, %s8
  loop: start=0, step=1, limit=10
  $region2: #{_lambda_.6} parent=0 // loop_pre_header
    _
  $region3: #{_lambda_.6} parent=0 // loop_header
    %s13 = sphi 0, %s17
    %p14 = scmp.ge.s32.totalorder %s13, 10
    %s20 = sphi 0, %s32
    %s21 = sphi 0, %s28
    %s22 = sphi 0, %s20
    %s23 = sphi 0, %s21
    %s24 = sphi 0, %s22
    %s25 = sphi 0, %s23
    %s35 = sphi 0, %s37
    %s38 = sphi 0, %s35
    %s39 = sphi 0, %s38
    %s55 = sphi 0, %s39
    %s59 = sphi 0, %s59
    %s61 = sphi 0, %s59
    %s62 = sphi 0, %s61
    %s76 = sphi 0, %s62
    %s80 = sphi 0, %s80
    %s82 = sphi 0, %s80
    %s83 = sphi 0, %s82
    %s97 = sphi 0, %s83
    %s103 = sphi 0, %s105
    %s106 = sphi 0, %s103
    %s107 = sphi 0, %s106
    %s123 = sphi 0, %s107
    %s131 = sphi 0, %s133
    %s134 = sphi 0, %s131
    %s135 = sphi 0, %s134
    %s151 = sphi 0, %s135
    %s159 = sphi 0, %s161
    %s162 = sphi 0, %s159
    %s163 = sphi 0, %s162
    %s179 = sphi 0, %s163
    %s187 = sphi 0, %s189
    %s190 = sphi 0, %s187
    %s191 = sphi 0, %s190
    %s207 = sphi 0, %s191
  $region4: #{_lambda_.6} parent=0 // loop_header_branch
    %16 = sbr.rel (%p14) target = $region8
  $region5: #{_lambda_.6} parent=0 // loop_body
    %s18 = ssub.s32 %s13, 1
    %s19 = ssub.s32 %s13, 2
    %s26 = sadd.s32 1, %s21
    %p27 = scmp.ge.s32.totalorder %s26, 1
    %s28 = scalar_select %p27, 0, %s26
    %s29 = sadd.s32 1, %s20
    %s30 = scalar_select %p27, %s29, %s20
    %p31 = scmp.ge.s32.totalorder %s30, 8
    %s32 = scalar_select %p31, 0, %s30
    %s33 = ssub.s32 %s20, %s32
    %p34 = scmp.eq.s32.totalorder %s33, 0
    %s36 = sadd.s32 %s35, 1
    %s37 = scalar_select %p34, %s35, %s36
    %p40 = pneg %p34
    %p41 = scmp.eq.s32.totalorder %s13, 7
    %p42 = por %p40, %p41
    %p43 = scmp.ne.s32.totalorder %s35, %s38
    %p44 = scmp.eq.s32.totalorder %s13, 0
    %p45 = por %p43, %p44
    %p46 = scmp.ne.s32.totalorder %s35, %s38
    %p47 = scmp.eq.s32.totalorder %s18, 7
    %p48 = por %p46, %p47
    %p49 = scmp.ne.s32.totalorder %s38, %s39
    %p50 = scmp.eq.s32.totalorder %s18, 0
    %p51 = por %p49, %p50
    %p52 = scmp.ne.s32.totalorder %s38, %s39
    %p53 = scmp.eq.s32.totalorder %s19, 7
    %p54 = por %p52, %p53
    %p56 = scmp.ne.s32.totalorder %s39, %s55
    %p57 = scmp.eq.s32.totalorder %s19, 0
    %p58 = por %p56, %p57
    %s60 = sadd.s32 %s59, 1
    %p63 = scmp.eq.s32.totalorder %s13, 7
    %p64 = scmp.ne.s32.totalorder %s59, %s61
    %p65 = scmp.eq.s32.totalorder %s13, 0
    %p66 = por %p64, %p65
    %p67 = scmp.ne.s32.totalorder %s59, %s61
    %p68 = scmp.eq.s32.totalorder %s18, 7
    %p69 = por %p67, %p68
    %p70 = scmp.ne.s32.totalorder %s61, %s62
    %p71 = scmp.eq.s32.totalorder %s18, 0
    %p72 = por %p70, %p71
    %p73 = scmp.ne.s32.totalorder %s61, %s62
    %p74 = scmp.eq.s32.totalorder %s19, 7
    %p75 = por %p73, %p74
    %p77 = scmp.ne.s32.totalorder %s62, %s76
    %p78 = scmp.eq.s32.totalorder %s19, 0
    %p79 = por %p77, %p78
    %s81 = sadd.s32 %s80, 1
    %p84 = scmp.eq.s32.totalorder %s13, 7
    %p85 = scmp.ne.s32.totalorder %s80, %s82
    %p86 = scmp.eq.s32.totalorder %s13, 0
    %p87 = por %p85, %p86
    %p88 = scmp.ne.s32.totalorder %s80, %s82
    %p89 = scmp.eq.s32.totalorder %s18, 7
    %p90 = por %p88, %p89
    %p91 = scmp.ne.s32.totalorder %s82, %s83
    %p92 = scmp.eq.s32.totalorder %s18, 0
    %p93 = por %p91, %p92
    %p94 = scmp.ne.s32.totalorder %s82, %s83
    %p95 = scmp.eq.s32.totalorder %s19, 7
    %p96 = por %p94, %p95
    %p98 = scmp.ne.s32.totalorder %s83, %s97
    %p99 = scmp.eq.s32.totalorder %s19, 0
    %p100 = por %p98, %p99
    %s101 = ssub.s32 %s21, %s28
    %p102 = scmp.eq.s32.totalorder %s101, 0
    %s104 = sadd.s32 %s103, 1
    %s105 = scalar_select %p102, %s103, %s104
    %p108 = pneg %p102
    %p109 = scmp.eq.s32.totalorder %s13, 7
    %p110 = por %p108, %p109
    %p111 = scmp.ne.s32.totalorder %s103, %s106
    %p112 = scmp.eq.s32.totalorder %s13, 0
    %p113 = por %p111, %p112
    %p114 = scmp.ne.s32.totalorder %s103, %s106
    %p115 = scmp.eq.s32.totalorder %s18, 7
    %p116 = por %p114, %p115
    %p117 = scmp.ne.s32.totalorder %s106, %s107
    %p118 = scmp.eq.s32.totalorder %s18, 0
    %p119 = por %p117, %p118
    %p120 = scmp.ne.s32.totalorder %s106, %s107
    %p121 = scmp.eq.s32.totalorder %s19, 7
    %p122 = por %p120, %p121
    %p124 = scmp.ne.s32.totalorder %s107, %s123
    %p125 = scmp.eq.s32.totalorder %s19, 0
    %p126 = por %p124, %p125
    %s127 = ssub.s32 %s20, %s32
    %s128 = ssub.s32 %s21, %s28
    %s129 = sor.u32 %s127, %s128
    %p130 = scmp.eq.s32.totalorder %s129, 0
    %s132 = sadd.s32 %s131, 1
    %s133 = scalar_select %p130, %s131, %s132
    %p136 = pneg %p130
    %p137 = scmp.eq.s32.totalorder %s13, 7
    %p138 = por %p136, %p137
    %p139 = scmp.ne.s32.totalorder %s131, %s134
    %p140 = scmp.eq.s32.totalorder %s13, 0
    %p141 = por %p139, %p140
    %p142 = scmp.ne.s32.totalorder %s131, %s134
    %p143 = scmp.eq.s32.totalorder %s18, 7
    %p144 = por %p142, %p143
    %p145 = scmp.ne.s32.totalorder %s134, %s135
    %p146 = scmp.eq.s32.totalorder %s18, 0
    %p147 = por %p145, %p146
    %p148 = scmp.ne.s32.totalorder %s134, %s135
    %p149 = scmp.eq.s32.totalorder %s19, 7
    %p150 = por %p148, %p149
    %p152 = scmp.ne.s32.totalorder %s135, %s151
    %p153 = scmp.eq.s32.totalorder %s19, 0
    %p154 = por %p152, %p153
    %s155 = ssub.s32 %s20, %s32
    %s156 = ssub.s32 %s21, %s28
    %s157 = sor.u32 %s155, %s156
    %p158 = scmp.eq.s32.totalorder %s157, 0
    %s160 = sadd.s32 %s159, 1
    %s161 = scalar_select %p158, %s159, %s160
    %p164 = pneg %p158
    %p165 = scmp.eq.s32.totalorder %s13, 7
    %p166 = por %p164, %p165
    %p167 = scmp.ne.s32.totalorder %s159, %s162
    %p168 = scmp.eq.s32.totalorder %s13, 0
    %p169 = por %p167, %p168
    %p170 = scmp.ne.s32.totalorder %s159, %s162
    %p171 = scmp.eq.s32.totalorder %s18, 7
    %p172 = por %p170, %p171
    %p173 = scmp.ne.s32.totalorder %s162, %s163
    %p174 = scmp.eq.s32.totalorder %s18, 0
    %p175 = por %p173, %p174
    %p176 = scmp.ne.s32.totalorder %s162, %s163
    %p177 = scmp.eq.s32.totalorder %s19, 7
    %p178 = por %p176, %p177
    %p180 = scmp.ne.s32.totalorder %s163, %s179
    %p181 = scmp.eq.s32.totalorder %s19, 0
    %p182 = por %p180, %p181
    %s183 = ssub.s32 %s20, %s32
    %s184 = ssub.s32 %s21, %s28
    %s185 = sor.u32 %s183, %s184
    %p186 = scmp.eq.s32.totalorder %s185, 0
    %s188 = sadd.s32 %s187, 1
    %s189 = scalar_select %p186, %s187, %s188
    %p192 = pneg %p186
    %p193 = scmp.eq.s32.totalorder %s13, 7
    %p194 = por %p192, %p193
    %p195 = scmp.ne.s32.totalorder %s187, %s190
    %p196 = scmp.eq.s32.totalorder %s13, 0
    %p197 = por %p195, %p196
    %p198 = scmp.ne.s32.totalorder %s187, %s190
    %p199 = scmp.eq.s32.totalorder %s18, 7
    %p200 = por %p198, %p199
    %p201 = scmp.ne.s32.totalorder %s190, %s191
    %p202 = scmp.eq.s32.totalorder %s18, 0
    %p203 = por %p201, %p202
    %p204 = scmp.ne.s32.totalorder %s190, %s191
    %p205 = scmp.eq.s32.totalorder %s19, 7
    %p206 = por %p204, %p205
    %p208 = scmp.ne.s32.totalorder %s191, %s207
    %p209 = scmp.eq.s32.totalorder %s19, 0
    %p210 = por %p208, %p209
    %p211 = scmp.le.s32.totalorder 1, %s13
    %p212 = scmp.lt.s32.totalorder %s13, 9
    %p213 = pnand %p211, %p212
    %p214 = pneg %p213
    // Predicated region
    $region9: #{_lambda_.6} parent=5 // pred_check
      _
    $region10: #{_lambda_.6} parent=5 // pred_check_branch
      %216 = sbr.rel (%p213) target = $region12
    $region11: #{_lambda_.6} parent=5 // pred_region
      %s217 = ssub.s32 %s13, 1
      // Predicated region
      $region13: #{_lambda_.6} parent=11 // pred_check
        %p218 = pneg %p72
      $region14: #{_lambda_.6} parent=11 // pred_check_branch
        %220 = sbr.rel (%p218) target = $region16
      $region15: #{_lambda_.6} parent=11 // pred_region
        _
      $region16: #{_lambda_.6} parent=11 // pred_fallthru
        _
      // Predicated region
      $region17: #{_lambda_.6} parent=11 // pred_check
        %p221 = pneg %p93
      $region18: #{_lambda_.6} parent=11 // pred_check_branch
        %223 = sbr.rel (%p221) target = $region20
      $region19: #{_lambda_.6} parent=11 // pred_region
        _
      $region20: #{_lambda_.6} parent=11 // pred_fallthru
        _
      // Predicated region
      $region21: #{_lambda_.6} parent=11 // pred_check
        %p224 = pneg %p119
      $region22: #{_lambda_.6} parent=11 // pred_check_branch
        %226 = sbr.rel (%p224) target = $region24
      $region23: #{_lambda_.6} parent=11 // pred_region
        %p227 = scmp.lt.s32.totalorder %s23, 0
        %s228 = scalar_select %p227, %s23, 0
        %s229 = smul.addr %s228, 4
        %s230 = scalar_lea.vmem %s3, %s229
      $region24: #{_lambda_.6} parent=11 // pred_fallthru
        _
    $region12: #{_lambda_.6} parent=5 // pred_fallthru
      _
    %p231 = scmp.lt.s32.totalorder %s13, 8
    // Predicated region
    $region25: #{_lambda_.6} parent=5 // pred_check
      %p232 = pneg %p231
    $region26: #{_lambda_.6} parent=5 // pred_check_branch
      %234 = sbr.rel (%p232) target = $region28
    $region27: #{_lambda_.6} parent=5 // pred_region
      // Predicated region
      $region29: #{_lambda_.6} parent=27 // pred_check
        %p235 = pneg %p45
      $region30: #{_lambda_.6} parent=27 // pred_check_branch
        %237 = sbr.rel (%p235) target = $region32
      $region31: #{_lambda_.6} parent=27 // pred_region
        %s238 = smul.u32 8, %s20
        %p239 = scmp.lt.s32.totalorder %s238, 63
        %s240 = scalar_select %p239, %s238, 63
        %s241 = smul.addr %s240, 4
        %s242 = scalar_lea.vmem %s0, %s241
        %s243 = smul.u32 8, %s20
      $region32: #{_lambda_.6} parent=27 // pred_fallthru
        _
    $region28: #{_lambda_.6} parent=5 // pred_fallthru
      _
    %p244 = scmp.le.s32.totalorder 1, %s13
    %p245 = scmp.lt.s32.totalorder %s13, 9
    %p246 = pnand %p244, %p245
    %p247 = pneg %p246
    // Predicated region
    $region33: #{_lambda_.6} parent=5 // pred_check
      _
    $region34: #{_lambda_.6} parent=5 // pred_check_branch
      %249 = sbr.rel (%p246) target = $region36
    $region35: #{_lambda_.6} parent=5 // pred_region
      %s250 = ssub.s32 %s13, 1
      %s251 = smul.u32 8, %s22
      %p252 = scmp.lt.s32.totalorder %s251, 63
      %s253 = scalar_select %p252, %s251, 63
      %s254 = smul.addr %s253, 4
      %s255 = scalar_lea.vmem %s0, %s254
      %p256 = pneg %p51
      %p257 = pneg %p48
      %p258 = pneg %p72
      %p259 = pneg %p69
      %p260 = pneg %p93
      %p261 = pneg %p90
      %p262 = scmp.lt.s32.totalorder %s23, 0
      %s263 = scalar_select %p262, %s23, 0
      %s264 = smul.addr %s263, 4
      %s265 = scalar_lea.vmem %s3, %s264
      %p266 = pneg %p119
      %p267 = pneg %p116
      %p268 = pneg %p147
      %p269 = pneg %p144
      %s270 = smul.u32 8, %s22
      %p271 = scmp.lt.s32.totalorder %s270, 63
      %s272 = scalar_select %p271, %s270, 63
      %p273 = scmp.lt.s32.totalorder %s23, 0
      %s274 = scalar_select %p273, %s23, 0
      %s275 = sadd.s32 %s274, %s272
      %s276 = smul.addr %s275, 4
      %s277 = scalar_lea.vmem %s4, %s276
      %p278 = pneg %p175
      %p279 = pneg %p172
      %p280 = scmp.lt.s32.totalorder %s22, 7
      %s281 = scalar_select %p280, %s22, 7
      %p282 = scmp.lt.s32.totalorder %s23, 0
      %s283 = scalar_select %p282, %s23, 0
      %s284 = sadd.s32 %s283, %s281
      %s285 = scalar_lea.vmem %s5, %s284
      %p286 = pneg %p203
      %p287 = pneg %p200
      %p288 = scmp.lt.s32.totalorder %s22, 7
      %s289 = scalar_select %p288, %s22, 7
      %p290 = scmp.lt.s32.totalorder %s23, 0
      %s291 = scalar_select %p290, %s23, 0
      %s292 = sadd.s32 %s291, %s289
      %s293 = scalar_lea.vmem %s6, %s292
      %s294 = smul.u32 8, %s22
      %p295 = scmp.lt.s32.totalorder %s294, 63
      %s296 = scalar_select %p295, %s294, 63
      %s297 = smul.addr %s296, 4
      %s298 = scalar_lea.vmem %s0, %s297
      %s299 = smul.u32 8, %s22
      %p300 = scmp.lt.s32.totalorder %s23, 0
      %s301 = scalar_select %p300, %s23, 0
      %s302 = smul.addr %s301, 4
      %s303 = scalar_lea.vmem %s3, %s302
      %s304 = smul.u32 8, %s22
      %p305 = scmp.lt.s32.totalorder %s304, 63
      %s306 = scalar_select %p305, %s304, 63
      %p307 = scmp.lt.s32.totalorder %s23, 0
      %s308 = scalar_select %p307, %s23, 0
      %s309 = sadd.s32 %s308, %s306
      %s310 = smul.addr %s309, 4
      %s311 = scalar_lea.vmem %s4, %s310
      %s312 = smul.u32 8, %s22
      %p313 = scmp.lt.s32.totalorder %s22, 7
      %s314 = scalar_select %p313, %s22, 7
      %p315 = scmp.lt.s32.totalorder %s23, 0
      %s316 = scalar_select %p315, %s23, 0
      %s317 = sadd.s32 %s316, %s314
      %s318 = scalar_lea.vmem %s5, %s317
      %p319 = scmp.lt.s32.totalorder %s22, 7
      %s320 = scalar_select %p319, %s22, 7
      %p321 = scmp.lt.s32.totalorder %s23, 0
      %s322 = scalar_select %p321, %s23, 0
      %s323 = sadd.s32 %s322, %s320
      %s324 = scalar_lea.vmem %s6, %s323
      %v326 = vld [vmem:[%s298] sm:$0xf]
      %v327 = vld [vmem:[%s298 + $0x4] sm:$0xf]
      %v328 = vld [vmem:[%s298 + $0x8] sm:$0xf]
      %v329 = vld [vmem:[%s298 + $0xc] sm:$0xf]
      %v330 = vld [vmem:[%s298 + $0x10] sm:$0xf]
      %v331 = vld [vmem:[%s298 + $0x14] sm:$0xf]
      %v332 = vld [vmem:[%s298 + $0x18] sm:$0xf]
      %v333 = vld [vmem:[%s298 + $0x1c] sm:$0xf]
      %v334 = vunpack.c.l.bf16 %v326
      %v335 = vunpack.c.l.bf16 %v327
      %v336 = vunpack.c.l.bf16 %v328
      %v337 = vunpack.c.l.bf16 %v329
      %v338 = vunpack.c.l.bf16 %v330
      %v339 = vunpack.c.l.bf16 %v331
      %v340 = vunpack.c.l.bf16 %v332
      %v341 = vunpack.c.l.bf16 %v333
      %v342 = vld [vmem:[%s1] sm:$0x1]
      %v344 = vlaneseq
      %v345 = vshrl.u32 %v344, 7
      %v346 = vsub.s32 0, %v345
      %v347 = vrot.slane %v342, %v346
      %v349 = vmul.f32 %v334, %v347
      %v350 = vmul.f32 %v335, %v347
      %v351 = vmul.f32 %v336, %v347
      %v352 = vmul.f32 %v337, %v347
      %v353 = vmul.f32 %v338, %v347
      %v354 = vmul.f32 %v339, %v347
      %v355 = vmul.f32 %v340, %v347
      %v356 = vmul.f32 %v341, %v347
      %v357 = vld [vmem:[%s2] sm:$0x1]
      %v359 = vlaneseq
      %v360 = vshrl.u32 %v359, 7
      %v361 = vsub.s32 0, %v360
      %v362 = vrot.slane %v357, %v361
      %v364 = vadd.f32 %v349, %v362
      %v365 = vadd.f32 %v350, %v362
      %v366 = vadd.f32 %v351, %v362
      %v367 = vadd.f32 %v352, %v362
      %v368 = vadd.f32 %v353, %v362
      %v369 = vadd.f32 %v354, %v362
      %v370 = vadd.f32 %v355, %v362
      %v371 = vadd.f32 %v356, %v362
      %v372 = vmax.f32 %v364, 0.0
      %v373 = vmax.f32 %v365, 0.0
      %v374 = vmax.f32 %v366, 0.0
      %v375 = vmax.f32 %v367, 0.0
      %v376 = vmax.f32 %v368, 0.0
      %v377 = vmax.f32 %v369, 0.0
      %v378 = vmax.f32 %v370, 0.0
      %v379 = vmax.f32 %v371, 0.0
      %v380 = vpack.c.bf16 %v373, %v372
      %v381 = vpack.c.bf16 %v375, %v374
      %v382 = vpack.c.bf16 %v377, %v376
      %v383 = vpack.c.bf16 %v379, %v378
      %v384 = vld [vmem:[%s303] sm:$0xf]
      %v385 = vld [vmem:[%s303 + $0x4] sm:$0xf]
      %v386 = vld [vmem:[%s303 + $0x8] sm:$0xf]
      %v387 = vld [vmem:[%s303 + $0xc] sm:$0xf]
      %v392 = vunpack.c.l.b16 %v384
      %v393 = vunpack.c.l.b16 %v385
      %v394 = vunpack.c.l.b16 %v386
      %v395 = vunpack.c.l.b16 %v387
      %v396 = vpack.c.b16 %v393, %v392
      %v397 = vpack.c.b16 %v395, %v394
      %vm400 = vcmask 261120
      %v402 = vsel %vm400, %v380, 0
      %v405 = vsel %vm400, %v381, 0
      %v408 = vsel %vm400, %v382, 0
      %v411 = vsel %vm400, %v383, 0
      %413 = vmatprep.subr.bf16.mxu0 0
      %414 = vmatpush1.bf16.msra.mxu0 %v396
      %415 = vmatprep.subr.bf16.mxu0 0
      %416 = vmatpush1.bf16.msra.mxu0 %v397
      %417 = vmatprep.subr.bf16.mxu0 0
      %418 = vmatpush1.bf16.msra.mxu0 0
      %419 = vmatprep.subr.bf16.mxu0 0
      %420 = vmatpush1.bf16.msra.mxu0 0
      %421 = vmatprep.subr.bf16.mxu0 0
      %422 = vmatpush1.bf16.msra.mxu0 0
      %423 = vmatprep.subr.bf16.mxu0 0
      %424 = vmatpush1.bf16.msra.mxu0 0
      %425 = vmatprep.subr.bf16.mxu0 0
      %426 = vmatpush1.bf16.msra.mxu0 0
      %427 = vmatprep.subr.bf16.mxu0 0
      %428 = vmatpush1.bf16.msra.mxu0 0
      %429 = vmatprep.subr.bf16.mxu0 0
      %430 = vmatpush1.bf16.msra.mxu0 0
      %431 = vmatprep.subr.bf16.mxu0 0
      %432 = vmatpush1.bf16.msra.mxu0 0
      %433 = vmatprep.subr.bf16.mxu0 0
      %434 = vmatpush1.bf16.msra.mxu0 0
      %435 = vmatprep.subr.bf16.mxu0 0
      %436 = vmatpush1.bf16.msra.mxu0 0
      %437 = vmatprep.subr.bf16.mxu0 0
      %438 = vmatpush1.bf16.msra.mxu0 0
      %439 = vmatprep.subr.bf16.mxu0 0
      %440 = vmatpush1.bf16.msra.mxu0 0
      %441 = vmatprep.subr.bf16.mxu0 0
      %442 = vmatpush1.bf16.msra.mxu0 0
      %443 = vmatprep.subr.bf16.mxu0 0
      %444 = vmatpush1.bf16.msra.mxu0 0
      %445 = vmatprep.mubr.bf16.mxu0 0
      %446 = vmatmul.mubr.bf16.gmra.mrb[0].mxu0 %v402
      %v447 = vpop.f32.mrb[0].mxu0
      %v448 = vadd.f32 0.0, %v447
      %v449 = vpop.f32.mrb[0].mxu0
      %v450 = vpop.f32.mrb[0].mxu0
      %v451 = vadd.f32 0.0, %v450
      %v452 = vpop.f32.mrb[0].mxu0
      %453 = vmatprep.mubr.bf16.mxu0 0
      %454 = vmatmul.mubr.bf16.gmra.mrb[0].mxu0 %v405
      %v455 = vpop.f32.mrb[0].mxu0
      %v456 = vadd.f32 0.0, %v455
      %v457 = vpop.f32.mrb[0].mxu0
      %v458 = vpop.f32.mrb[0].mxu0
      %v459 = vadd.f32 0.0, %v458
      %v460 = vpop.f32.mrb[0].mxu0
      %461 = vmatprep.mubr.bf16.mxu0 0
      %462 = vmatmul.mubr.bf16.gmra.mrb[0].mxu0 %v408
      %v463 = vpop.f32.mrb[0].mxu0
      %v464 = vadd.f32 0.0, %v463
      %v465 = vpop.f32.mrb[0].mxu0
      %v466 = vpop.f32.mrb[0].mxu0
      %v467 = vadd.f32 0.0, %v466
      %v468 = vpop.f32.mrb[0].mxu0
      %469 = vmatprep.mubr.bf16.mxu0 0
      %470 = vmatmul.mubr.bf16.gmra.mrb[0].mxu0 %v411
      %v471 = vpop.f32.mrb[0].mxu0
      %v472 = vadd.f32 0.0, %v471
      %v473 = vpop.f32.mrb[0].mxu0
      %v474 = vpop.f32.mrb[0].mxu0
      %v475 = vadd.f32 0.0, %v474
      %v476 = vpop.f32.mrb[0].mxu0
      %477 = vdwg.mxu0
      %v478 = vpack.c.bf16 %v451, %v448
      %v479 = vpack.c.bf16 %v459, %v456
      %v480 = vpack.c.bf16 %v467, %v464
      %v481 = vpack.c.bf16 %v475, %v472
      %v486 = vunpack.c.l.b16 %v478
      %v487 = vunpack.c.h.b16 %v478
      %v488 = vunpack.c.l.b16 %v479
      %v489 = vunpack.c.h.b16 %v479
      %v490 = vunpack.c.l.b16 %v480
      %v491 = vunpack.c.h.b16 %v480
      %v492 = vunpack.c.l.b16 %v481
      %v493 = vunpack.c.h.b16 %v481
      %v494 = vpack.c.b16 %v486, %v486
      %v495 = vpack.c.b16 %v487, %v487
      %v496 = vpack.c.b16 %v488, %v488
      %v497 = vpack.c.b16 %v489, %v489
      %v498 = vpack.c.b16 %v490, %v490
      %v499 = vpack.c.b16 %v491, %v491
      %v500 = vpack.c.b16 %v492, %v492
      %v501 = vpack.c.b16 %v493, %v493
      %510 = vst [vmem:[%s311] sm:$0xf] %v494
      %511 = vst [vmem:[%s311 + $0x4] sm:$0xf] %v495
      %512 = vst [vmem:[%s311 + $0x8] sm:$0xf] %v496
      %513 = vst [vmem:[%s311 + $0xc] sm:$0xf] %v497
      %514 = vst [vmem:[%s311 + $0x10] sm:$0xf] %v498
      %515 = vst [vmem:[%s311 + $0x14] sm:$0xf] %v499
      %516 = vst [vmem:[%s311 + $0x18] sm:$0xf] %v500
      %517 = vst [vmem:[%s311 + $0x1c] sm:$0xf] %v501
      %v518 = vadd.f32 %v448, %v451
      %v519 = vadd.f32 %v518, %v456
      %v520 = vadd.f32 %v519, %v459
      %v521 = vadd.f32 %v520, %v464
      %v522 = vadd.f32 %v521, %v467
      %v523 = vadd.f32 %v522, %v472
      %v524 = vadd.f32 %v523, %v475
      %v525 = vrot.slane %v524, 4
      %v526 = vadd.f32 %v524, %v525
      %v527 = vrot.slane %v526, 2
      %v528 = vadd.f32 %v526, %v527
      %v529 = vrot.slane %v528, 1
      %v530 = vadd.f32 %v528, %v529
      %531 = vst [vmem:[%s318] sm:$0x1] %v530
      %v532 = vmul.f32 %v448, %v448
      %v533 = vmul.f32 %v451, %v451
      %v534 = vmul.f32 %v456, %v456
      %v535 = vmul.f32 %v459, %v459
      %v536 = vmul.f32 %v464, %v464
      %v537 = vmul.f32 %v467, %v467
      %v538 = vmul.f32 %v472, %v472
      %v539 = vmul.f32 %v475, %v475
      %v540 = vadd.f32 %v532, %v533
      %v541 = vadd.f32 %v540, %v534
      %v542 = vadd.f32 %v541, %v535
      %v543 = vadd.f32 %v542, %v536
      %v544 = vadd.f32 %v543, %v537
      %v545 = vadd.f32 %v544, %v538
      %v546 = vadd.f32 %v545, %v539
      %v547 = vrot.slane %v546, 4
      %v548 = vadd.f32 %v546, %v547
      %v549 = vrot.slane %v548, 2
      %v550 = vadd.f32 %v548, %v549
      %v551 = vrot.slane %v550, 1
      %v552 = vadd.f32 %v550, %v551
      %553 = vst [vmem:[%s324] sm:$0x1] %v552
      %s554 = smul.u32 8, %s22
      %p555 = scmp.lt.s32.totalorder %s554, 63
      %s556 = scalar_select %p555, %s554, 63
      %p557 = scmp.lt.s32.totalorder %s23, 0
      %s558 = scalar_select %p557, %s23, 0
      %s559 = sadd.s32 %s558, %s556
      %s560 = smul.addr %s559, 4
      %s561 = scalar_lea.vmem %s4, %s560
      %p562 = scmp.lt.s32.totalorder %s22, 7
      %s563 = scalar_select %p562, %s22, 7
      %p564 = scmp.lt.s32.totalorder %s23, 0
      %s565 = scalar_select %p564, %s23, 0
      %s566 = sadd.s32 %s565, %s563
      %s567 = scalar_lea.vmem %s5, %s566
      %p568 = scmp.lt.s32.totalorder %s22, 7
      %s569 = scalar_select %p568, %s22, 7
      %p570 = scmp.lt.s32.totalorder %s23, 0
      %s571 = scalar_select %p570, %s23, 0
      %s572 = sadd.s32 %s571, %s569
      %s573 = scalar_lea.vmem %s6, %s572
      // Predicated region
      $region37: #{_lambda_.6} parent=35 // pred_check
        %p574 = pneg %p144
      $region38: #{_lambda_.6} parent=35 // pred_check_branch
        %576 = sbr.rel (%p574) target = $region40
      $region39: #{_lambda_.6} parent=35 // pred_region
        %s577 = smul.u32 8, %s22
      $region40: #{_lambda_.6} parent=35 // pred_fallthru
        _
      // Predicated region
      $region41: #{_lambda_.6} parent=35 // pred_check
        %p578 = pneg %p172
      $region42: #{_lambda_.6} parent=35 // pred_check_branch
        %580 = sbr.rel (%p578) target = $region44
      $region43: #{_lambda_.6} parent=35 // pred_region
        _
      $region44: #{_lambda_.6} parent=35 // pred_fallthru
        _
      // Predicated region
      $region45: #{_lambda_.6} parent=35 // pred_check
        %p581 = pneg %p200
      $region46: #{_lambda_.6} parent=35 // pred_check_branch
        %583 = sbr.rel (%p581) target = $region48
      $region47: #{_lambda_.6} parent=35 // pred_region
        _
      $region48: #{_lambda_.6} parent=35 // pred_fallthru
        _
    $region36: #{_lambda_.6} parent=5 // pred_fallthru
      _
    %p584 = scmp.le.s32.totalorder 2, %s13
    // Predicated region
    $region49: #{_lambda_.6} parent=5 // pred_check
      %p585 = pneg %p584
    $region50: #{_lambda_.6} parent=5 // pred_check_branch
      %587 = sbr.rel (%p585) target = $region52
    $region51: #{_lambda_.6} parent=5 // pred_region
      %s588 = ssub.s32 %s13, 2
      // Predicated region
      $region53: #{_lambda_.6} parent=51 // pred_check
        %p589 = pneg %p150
      $region54: #{_lambda_.6} parent=51 // pred_check_branch
        %591 = sbr.rel (%p589) target = $region56
      $region55: #{_lambda_.6} parent=51 // pred_region
        %s592 = smul.u32 8, %s24
        %p593 = scmp.lt.s32.totalorder %s592, 63
        %s594 = scalar_select %p593, %s592, 63
        %p595 = scmp.lt.s32.totalorder %s25, 0
        %s596 = scalar_select %p595, %s25, 0
        %s597 = sadd.s32 %s596, %s594
        %s598 = smul.addr %s597, 4
        %s599 = scalar_lea.vmem %s4, %s598
      $region56: #{_lambda_.6} parent=51 // pred_fallthru
        _
      // Predicated region
      $region57: #{_lambda_.6} parent=51 // pred_check
        %p600 = pneg %p178
      $region58: #{_lambda_.6} parent=51 // pred_check_branch
        %602 = sbr.rel (%p600) target = $region60
      $region59: #{_lambda_.6} parent=51 // pred_region
        %p603 = scmp.lt.s32.totalorder %s24, 7
        %s604 = scalar_select %p603, %s24, 7
        %p605 = scmp.lt.s32.totalorder %s25, 0
        %s606 = scalar_select %p605, %s25, 0
        %s607 = sadd.s32 %s606, %s604
        %s608 = scalar_lea.vmem %s5, %s607
      $region60: #{_lambda_.6} parent=51 // pred_fallthru
        _
      // Predicated region
      $region61: #{_lambda_.6} parent=51 // pred_check
        %p609 = pneg %p206
      $region62: #{_lambda_.6} parent=51 // pred_check_branch
        %611 = sbr.rel (%p609) target = $region64
      $region63: #{_lambda_.6} parent=51 // pred_region
        %p612 = scmp.lt.s32.totalorder %s24, 7
        %s613 = scalar_select %p612, %s24, 7
        %p614 = scmp.lt.s32.totalorder %s25, 0
        %s615 = scalar_select %p614, %s25, 0
        %s616 = sadd.s32 %s615, %s613
        %s617 = scalar_lea.vmem %s6, %s616
      $region64: #{_lambda_.6} parent=51 // pred_fallthru
        _
    $region52: #{_lambda_.6} parent=5 // pred_fallthru
      _
  $region6: #{_lambda_.6} parent=0 // loop_footer
    %s17 = sadd.s32 1, %s13
  $region7: #{_lambda_.6} parent=0 // loop_footer_branch
    %12 = sbr.rel target = $region3
  $region8: #{_lambda_.6} parent=0 // loop_exit
    _

// kernel: _lambda_.5
$region0: #{_lambda_.5}
  #allocation0 [shape = 'u32[]', space=smem, size = 0x4, offset = 0x4, fixed_abs, tag = 'smem constant byte address 0x4 - core index']
  #allocation1 [shape = 'u32[144,128]{1,0:T(1,128)}', space=vmem, size = 0x12000, scoped, tag = 'internal scratch']
  %s0 = inlined_call_operand.vmem [shape: bf16[2,18,18,32], index: 0, kind: input, shape index: {}]
  %s1 = inlined_call_operand.vmem [shape: bf16[9,32,32], index: 1, kind: input, shape index: {}]
  %s2 = inlined_call_operand.vmem [shape: f32[1,32], index: 2, kind: input, shape index: {}]
  %s3 = inlined_call_operand.vmem [shape: f32[1,32], index: 3, kind: input, shape index: {}]
  %s4 = inlined_call_operand.vmem [shape: bf16[2,16,16,32], index: 4, kind: output, shape index: {0}]
  %s5 = inlined_call_operand.vmem [shape: f32[8,1,32], index: 5, kind: output, shape index: {1}]
  %s6 = inlined_call_operand.vmem [shape: f32[8,1,32], index: 6, kind: output, shape index: {2}]
  %7 = xla_tuple %s4, %s5, %s6
  %s8 = sld [smem:[#allocation0]]
  $region65: #{_lambda_.5} parent=0
    _
  %s10 = ssub.s32 1, %s8
  %s11 = scalar_select 0, %s10, %s8
  loop: start=0, step=1, limit=10
  $region2: #{_lambda_.5} parent=0 // loop_pre_header
    _
  $region3: #{_lambda_.5} parent=0 // loop_header
    %s13 = sphi 0, %s17
    %p14 = scmp.ge.s32.totalorder %s13, 10
    %s20 = sphi 0, %s32
    %s21 = sphi 0, %s28
    %s22 = sphi 0, %s20
    %s23 = sphi 0, %s21
    %s24 = sphi 0, %s22
    %s25 = sphi 0, %s23
    %s35 = sphi 0, %s37
    %s38 = sphi 0, %s35
    %s39 = sphi 0, %s38
    %s55 = sphi 0, %s39
    %s59 = sphi 0, %s59
    %s61 = sphi 0, %s59
    %s62 = sphi 0, %s61
    %s76 = sphi 0, %s62
    %s80 = sphi 0, %s80
    %s82 = sphi 0, %s80
    %s83 = sphi 0, %s82
    %s97 = sphi 0, %s83
    %s101 = sphi 0, %s101
    %s103 = sphi 0, %s101
    %s104 = sphi 0, %s103
    %s118 = sphi 0, %s104
    %s126 = sphi 0, %s128
    %s129 = sphi 0, %s126
    %s130 = sphi 0, %s129
    %s146 = sphi 0, %s130
    %s156 = sphi 0, %s158
    %s159 = sphi 0, %s156
    %s160 = sphi 0, %s159
    %s176 = sphi 0, %s160
    %s186 = sphi 0, %s188
    %s189 = sphi 0, %s186
    %s190 = sphi 0, %s189
    %s206 = sphi 0, %s190
  $region4: #{_lambda_.5} parent=0 // loop_header_branch
    %16 = sbr.rel (%p14) target = $region8
  $region5: #{_lambda_.5} parent=0 // loop_body
    %s18 = ssub.s32 %s13, 1
    %s19 = ssub.s32 %s13, 2
    %s26 = sadd.s32 1, %s21
    %p27 = scmp.ge.s32.totalorder %s26, 4
    %s28 = scalar_select %p27, 0, %s26
    %s29 = sadd.s32 1, %s20
    %s30 = scalar_select %p27, %s29, %s20
    %p31 = scmp.ge.s32.totalorder %s30, 2
    %s32 = scalar_select %p31, 0, %s30
    %s33 = ssub.s32 %s20, %s32
    %p34 = scmp.eq.s32.totalorder %s33, 0
    %s36 = sadd.s32 %s35, 1
    %s37 = scalar_select %p34, %s35, %s36
    %p40 = pneg %p34
    %p41 = scmp.eq.s32.totalorder %s13, 7
    %p42 = por %p40, %p41
    %p43 = scmp.ne.s32.totalorder %s35, %s38
    %p44 = scmp.eq.s32.totalorder %s13, 0
    %p45 = por %p43, %p44
    %p46 = scmp.ne.s32.totalorder %s35, %s38
    %p47 = scmp.eq.s32.totalorder %s18, 7
    %p48 = por %p46, %p47
    %p49 = scmp.ne.s32.totalorder %s38, %s39
    %p50 = scmp.eq.s32.totalorder %s18, 0
    %p51 = por %p49, %p50
    %p52 = scmp.ne.s32.totalorder %s38, %s39
    %p53 = scmp.eq.s32.totalorder %s19, 7
    %p54 = por %p52, %p53
    %p56 = scmp.ne.s32.totalorder %s39, %s55
    %p57 = scmp.eq.s32.totalorder %s19, 0
    %p58 = por %p56, %p57
    %s60 = sadd.s32 %s59, 1
    %p63 = scmp.eq.s32.totalorder %s13, 7
    %p64 = scmp.ne.s32.totalorder %s59, %s61
    %p65 = scmp.eq.s32.totalorder %s13, 0
    %p66 = por %p64, %p65
    %p67 = scmp.ne.s32.totalorder %s59, %s61
    %p68 = scmp.eq.s32.totalorder %s18, 7
    %p69 = por %p67, %p68
    %p70 = scmp.ne.s32.totalorder %s61, %s62
    %p71 = scmp.eq.s32.totalorder %s18, 0
    %p72 = por %p70, %p71
    %p73 = scmp.ne.s32.totalorder %s61, %s62
    %p74 = scmp.eq.s32.totalorder %s19, 7
    %p75 = por %p73, %p74
    %p77 = scmp.ne.s32.totalorder %s62, %s76
    %p78 = scmp.eq.s32.totalorder %s19, 0
    %p79 = por %p77, %p78
    %s81 = sadd.s32 %s80, 1
    %p84 = scmp.eq.s32.totalorder %s13, 7
    %p85 = scmp.ne.s32.totalorder %s80, %s82
    %p86 = scmp.eq.s32.totalorder %s13, 0
    %p87 = por %p85, %p86
    %p88 = scmp.ne.s32.totalorder %s80, %s82
    %p89 = scmp.eq.s32.totalorder %s18, 7
    %p90 = por %p88, %p89
    %p91 = scmp.ne.s32.totalorder %s82, %s83
    %p92 = scmp.eq.s32.totalorder %s18, 0
    %p93 = por %p91, %p92
    %p94 = scmp.ne.s32.totalorder %s82, %s83
    %p95 = scmp.eq.s32.totalorder %s19, 7
    %p96 = por %p94, %p95
    %p98 = scmp.ne.s32.totalorder %s83, %s97
    %p99 = scmp.eq.s32.totalorder %s19, 0
    %p100 = por %p98, %p99
    %s102 = sadd.s32 %s101, 1
    %p105 = scmp.eq.s32.totalorder %s13, 7
    %p106 = scmp.ne.s32.totalorder %s101, %s103
    %p107 = scmp.eq.s32.totalorder %s13, 0
    %p108 = por %p106, %p107
    %p109 = scmp.ne.s32.totalorder %s101, %s103
    %p110 = scmp.eq.s32.totalorder %s18, 7
    %p111 = por %p109, %p110
    %p112 = scmp.ne.s32.totalorder %s103, %s104
    %p113 = scmp.eq.s32.totalorder %s18, 0
    %p114 = por %p112, %p113
    %p115 = scmp.ne.s32.totalorder %s103, %s104
    %p116 = scmp.eq.s32.totalorder %s19, 7
    %p117 = por %p115, %p116
    %p119 = scmp.ne.s32.totalorder %s104, %s118
    %p120 = scmp.eq.s32.totalorder %s19, 0
    %p121 = por %p119, %p120
    %s122 = ssub.s32 %s20, %s32
    %s123 = ssub.s32 %s21, %s28
    %s124 = sor.u32 %s122, %s123
    %p125 = scmp.eq.s32.totalorder %s124, 0
    %s127 = sadd.s32 %s126, 1
    %s128 = scalar_select %p125, %s126, %s127
    %p131 = pneg %p125
    %p132 = scmp.eq.s32.totalorder %s13, 7
    %p133 = por %p131, %p132
    %p134 = scmp.ne.s32.totalorder %s126, %s129
    %p135 = scmp.eq.s32.totalorder %s13, 0
    %p136 = por %p134, %p135
    %p137 = scmp.ne.s32.totalorder %s126, %s129
    %p138 = scmp.eq.s32.totalorder %s18, 7
    %p139 = por %p137, %p138
    %p140 = scmp.ne.s32.totalorder %s129, %s130
    %p141 = scmp.eq.s32.totalorder %s18, 0
    %p142 = por %p140, %p141
    %p143 = scmp.ne.s32.totalorder %s129, %s130
    %p144 = scmp.eq.s32.totalorder %s19, 7
    %p145 = por %p143, %p144
    %p147 = scmp.ne.s32.totalorder %s130, %s146
    %p148 = scmp.eq.s32.totalorder %s19, 0
    %p149 = por %p147, %p148
    %s150 = smul.u32 %s20, 4
    %s151 = sadd.s32 %s150, %s21
    %s152 = smul.u32 %s32, 4
    %s153 = sadd.s32 %s152, %s28
    %s154 = ssub.s32 %s151, %s153
    %p155 = scmp.eq.s32.totalorder %s154, 0
    %s157 = sadd.s32 %s156, 1
    %s158 = scalar_select %p155, %s156, %s157
    %p161 = pneg %p155
    %p162 = scmp.eq.s32.totalorder %s13, 7
    %p163 = por %p161, %p162
    %p164 = scmp.ne.s32.totalorder %s156, %s159
    %p165 = scmp.eq.s32.totalorder %s13, 0
    %p166 = por %p164, %p165
    %p167 = scmp.ne.s32.totalorder %s156, %s159
    %p168 = scmp.eq.s32.totalorder %s18, 7
    %p169 = por %p167, %p168
    %p170 = scmp.ne.s32.totalorder %s159, %s160
    %p171 = scmp.eq.s32.totalorder %s18, 0
    %p172 = por %p170, %p171
    %p173 = scmp.ne.s32.totalorder %s159, %s160
    %p174 = scmp.eq.s32.totalorder %s19, 7
    %p175 = por %p173, %p174
    %p177 = scmp.ne.s32.totalorder %s160, %s176
    %p178 = scmp.eq.s32.totalorder %s19, 0
    %p179 = por %p177, %p178
    %s180 = smul.u32 %s20, 4
    %s181 = sadd.s32 %s180, %s21
    %s182 = smul.u32 %s32, 4
    %s183 = sadd.s32 %s182, %s28
    %s184 = ssub.s32 %s181, %s183
    %p185 = scmp.eq.s32.totalorder %s184, 0
    %s187 = sadd.s32 %s186, 1
    %s188 = scalar_select %p185, %s186, %s187
    %p191 = pneg %p185
    %p192 = scmp.eq.s32.totalorder %s13, 7
    %p193 = por %p191, %p192
    %p194 = scmp.ne.s32.totalorder %s186, %s189
    %p195 = scmp.eq.s32.totalorder %s13, 0
    %p196 = por %p194, %p195
    %p197 = scmp.ne.s32.totalorder %s186, %s189
    %p198 = scmp.eq.s32.totalorder %s18, 7
    %p199 = por %p197, %p198
    %p200 = scmp.ne.s32.totalorder %s189, %s190
    %p201 = scmp.eq.s32.totalorder %s18, 0
    %p202 = por %p200, %p201
    %p203 = scmp.ne.s32.totalorder %s189, %s190
    %p204 = scmp.eq.s32.totalorder %s19, 7
    %p205 = por %p203, %p204
    %p207 = scmp.ne.s32.totalorder %s190, %s206
    %p208 = scmp.eq.s32.totalorder %s19, 0
    %p209 = por %p207, %p208
    %p210 = scmp.le.s32.totalorder 1, %s13
    %p211 = scmp.lt.s32.totalorder %s13, 9
    %p212 = pnand %p210, %p211
    %p213 = pneg %p212
    // Predicated region
    $region9: #{_lambda_.5} parent=5 // pred_check
      _
    $region10: #{_lambda_.5} parent=5 // pred_check_branch
      %215 = sbr.rel (%p212) target = $region12
    $region11: #{_lambda_.5} parent=5 // pred_region
      %s216 = ssub.s32 %s13, 1
      // Predicated region
      $region13: #{_lambda_.5} parent=11 // pred_check
        %p217 = pneg %p72
      $region14: #{_lambda_.5} parent=11 // pred_check_branch
        %219 = sbr.rel (%p217) target = $region16
      $region15: #{_lambda_.5} parent=11 // pred_region
        _
      $region16: #{_lambda_.5} parent=11 // pred_fallthru
        _
      // Predicated region
      $region17: #{_lambda_.5} parent=11 // pred_check
        %p220 = pneg %p93
      $region18: #{_lambda_.5} parent=11 // pred_check_branch
        %222 = sbr.rel (%p220) target = $region20
      $region19: #{_lambda_.5} parent=11 // pred_region
        _
      $region20: #{_lambda_.5} parent=11 // pred_fallthru
        _
      // Predicated region
      $region21: #{_lambda_.5} parent=11 // pred_check
        %p223 = pneg %p114
      $region22: #{_lambda_.5} parent=11 // pred_check_branch
        %225 = sbr.rel (%p223) target = $region24
      $region23: #{_lambda_.5} parent=11 // pred_region
        _
      $region24: #{_lambda_.5} parent=11 // pred_fallthru
        _
    $region12: #{_lambda_.5} parent=5 // pred_fallthru
      _
    %p226 = scmp.lt.s32.totalorder %s13, 8
    // Predicated region
    $region25: #{_lambda_.5} parent=5 // pred_check
      %p227 = pneg %p226
    $region26: #{_lambda_.5} parent=5 // pred_check_branch
      %229 = sbr.rel (%p227) target = $region28
    $region27: #{_lambda_.5} parent=5 // pred_region
      // Predicated region
      $region29: #{_lambda_.5} parent=27 // pred_check
        %p230 = pneg %p45
      $region30: #{_lambda_.5} parent=27 // pred_check_branch
        %232 = sbr.rel (%p230) target = $region32
      $region31: #{_lambda_.5} parent=27 // pred_region
        %p233 = scmp.lt.s32.totalorder %s20, 1
        %s234 = scalar_select %p233, %s20, 1
        %s235 = smul.addr %s234, 54
        %s236 = smul.addr %s235, 4
        %s237 = scalar_lea.vmem %s0, %s236
      $region32: #{_lambda_.5} parent=27 // pred_fallthru
        _
    $region28: #{_lambda_.5} parent=5 // pred_fallthru
      _
    %p238 = scmp.le.s32.totalorder 1, %s13
    %p239 = scmp.lt.s32.totalorder %s13, 9
    %p240 = pnand %p238, %p239
    %p241 = pneg %p240
    // Predicated region
    $region33: #{_lambda_.5} parent=5 // pred_check
      _
    $region34: #{_lambda_.5} parent=5 // pred_check_branch
      %243 = sbr.rel (%p240) target = $region36
    $region35: #{_lambda_.5} parent=5 // pred_region
      %s244 = ssub.s32 %s13, 1
      %p245 = scmp.lt.s32.totalorder %s22, 1
      %s246 = scalar_select %p245, %s22, 1
      %s247 = smul.addr %s246, 54
      %s248 = smul.addr %s247, 4
      %s249 = scalar_lea.vmem %s0, %s248
      %p250 = pneg %p51
      %p251 = pneg %p48
      %p252 = pneg %p72
      %p253 = pneg %p69
      %p254 = pneg %p93
      %p255 = pneg %p90
      %p256 = pneg %p114
      %p257 = pneg %p111
      %p258 = pneg %p142
      %p259 = pneg %p139
      %s260 = smul.u32 4, %s23
      %p261 = scmp.lt.s32.totalorder %s22, 1
      %s262 = scalar_select %p261, %s22, 1
      %p263 = scmp.lt.s32.totalorder %s260, 15
      %s264 = scalar_select %p263, %s260, 15
      %s265 = smul.addr %s264, 2
      %s266 = smul.addr %s262, 32
      %s267 = sadd.s32 %s265, %s266
      %s268 = smul.addr %s267, 4
      %s269 = scalar_lea.vmem %s4, %s268
      %p270 = pneg %p172
      %p271 = pneg %p169
      %s272 = smul.u32 %s22, 4
      %s273 = sadd.s32 %s272, %s23
      %p274 = scmp.lt.s32.totalorder %s273, 7
      %s275 = scalar_select %p274, %s273, 7
      %s276 = scalar_lea.vmem %s5, %s275
      %p277 = pneg %p202
      %p278 = pneg %p199
      %s279 = smul.u32 %s22, 4
      %s280 = sadd.s32 %s279, %s23
      %p281 = scmp.lt.s32.totalorder %s280, 7
      %s282 = scalar_select %p281, %s280, 7
      %s283 = scalar_lea.vmem %s6, %s282
      %p284 = scmp.lt.s32.totalorder %s22, 1
      %s285 = scalar_select %p284, %s22, 1
      %s286 = smul.addr %s285, 54
      %s287 = smul.addr %s286, 4
      %s288 = scalar_lea.vmem %s0, %s287
      %s289 = smul.u32 4, %s23
      %p290 = scmp.lt.s32.totalorder %s22, 1
      %s291 = scalar_select %p290, %s22, 1
      %p292 = scmp.lt.s32.totalorder %s289, 15
      %s293 = scalar_select %p292, %s289, 15
      %s294 = smul.addr %s293, 2
      %s295 = smul.addr %s291, 32
      %s296 = sadd.s32 %s294, %s295
      %s297 = smul.addr %s296, 4
      %s298 = scalar_lea.vmem %s4, %s297
      %s299 = smul.u32 4, %s23
      %s300 = smul.u32 %s22, 4
      %s301 = sadd.s32 %s300, %s23
      %p302 = scmp.lt.s32.totalorder %s301, 7
      %s303 = scalar_select %p302, %s301, 7
      %s304 = scalar_lea.vmem %s5, %s303
      %s305 = smul.u32 %s22, 4
      %s306 = sadd.s32 %s305, %s23
      %s307 = smul.u32 %s22, 4
      %s308 = sadd.s32 %s307, %s23
      %p309 = scmp.lt.s32.totalorder %s308, 7
      %s310 = scalar_select %p309, %s308, 7
      %s311 = scalar_lea.vmem %s6, %s310
      %s312 = smul.u32 %s22, 4
      %s313 = sadd.s32 %s312, %s23
      %s315 = smul.u32 %s23, 4
      %s316 = smul.u32 %s315, 3
      %s317 = smul.addr %s316, 4
      %s318 = scalar_lea.vmem %s288, %s317
      %v319 = vld [vmem:[%s318] sm:$0xf]
      %v320 = vld [vmem:[%s318 + $0x4] sm:$0xf]
      %v321 = vld [vmem:[%s318 + $0x8] sm:$0x1]
      %v322 = vld [vmem:[%s318 + $0xc] sm:$0xf]
      %v323 = vld [vmem:[%s318 + $0x10] sm:$0xf]
      %v324 = vld [vmem:[%s318 + $0x14] sm:$0x1]
      %v325 = vld [vmem:[%s318 + $0x18] sm:$0xf]
      %v326 = vld [vmem:[%s318 + $0x1c] sm:$0xf]
      %v327 = vld [vmem:[%s318 + $0x20] sm:$0x1]
      %v328 = vld [vmem:[%s318 + $0x24] sm:$0xf]
      %v329 = vld [vmem:[%s318 + $0x28] sm:$0xf]
      %v330 = vld [vmem:[%s318 + $0x2c] sm:$0x1]
      %v331 = vld [vmem:[%s318 + $0x30] sm:$0xf]
      %v332 = vld [vmem:[%s318 + $0x34] sm:$0xf]
      %v333 = vld [vmem:[%s318 + $0x38] sm:$0x1]
      %v334 = vld [vmem:[%s318 + $0x3c] sm:$0xf]
      %v335 = vld [vmem:[%s318 + $0x40] sm:$0xf]
      %v336 = vld [vmem:[%s318 + $0x44] sm:$0x1]
      %v337 = vunpack.c.l.bf16 %v319
      %v338 = vunpack.c.l.bf16 %v320
      %v339 = vunpack.c.l.bf16 %v321
      %v340 = vunpack.c.l.bf16 %v322
      %v341 = vunpack.c.l.bf16 %v323
      %v342 = vunpack.c.l.bf16 %v324
      %v343 = vunpack.c.l.bf16 %v325
      %v344 = vunpack.c.l.bf16 %v326
      %v345 = vunpack.c.l.bf16 %v327
      %v346 = vunpack.c.l.bf16 %v328
      %v347 = vunpack.c.l.bf16 %v329
      %v348 = vunpack.c.l.bf16 %v330
      %v349 = vunpack.c.l.bf16 %v331
      %v350 = vunpack.c.l.bf16 %v332
      %v351 = vunpack.c.l.bf16 %v333
      %v352 = vunpack.c.l.bf16 %v334
      %v353 = vunpack.c.l.bf16 %v335
      %v354 = vunpack.c.l.bf16 %v336
      %v355 = vld [vmem:[%s2] sm:$0x1]
      %v357 = vlaneseq
      %v358 = vshrl.u32 %v357, 7
      %v359 = vsub.s32 0, %v358
      %v360 = vrot.slane %v355, %v359
      %v362 = vmul.f32 %v337, %v360
      %v363 = vmul.f32 %v338, %v360
      %v364 = vmul.f32 %v339, %v360
      %v365 = vmul.f32 %v340, %v360
      %v366 = vmul.f32 %v341, %v360
      %v367 = vmul.f32 %v342, %v360
      %v368 = vmul.f32 %v343, %v360
      %v369 = vmul.f32 %v344, %v360
      %v370 = vmul.f32 %v345, %v360
      %v371 = vmul.f32 %v346, %v360
      %v372 = vmul.f32 %v347, %v360
      %v373 = vmul.f32 %v348, %v360
      %v374 = vmul.f32 %v349, %v360
      %v375 = vmul.f32 %v350, %v360
      %v376 = vmul.f32 %v351, %v360
      %v377 = vmul.f32 %v352, %v360
      %v378 = vmul.f32 %v353, %v360
      %v379 = vmul.f32 %v354, %v360
      %v380 = vld [vmem:[%s3] sm:$0x1]
      %v382 = vlaneseq
      %v383 = vshrl.u32 %v382, 7
      %v384 = vsub.s32 0, %v383
      %v385 = vrot.slane %v380, %v384
      %v387 = vadd.f32 %v362, %v385
      %v388 = vadd.f32 %v363, %v385
      %v389 = vadd.f32 %v364, %v385
      %v390 = vadd.f32 %v365, %v385
      %v391 = vadd.f32 %v366, %v385
      %v392 = vadd.f32 %v367, %v385
      %v393 = vadd.f32 %v368, %v385
      %v394 = vadd.f32 %v369, %v385
      %v395 = vadd.f32 %v370, %v385
      %v396 = vadd.f32 %v371, %v385
      %v397 = vadd.f32 %v372, %v385
      %v398 = vadd.f32 %v373, %v385
      %v399 = vadd.f32 %v374, %v385
      %v400 = vadd.f32 %v375, %v385
      %v401 = vadd.f32 %v376, %v385
      %v402 = vadd.f32 %v377, %v385
      %v403 = vadd.f32 %v378, %v385
      %v404 = vadd.f32 %v379, %v385
      %v405 = vmax.f32 %v387, 0.0
      %v406 = vmax.f32 %v388, 0.0
      %v407 = vmax.f32 %v389, 0.0
      %v408 = vmax.f32 %v390, 0.0
      %v409 = vmax.f32 %v391, 0.0
      %v410 = vmax.f32 %v392, 0.0
      %v411 = vmax.f32 %v393, 0.0
      %v412 = vmax.f32 %v394, 0.0
      %v413 = vmax.f32 %v395, 0.0
      %v414 = vmax.f32 %v396, 0.0
      %v415 = vmax.f32 %v397, 0.0
      %v416 = vmax.f32 %v398, 0.0
      %v417 = vmax.f32 %v399, 0.0
      %v418 = vmax.f32 %v400, 0.0
      %v419 = vmax.f32 %v401, 0.0
      %v420 = vmax.f32 %v402, 0.0
      %v421 = vmax.f32 %v403, 0.0
      %v422 = vmax.f32 %v404, 0.0
      %v423 = vlaneseq
      %v424 = vshrl.u32 %v423, 7
      %v425 = vadd.s32 %v424, 8
      %v426 = vadd.s32 %v424, 16
      %v427 = vstv %s315
      %v428 = vadd.s32 %v427, 1
      %v429 = vadd.s32 %v427, 2
      %v430 = vadd.s32 %v427, 3
      %v431 = vadd.s32 %v427, 4
      %v432 = vadd.s32 %v427, 5
      %vm433 = vcmp.ge.s32.totalorder %v427, 1
      %vm434 = vcmp.ge.s32.totalorder %v428, 1
      %vm435 = vcmp.ge.s32.totalorder %v429, 1
      %vm436 = vcmp.ge.s32.totalorder %v430, 1
      %vm437 = vcmp.ge.s32.totalorder %v431, 1
      %vm438 = vcmp.ge.s32.totalorder %v432, 1
      %vm439 = vcmp.le.s32.totalorder %v427, 16
      %vm440 = vcmp.le.s32.totalorder %v428, 16
      %vm441 = vcmp.le.s32.totalorder %v429, 16
      %vm442 = vcmp.le.s32.totalorder %v430, 16
      %vm443 = vcmp.le.s32.totalorder %v431, 16
      %vm444 = vcmp.le.s32.totalorder %v432, 16
      %vm445 = vmand %vm433, %vm439
      %vm446 = vmand %vm434, %vm440
      %vm447 = vmand %vm435, %vm441
      %vm448 = vmand %vm436, %vm442
      %vm449 = vmand %vm437, %vm443
      %vm450 = vmand %vm438, %vm444
      %vm451 = vcmp.ge.s32.totalorder %v424, 1
      %vm452 = vcmp.ge.s32.totalorder %v425, 1
      %vm453 = vcmp.ge.s32.totalorder %v426, 1
      %vm454 = vmand %vm445, %vm451
      %vm455 = vmand %vm445, %vm452
      %vm456 = vmand %vm445, %vm453
      %vm457 = vmand %vm446, %vm451
      %vm458 = vmand %vm446, %vm452
      %vm459 = vmand %vm446, %vm453
      %vm460 = vmand %vm447, %vm451
      %vm461 = vmand %vm447, %vm452
      %vm462 = vmand %vm447, %vm453
      %vm463 = vmand %vm448, %vm451
      %vm464 = vmand %vm448, %vm452
      %vm465 = vmand %vm448, %vm453
      %vm466 = vmand %vm449, %vm451
      %vm467 = vmand %vm449, %vm452
      %vm468 = vmand %vm449, %vm453
      %vm469 = vmand %vm450, %vm451
      %vm470 = vmand %vm450, %vm452
      %vm471 = vmand %vm450, %vm453
      %vm472 = vcmp.le.s32.totalorder %v424, 16
      %vm473 = vcmp.le.s32.totalorder %v425, 16
      %vm474 = vcmp.le.s32.totalorder %v426, 16
      %vm475 = vmand %vm454, %vm472
      %vm476 = vmand %vm455, %vm473
      %vm477 = vmand %vm456, %vm474
      %vm478 = vmand %vm457, %vm472
      %vm479 = vmand %vm458, %vm473
      %vm480 = vmand %vm459, %vm474
      %vm481 = vmand %vm460, %vm472
      %vm482 = vmand %vm461, %vm473
      %vm483 = vmand %vm462, %vm474
      %vm484 = vmand %vm463, %vm472
      %vm485 = vmand %vm464, %vm473
      %vm486 = vmand %vm465, %vm474
      %vm487 = vmand %vm466, %vm472
      %vm488 = vmand %vm467, %vm473
      %vm489 = vmand %vm468, %vm474
      %vm490 = vmand %vm469, %vm472
      %vm491 = vmand %vm470, %vm473
      %vm492 = vmand %vm471, %vm474
      %v493 = vsel %vm475, %v405, 0.0
      %v494 = vsel %vm476, %v406, 0.0
      %v495 = vsel %vm477, %v407, 0.0
      %v496 = vsel %vm478, %v408, 0.0
      %v497 = vsel %vm479, %v409, 0.0
      %v498 = vsel %vm480, %v410, 0.0
      %v499 = vsel %vm481, %v411, 0.0
      %v500 = vsel %vm482, %v412, 0.0
      %v501 = vsel %vm483, %v413, 0.0
      %v502 = vsel %vm484, %v414, 0.0
      %v503 = vsel %vm485, %v415, 0.0
      %v504 = vsel %vm486, %v416, 0.0
      %v505 = vsel %vm487, %v417, 0.0
      %v506 = vsel %vm488, %v418, 0.0
      %v507 = vsel %vm489, %v419, 0.0
      %v508 = vsel %vm490, %v420, 0.0
      %v509 = vsel %vm491, %v421, 0.0
      %v510 = vsel %vm492, %v422, 0.0
      %v511 = vpack.c.bf16 %v494, %v493
      %v512 = vpack.c.bf16 %v495, %v495
      %v513 = vpack.c.bf16 %v497, %v496
      %v514 = vpack.c.bf16 %v498, %v498
      %v515 = vpack.c.bf16 %v500, %v499
      %v516 = vpack.c.bf16 %v501, %v501
      %v517 = vpack.c.bf16 %v503, %v502
      %v518 = vpack.c.bf16 %v504, %v504
      %v519 = vpack.c.bf16 %v506, %v505
      %v520 = vpack.c.bf16 %v507, %v507
      %v521 = vpack.c.bf16 %v509, %v508
      %v522 = vpack.c.bf16 %v510, %v510
      %v523 = vld [vmem:[%s1] sm:$0xf]
      %v524 = vld [vmem:[%s1 + $0x4] sm:$0xf]
      %v525 = vld [vmem:[%s1 + $0x8] sm:$0xf]
      %v526 = vld [vmem:[%s1 + $0xc] sm:$0xf]
      %vm527 = vsmask.f32 7424
      %v529 = vshrl.u32 %v511, 16
      %v531 = vshll.u32 %v511, 16
      %v533 = vrot.slane %v531, 1
      %v534 = vor.u32 %v529, %v533
      %v536 = vshll.u32 %v512, 16
      %v538 = vrot.slane %v536, 1
      %v539 = vsel %vm527, %v534, %v538
      %v541 = vshrl.u32 %v513, 16
      %v543 = vshll.u32 %v513, 16
      %v545 = vrot.slane %v543, 1
      %v546 = vor.u32 %v541, %v545
      %v548 = vshll.u32 %v514, 16
      %v550 = vrot.slane %v548, 1
      %v551 = vsel %vm527, %v546, %v550
      %v553 = vshrl.u32 %v515, 16
      %v555 = vshll.u32 %v515, 16
      %v557 = vrot.slane %v555, 1
      %v558 = vor.u32 %v553, %v557
      %v560 = vshll.u32 %v516, 16
      %v562 = vrot.slane %v560, 1
      %v563 = vsel %vm527, %v558, %v562
      %v565 = vshrl.u32 %v517, 16
      %v567 = vshll.u32 %v517, 16
      %v569 = vrot.slane %v567, 1
      %v570 = vor.u32 %v565, %v569
      %v572 = vshll.u32 %v518, 16
      %v574 = vrot.slane %v572, 1
      %v575 = vsel %vm527, %v570, %v574
      %s576 = scalar_lea.vmem %s1, 16
      %v577 = vld [vmem:[%s576] sm:$0xf]
      %v578 = vld [vmem:[%s576 + $0x4] sm:$0xf]
      %v579 = vld [vmem:[%s576 + $0x8] sm:$0xf]
      %v580 = vld [vmem:[%s576 + $0xc] sm:$0xf]
      %v585 = vunpack.c.l.b16 %v577
      %v586 = vunpack.c.l.b16 %v578
      %v587 = vunpack.c.l.b16 %v579
      %v588 = vunpack.c.l.b16 %v580
      %v589 = vpack.c.b16 %v586, %v585
      %v590 = vpack.c.b16 %v588, %v587
      %vm593 = vcmask 261120
      %v595 = vsel %vm593, %v539, 0
      %v598 = vsel %vm593, %v551, 0
      %v601 = vsel %vm593, %v563, 0
      %v604 = vsel %vm593, %v575, 0
      %606 = vmatprep.subr.bf16.mxu0 0
      %607 = vmatpush1.bf16.msra.mxu0 %v589
      %608 = vmatprep.subr.bf16.mxu0 0
      %609 = vmatpush1.bf16.msra.mxu0 %v590
      %610 = vmatprep.subr.bf16.mxu0 0
      %611 = vmatpush1.bf16.msra.mxu0 0
      %612 = vmatprep.subr.bf16.mxu0 0
      %613 = vmatpush1.bf16.msra.mxu0 0
      %614 = vmatprep.subr.bf16.mxu0 0
      %615 = vmatpush1.bf16.msra.mxu0 0
      %616 = vmatprep.subr.bf16.mxu0 0
      %617 = vmatpush1.bf16.msra.mxu0 0
      %618 = vmatprep.subr.bf16.mxu0 0
      %619 = vmatpush1.bf16.msra.mxu0 0
      %620 = vmatprep.subr.bf16.mxu0 0
      %621 = vmatpush1.bf16.msra.mxu0 0
      %622 = vmatprep.subr.bf16.mxu0 0
      %623 = vmatpush1.bf16.msra.mxu0 0
      %624 = vmatprep.subr.bf16.mxu0 0
      %625 = vmatpush1.bf16.msra.mxu0 0
      %626 = vmatprep.subr.bf16.mxu0 0
      %627 = vmatpush1.bf16.msra.mxu0 0
      %628 = vmatprep.subr.bf16.mxu0 0
      %629 = vmatpush1.bf16.msra.mxu0 0
      %630 = vmatprep.subr.bf16.mxu0 0
      %631 = vmatpush1.bf16.msra.mxu0 0
      %632 = vmatprep.subr.bf16.mxu0 0
      %633 = vmatpush1.bf16.msra.mxu0 0
      %634 = vmatprep.subr.bf16.mxu0 0
      %635 = vmatpush1.bf16.msra.mxu0 0
      %636 = vmatprep.subr.bf16.mxu0 0
      %637 = vmatpush1.bf16.msra.mxu0 0
      %638 = vmatprep.mubr.bf16.mxu0 0
      %639 = vmatmul.mubr.bf16.gmra.mrb[0].mxu0 %v595
      %v640 = vpop.f32.mrb[0].mxu0
      %v641 = vadd.f32 0.0, %v640
      %v642 = vpop.f32.mrb[0].mxu0
      %v643 = vpop.f32.mrb[0].mxu0
      %v644 = vadd.f32 0.0, %v643
      %v645 = vpop.f32.mrb[0].mxu0
      %646 = vmatprep.mubr.bf16.mxu0 0
      %647 = vmatmul.mubr.bf16.gmra.mrb[0].mxu0 %v598
      %v648 = vpop.f32.mrb[0].mxu0
      %v649 = vadd.f32 0.0, %v648
      %v650 = vpop.f32.mrb[0].mxu0
      %v651 = vpop.f32.mrb[0].mxu0
      %v652 = vadd.f32 0.0, %v651
      %v653 = vpop.f32.mrb[0].mxu0
      %654 = vmatprep.mubr.bf16.mxu0 0
      %655 = vmatmul.mubr.bf16.gmra.mrb[0].mxu0 %v601
      %v656 = vpop.f32.mrb[0].mxu0
      %v657 = vadd.f32 0.0, %v656
      %v658 = vpop.f32.mrb[0].mxu0
      %v659 = vpop.f32.mrb[0].mxu0
      %v660 = vadd.f32 0.0, %v659
      %v661 = vpop.f32.mrb[0].mxu0
      %662 = vmatprep.mubr.bf16.mxu0 0
      %663 = vmatmul.mubr.bf16.gmra.mrb[0].mxu0 %v604
      %v664 = vpop.f32.mrb[0].mxu0
      %v665 = vadd.f32 0.0, %v664
      %v666 = vpop.f32.mrb[0].mxu0
      %v667 = vpop.f32.mrb[0].mxu0
      %v668 = vadd.f32 0.0, %v667
      %v669 = vpop.f32.mrb[0].mxu0
      %670 = vdwg.mxu0
      %v675 = vunpack.c.l.b16 %v523
      %v676 = vunpack.c.l.b16 %v524
      %v677 = vunpack.c.l.b16 %v525
      %v678 = vunpack.c.l.b16 %v526
      %v679 = vpack.c.b16 %v676, %v675
      %v680 = vpack.c.b16 %v678, %v677
      %v683 = vsel %vm593, %v511, 0
      %v685 = vsel %vm593, %v513, 0
      %v687 = vsel %vm593, %v515, 0
      %v689 = vsel %vm593, %v517, 0
      %691 = vmatprep.subr.bf16.mxu0 0
      %692 = vmatpush1.bf16.msra.mxu0 %v679
      %693 = vmatprep.subr.bf16.mxu0 0
      %694 = vmatpush1.bf16.msra.mxu0 %v680
      %695 = vmatprep.subr.bf16.mxu0 0
      %696 = vmatpush1.bf16.msra.mxu0 0
      %697 = vmatprep.subr.bf16.mxu0 0
      %698 = vmatpush1.bf16.msra.mxu0 0
      %699 = vmatprep.subr.bf16.mxu0 0
      %700 = vmatpush1.bf16.msra.mxu0 0
      %701 = vmatprep.subr.bf16.mxu0 0
      %702 = vmatpush1.bf16.msra.mxu0 0
      %703 = vmatprep.subr.bf16.mxu0 0
      %704 = vmatpush1.bf16.msra.mxu0 0
      %705 = vmatprep.subr.bf16.mxu0 0
      %706 = vmatpush1.bf16.msra.mxu0 0
      %707 = vmatprep.subr.bf16.mxu0 0
      %708 = vmatpush1.bf16.msra.mxu0 0
      %709 = vmatprep.subr.bf16.mxu0 0
      %710 = vmatpush1.bf16.msra.mxu0 0
      %711 = vmatprep.subr.bf16.mxu0 0
      %712 = vmatpush1.bf16.msra.mxu0 0
      %713 = vmatprep.subr.bf16.mxu0 0
      %714 = vmatpush1.bf16.msra.mxu0 0
      %715 = vmatprep.subr.bf16.mxu0 0
      %716 = vmatpush1.bf16.msra.mxu0 0
      %717 = vmatprep.subr.bf16.mxu0 0
      %718 = vmatpush1.bf16.msra.mxu0 0
      %719 = vmatprep.subr.bf16.mxu0 0
      %720 = vmatpush1.bf16.msra.mxu0 0
      %721 = vmatprep.subr.bf16.mxu0 0
      %722 = vmatpush1.bf16.msra.mxu0 0
      %723 = vmatprep.mubr.bf16.mxu0 0
      %724 = vmatmul.mubr.bf16.gmra.mrb[0].mxu0 %v683
      %v725 = vpop.f32.mrb[0].mxu0
      %v726 = vadd.f32 %v641, %v725
      %v727 = vpop.f32.mrb[0].mxu0
      %v728 = vpop.f32.mrb[0].mxu0
      %v729 = vadd.f32 %v644, %v728
      %v730 = vpop.f32.mrb[0].mxu0
      %731 = vmatprep.mubr.bf16.mxu0 0
      %732 = vmatmul.mubr.bf16.gmra.mrb[0].mxu0 %v685
      %v733 = vpop.f32.mrb[0].mxu0
      %v734 = vadd.f32 %v649, %v733
      %v735 = vpop.f32.mrb[0].mxu0
      %v736 = vpop.f32.mrb[0].mxu0
      %v737 = vadd.f32 %v652, %v736
      %v738 = vpop.f32.mrb[0].mxu0
      %739 = vmatprep.mubr.bf16.mxu0 0
      %740 = vmatmul.mubr.bf16.gmra.mrb[0].mxu0 %v687
      %v741 = vpop.f32.mrb[0].mxu0
      %v742 = vadd.f32 %v657, %v741
      %v743 = vpop.f32.mrb[0].mxu0
      %v744 = vpop.f32.mrb[0].mxu0
      %v745 = vadd.f32 %v660, %v744
      %v746 = vpop.f32.mrb[0].mxu0
      %747 = vmatprep.mubr.bf16.mxu0 0
      %748 = vmatmul.mubr.bf16.gmra.mrb[0].mxu0 %v689
      %v749 = vpop.f32.mrb[0].mxu0
      %v750 = vadd.f32 %v665, %v749
      %v751 = vpop.f32.mrb[0].mxu0
      %v752 = vpop.f32.mrb[0].mxu0
      %v753 = vadd.f32 %v668, %v752
      %v754 = vpop.f32.mrb[0].mxu0
      %755 = vdwg.mxu0
      %vm764 = vcmask 1046528
      %v765 = vrot.slane %v511, 1
      %v766 = vrot.slane %v512, 1
      %v767 = vsel %vm764, %v765, %v766
      %v768 = vrot.slane %v513, 1
      %v769 = vrot.slane %v514, 1
      %v770 = vsel %vm764, %v768, %v769
      %v771 = vrot.slane %v515, 1
      %v772 = vrot.slane %v516, 1
      %v773 = vsel %vm764, %v771, %v772
      %v774 = vrot.slane %v517, 1
      %v775 = vrot.slane %v518, 1
      %v776 = vsel %vm764, %v774, %v775
      %s777 = scalar_lea.vmem %s1, 32
      %v778 = vld [vmem:[%s777] sm:$0xf]
      %v779 = vld [vmem:[%s777 + $0x4] sm:$0xf]
      %v780 = vld [vmem:[%s777 + $0x8] sm:$0xf]
      %v781 = vld [vmem:[%s777 + $0xc] sm:$0xf]
      %v786 = vunpack.c.l.b16 %v778
      %v787 = vunpack.c.l.b16 %v779
      %v788 = vunpack.c.l.b16 %v780
      %v789 = vunpack.c.l.b16 %v781
      %v790 = vpack.c.b16 %v787, %v786
      %v791 = vpack.c.b16 %v789, %v788
      %v795 = vsel %vm593, %v767, 0
      %v798 = vsel %vm593, %v770, 0
      %v801 = vsel %vm593, %v773, 0
      %v804 = vsel %vm593, %v776, 0
      %806 = vmatprep.subr.bf16.mxu0 0
      %807 = vmatpush1.bf16.msra.mxu0 %v790
      %808 = vmatprep.subr.bf16.mxu0 0
      %809 = vmatpush1.bf16.msra.mxu0 %v791
      %810 = vmatprep.subr.bf16.mxu0 0
      %811 = vmatpush1.bf16.msra.mxu0 0
      %812 = vmatprep.subr.bf16.mxu0 0
      %813 = vmatpush1.bf16.msra.mxu0 0
      %814 = vmatprep.subr.bf16.mxu0 0
      %815 = vmatpush1.bf16.msra.mxu0 0
      %816 = vmatprep.subr.bf16.mxu0 0
      %817 = vmatpush1.bf16.msra.mxu0 0
      %818 = vmatprep.subr.bf16.mxu0 0
      %819 = vmatpush1.bf16.msra.mxu0 0
      %820 = vmatprep.subr.bf16.mxu0 0
      %821 = vmatpush1.bf16.msra.mxu0 0
      %822 = vmatprep.subr.bf16.mxu0 0
      %823 = vmatpush1.bf16.msra.mxu0 0
      %824 = vmatprep.subr.bf16.mxu0 0
      %825 = vmatpush1.bf16.msra.mxu0 0
      %826 = vmatprep.subr.bf16.mxu0 0
      %827 = vmatpush1.bf16.msra.mxu0 0
      %828 = vmatprep.subr.bf16.mxu0 0
      %829 = vmatpush1.bf16.msra.mxu0 0
      %830 = vmatprep.subr.bf16.mxu0 0
      %831 = vmatpush1.bf16.msra.mxu0 0
      %832 = vmatprep.subr.bf16.mxu0 0
      %833 = vmatpush1.bf16.msra.mxu0 0
      %834 = vmatprep.subr.bf16.mxu0 0
      %835 = vmatpush1.bf16.msra.mxu0 0
      %836 = vmatprep.subr.bf16.mxu0 0
      %837 = vmatpush1.bf16.msra.mxu0 0
      %838 = vmatprep.mubr.bf16.mxu0 0
      %839 = vmatmul.mubr.bf16.gmra.mrb[0].mxu0 %v795
      %v840 = vpop.f32.mrb[0].mxu0
      %v841 = vadd.f32 0.0, %v840
      %v842 = vpop.f32.mrb[0].mxu0
      %v843 = vpop.f32.mrb[0].mxu0
      %v844 = vadd.f32 0.0, %v843
      %v845 = vpop.f32.mrb[0].mxu0
      %846 = vmatprep.mubr.bf16.mxu0 0
      %847 = vmatmul.mubr.bf16.gmra.mrb[0].mxu0 %v798
      %v848 = vpop.f32.mrb[0].mxu0
      %v849 = vadd.f32 0.0, %v848
      %v850 = vpop.f32.mrb[0].mxu0
      %v851 = vpop.f32.mrb[0].mxu0
      %v852 = vadd.f32 0.0, %v851
      %v853 = vpop.f32.mrb[0].mxu0
      %854 = vmatprep.mubr.bf16.mxu0 0
      %855 = vmatmul.mubr.bf16.gmra.mrb[0].mxu0 %v801
      %v856 = vpop.f32.mrb[0].mxu0
      %v857 = vadd.f32 0.0, %v856
      %v858 = vpop.f32.mrb[0].mxu0
      %v859 = vpop.f32.mrb[0].mxu0
      %v860 = vadd.f32 0.0, %v859
      %v861 = vpop.f32.mrb[0].mxu0
      %862 = vmatprep.mubr.bf16.mxu0 0
      %863 = vmatmul.mubr.bf16.gmra.mrb[0].mxu0 %v804
      %v864 = vpop.f32.mrb[0].mxu0
      %v865 = vadd.f32 0.0, %v864
      %v866 = vpop.f32.mrb[0].mxu0
      %v867 = vpop.f32.mrb[0].mxu0
      %v868 = vadd.f32 0.0, %v867
      %v869 = vpop.f32.mrb[0].mxu0
      %870 = vdwg.mxu0
      %v871 = vadd.f32 %v726, %v841
      %v872 = vadd.f32 %v729, %v844
      %v873 = vadd.f32 %v734, %v849
      %v874 = vadd.f32 %v737, %v852
      %v875 = vadd.f32 %v742, %v857
      %v876 = vadd.f32 %v745, %v860
      %v877 = vadd.f32 %v750, %v865
      %v878 = vadd.f32 %v753, %v868
      %s879 = scalar_lea.vmem %s1, 48
      %v880 = vld [vmem:[%s879] sm:$0xf]
      %v881 = vld [vmem:[%s879 + $0x4] sm:$0xf]
      %v882 = vld [vmem:[%s879 + $0x8] sm:$0xf]
      %v883 = vld [vmem:[%s879 + $0xc] sm:$0xf]
      %v888 = vunpack.c.l.b16 %v880
      %v889 = vunpack.c.l.b16 %v881
      %v890 = vunpack.c.l.b16 %v882
      %v891 = vunpack.c.l.b16 %v883
      %v892 = vpack.c.b16 %v889, %v888
      %v893 = vpack.c.b16 %v891, %v890
      %v897 = vsel %vm593, %v519, 0
      %899 = vmatprep.subr.bf16.mxu0 0
      %900 = vmatpush1.bf16.msra.mxu0 %v892
      %901 = vmatprep.subr.bf16.mxu0 0
      %902 = vmatpush1.bf16.msra.mxu0 %v893
      %903 = vmatprep.subr.bf16.mxu0 0
      %904 = vmatpush1.bf16.msra.mxu0 0
      %905 = vmatprep.subr.bf16.mxu0 0
      %906 = vmatpush1.bf16.msra.mxu0 0
      %907 = vmatprep.subr.bf16.mxu0 0
      %908 = vmatpush1.bf16.msra.mxu0 0
      %909 = vmatprep.subr.bf16.mxu0 0
      %910 = vmatpush1.bf16.msra.mxu0 0
      %911 = vmatprep.subr.bf16.mxu0 0
      %912 = vmatpush1.bf16.msra.mxu0 0
      %913 = vmatprep.subr.bf16.mxu0 0
      %914 = vmatpush1.bf16.msra.mxu0 0
      %915 = vmatprep.subr.bf16.mxu0 0
      %916 = vmatpush1.bf16.msra.mxu0 0
      %917 = vmatprep.subr.bf16.mxu0 0
      %918 = vmatpush1.bf16.msra.mxu0 0
      %919 = vmatprep.subr.bf16.mxu0 0
      %920 = vmatpush1.bf16.msra.mxu0 0
      %921 = vmatprep.subr.bf16.mxu0 0
      %922 = vmatpush1.bf16.msra.mxu0 0
      %923 = vmatprep.subr.bf16.mxu0 0
      %924 = vmatpush1.bf16.msra.mxu0 0
      %925 = vmatprep.subr.bf16.mxu0 0
      %926 = vmatpush1.bf16.msra.mxu0 0
      %927 = vmatprep.subr.bf16.mxu0 0
      %928 = vmatpush1.bf16.msra.mxu0 0
      %929 = vmatprep.subr.bf16.mxu0 0
      %930 = vmatpush1.bf16.msra.mxu0 0
      %931 = vmatprep.mubr.bf16.mxu0 0
      %932 = vmatmul.mubr.bf16.gmra.mrb[0].mxu0 %v685
      %v933 = vpop.f32.mrb[0].mxu0
      %v934 = vadd.f32 0.0, %v933
      %v935 = vpop.f32.mrb[0].mxu0
      %v936 = vpop.f32.mrb[0].mxu0
      %v937 = vadd.f32 0.0, %v936
      %v938 = vpop.f32.mrb[0].mxu0
      %939 = vmatprep.mubr.bf16.mxu0 0
      %940 = vmatmul.mubr.bf16.gmra.mrb[0].mxu0 %v687
      %v941 = vpop.f32.mrb[0].mxu0
      %v942 = vadd.f32 0.0, %v941
      %v943 = vpop.f32.mrb[0].mxu0
      %v944 = vpop.f32.mrb[0].mxu0
      %v945 = vadd.f32 0.0, %v944
      %v946 = vpop.f32.mrb[0].mxu0
      %947 = vmatprep.mubr.bf16.mxu0 0
      %948 = vmatmul.mubr.bf16.gmra.mrb[0].mxu0 %v689
      %v949 = vpop.f32.mrb[0].mxu0
      %v950 = vadd.f32 0.0, %v949
      %v951 = vpop.f32.mrb[0].mxu0
      %v952 = vpop.f32.mrb[0].mxu0
      %v953 = vadd.f32 0.0, %v952
      %v954 = vpop.f32.mrb[0].mxu0
      %955 = vmatprep.mubr.bf16.mxu0 0
      %956 = vmatmul.mubr.bf16.gmra.mrb[0].mxu0 %v897
      %v957 = vpop.f32.mrb[0].mxu0
      %v958 = vadd.f32 0.0, %v957
      %v959 = vpop.f32.mrb[0].mxu0
      %v960 = vpop.f32.mrb[0].mxu0
      %v961 = vadd.f32 0.0, %v960
      %v962 = vpop.f32.mrb[0].mxu0
      %963 = vdwg.mxu0
      %v964 = vadd.f32 %v871, %v934
      %v965 = vadd.f32 %v872, %v937
      %v966 = vadd.f32 %v873, %v942
      %v967 = vadd.f32 %v874, %v945
      %v968 = vadd.f32 %v875, %v950
      %v969 = vadd.f32 %v876, %v953
      %v970 = vadd.f32 %v877, %v958
      %v971 = vadd.f32 %v878, %v961
      %v972 = vshrl.u32 %v519, 16
      %v974 = vshll.u32 %v519, 16
      %v976 = vrot.slane %v974, 1
      %v977 = vor.u32 %v972, %v976
      %v979 = vshll.u32 %v520, 16
      %v981 = vrot.slane %v979, 1
      %v982 = vsel %vm527, %v977, %v981
      %s983 = scalar_lea.vmem %s1, 64
      %v984 = vld [vmem:[%s983] sm:$0xf]
      %v985 = vld [vmem:[%s983 + $0x4] sm:$0xf]
      %v986 = vld [vmem:[%s983 + $0x8] sm:$0xf]
      %v987 = vld [vmem:[%s983 + $0xc] sm:$0xf]
      %v992 = vunpack.c.l.b16 %v984
      %v993 = vunpack.c.l.b16 %v985
      %v994 = vunpack.c.l.b16 %v986
      %v995 = vunpack.c.l.b16 %v987
      %v996 = vpack.c.b16 %v993, %v992
      %v997 = vpack.c.b16 %v995, %v994
      %v1001 = vsel %vm593, %v982, 0
      %1003 = vmatprep.subr.bf16.mxu0 0
      %1004 = vmatpush1.bf16.msra.mxu0 %v996
      %1005 = vmatprep.subr.bf16.mxu0 0
      %1006 = vmatpush1.bf16.msra.mxu0 %v997
      %1007 = vmatprep.subr.bf16.mxu0 0
      %1008 = vmatpush1.bf16.msra.mxu0 0
      %1009 = vmatprep.subr.bf16.mxu0 0
      %1010 = vmatpush1.bf16.msra.mxu0 0
      %1011 = vmatprep.subr.bf16.mxu0 0
      %1012 = vmatpush1.bf16.msra.mxu0 0
      %1013 = vmatprep.subr.bf16.mxu0 0
      %1014 = vmatpush1.bf16.msra.mxu0 0
      %1015 = vmatprep.subr.bf16.mxu0 0
      %1016 = vmatpush1.bf16.msra.mxu0 0
      %1017 = vmatprep.subr.bf16.mxu0 0
      %1018 = vmatpush1.bf16.msra.mxu0 0
      %1019 = vmatprep.subr.bf16.mxu0 0
      %1020 = vmatpush1.bf16.msra.mxu0 0
      %1021 = vmatprep.subr.bf16.mxu0 0
      %1022 = vmatpush1.bf16.msra.mxu0 0
      %1023 = vmatprep.subr.bf16.mxu0 0
      %1024 = vmatpush1.bf16.msra.mxu0 0
      %1025 = vmatprep.subr.bf16.mxu0 0
      %1026 = vmatpush1.bf16.msra.mxu0 0
      %1027 = vmatprep.subr.bf16.mxu0 0
      %1028 = vmatpush1.bf16.msra.mxu0 0
      %1029 = vmatprep.subr.bf16.mxu0 0
      %1030 = vmatpush1.bf16.msra.mxu0 0
      %1031 = vmatprep.subr.bf16.mxu0 0
      %1032 = vmatpush1.bf16.msra.mxu0 0
      %1033 = vmatprep.subr.bf16.mxu0 0
      %1034 = vmatpush1.bf16.msra.mxu0 0
      %1035 = vmatprep.mubr.bf16.mxu0 0
      %1036 = vmatmul.mubr.bf16.gmra.mrb[0].mxu0 %v598
      %v1037 = vpop.f32.mrb[0].mxu0
      %v1038 = vadd.f32 0.0, %v1037
      %v1039 = vpop.f32.mrb[0].mxu0
      %v1040 = vpop.f32.mrb[0].mxu0
      %v1041 = vadd.f32 0.0, %v1040
      %v1042 = vpop.f32.mrb[0].mxu0
      %1043 = vmatprep.mubr.bf16.mxu0 0
      %1044 = vmatmul.mubr.bf16.gmra.mrb[0].mxu0 %v601
      %v1045 = vpop.f32.mrb[0].mxu0
      %v1046 = vadd.f32 0.0, %v1045
      %v1047 = vpop.f32.mrb[0].mxu0
      %v1048 = vpop.f32.mrb[0].mxu0
      %v1049 = vadd.f32 0.0, %v1048
      %v1050 = vpop.f32.mrb[0].mxu0
      %1051 = vmatprep.mubr.bf16.mxu0 0
      %1052 = vmatmul.mubr.bf16.gmra.mrb[0].mxu0 %v604
      %v1053 = vpop.f32.mrb[0].mxu0
      %v1054 = vadd.f32 0.0, %v1053
      %v1055 = vpop.f32.mrb[0].mxu0
      %v1056 = vpop.f32.mrb[0].mxu0
      %v1057 = vadd.f32 0.0, %v1056
      %v1058 = vpop.f32.mrb[0].mxu0
      %1059 = vmatprep.mubr.bf16.mxu0 0
      %1060 = vmatmul.mubr.bf16.gmra.mrb[0].mxu0 %v1001
      %v1061 = vpop.f32.mrb[0].mxu0
      %v1062 = vadd.f32 0.0, %v1061
      %v1063 = vpop.f32.mrb[0].mxu0
      %v1064 = vpop.f32.mrb[0].mxu0
      %v1065 = vadd.f32 0.0, %v1064
      %v1066 = vpop.f32.mrb[0].mxu0
      %1067 = vdwg.mxu0
      %v1068 = vadd.f32 %v964, %v1038
      %v1069 = vadd.f32 %v965, %v1041
      %v1070 = vadd.f32 %v966, %v1046
      %v1071 = vadd.f32 %v967, %v1049
      %v1072 = vadd.f32 %v968, %v1054
      %v1073 = vadd.f32 %v969, %v1057
      %v1074 = vadd.f32 %v970, %v1062
      %v1075 = vadd.f32 %v971, %v1065
      %v1078 = vrot.slane %v519, 1
      %v1079 = vrot.slane %v520, 1
      %v1080 = vsel %vm764, %v1078, %v1079
      %s1081 = scalar_lea.vmem %s1, 80
      %v1082 = vld [vmem:[%s1081] sm:$0xf]
      %v1083 = vld [vmem:[%s1081 + $0x4] sm:$0xf]
      %v1084 = vld [vmem:[%s1081 + $0x8] sm:$0xf]
      %v1085 = vld [vmem:[%s1081 + $0xc] sm:$0xf]
      %v1090 = vunpack.c.l.b16 %v1082
      %v1091 = vunpack.c.l.b16 %v1083
      %v1092 = vunpack.c.l.b16 %v1084
      %v1093 = vunpack.c.l.b16 %v1085
      %v1094 = vpack.c.b16 %v1091, %v1090
      %v1095 = vpack.c.b16 %v1093, %v1092
      %v1099 = vsel %vm593, %v1080, 0
      %1101 = vmatprep.subr.bf16.mxu0 0
      %1102 = vmatpush1.bf16.msra.mxu0 %v1094
      %1103 = vmatprep.subr.bf16.mxu0 0
      %1104 = vmatpush1.bf16.msra.mxu0 %v1095
      %1105 = vmatprep.subr.bf16.mxu0 0
      %1106 = vmatpush1.bf16.msra.mxu0 0
      %1107 = vmatprep.subr.bf16.mxu0 0
      %1108 = vmatpush1.bf16.msra.mxu0 0
      %1109 = vmatprep.subr.bf16.mxu0 0
      %1110 = vmatpush1.bf16.msra.mxu0 0
      %1111 = vmatprep.subr.bf16.mxu0 0
      %1112 = vmatpush1.bf16.msra.mxu0 0
      %1113 = vmatprep.subr.bf16.mxu0 0
      %1114 = vmatpush1.bf16.msra.mxu0 0
      %1115 = vmatprep.subr.bf16.mxu0 0
      %1116 = vmatpush1.bf16.msra.mxu0 0
      %1117 = vmatprep.subr.bf16.mxu0 0
      %1118 = vmatpush1.bf16.msra.mxu0 0
      %1119 = vmatprep.subr.bf16.mxu0 0
      %1120 = vmatpush1.bf16.msra.mxu0 0
      %1121 = vmatprep.subr.bf16.mxu0 0
      %1122 = vmatpush1.bf16.msra.mxu0 0
      %1123 = vmatprep.subr.bf16.mxu0 0
      %1124 = vmatpush1.bf16.msra.mxu0 0
      %1125 = vmatprep.subr.bf16.mxu0 0
      %1126 = vmatpush1.bf16.msra.mxu0 0
      %1127 = vmatprep.subr.bf16.mxu0 0
      %1128 = vmatpush1.bf16.msra.mxu0 0
      %1129 = vmatprep.subr.bf16.mxu0 0
      %1130 = vmatpush1.bf16.msra.mxu0 0
      %1131 = vmatprep.subr.bf16.mxu0 0
      %1132 = vmatpush1.bf16.msra.mxu0 0
      %1133 = vmatprep.mubr.bf16.mxu0 0
      %1134 = vmatmul.mubr.bf16.gmra.mrb[0].mxu0 %v798
      %v1135 = vpop.f32.mrb[0].mxu0
      %v1136 = vadd.f32 0.0, %v1135
      %v1137 = vpop.f32.mrb[0].mxu0
      %v1138 = vpop.f32.mrb[0].mxu0
      %v1139 = vadd.f32 0.0, %v1138
      %v1140 = vpop.f32.mrb[0].mxu0
      %1141 = vmatprep.mubr.bf16.mxu0 0
      %1142 = vmatmul.mubr.bf16.gmra.mrb[0].mxu0 %v801
      %v1143 = vpop.f32.mrb[0].mxu0
      %v1144 = vadd.f32 0.0, %v1143
      %v1145 = vpop.f32.mrb[0].mxu0
      %v1146 = vpop.f32.mrb[0].mxu0
      %v1147 = vadd.f32 0.0, %v1146
      %v1148 = vpop.f32.mrb[0].mxu0
      %1149 = vmatprep.mubr.bf16.mxu0 0
      %1150 = vmatmul.mubr.bf16.gmra.mrb[0].mxu0 %v804
      %v1151 = vpop.f32.mrb[0].mxu0
      %v1152 = vadd.f32 0.0, %v1151
      %v1153 = vpop.f32.mrb[0].mxu0
      %v1154 = vpop.f32.mrb[0].mxu0
      %v1155 = vadd.f32 0.0, %v1154
      %v1156 = vpop.f32.mrb[0].mxu0
      %1157 = vmatprep.mubr.bf16.mxu0 0
      %1158 = vmatmul.mubr.bf16.gmra.mrb[0].mxu0 %v1099
      %v1159 = vpop.f32.mrb[0].mxu0
      %v1160 = vadd.f32 0.0, %v1159
      %v1161 = vpop.f32.mrb[0].mxu0
      %v1162 = vpop.f32.mrb[0].mxu0
      %v1163 = vadd.f32 0.0, %v1162
      %v1164 = vpop.f32.mrb[0].mxu0
      %1165 = vdwg.mxu0
      %v1166 = vadd.f32 %v1068, %v1136
      %v1167 = vadd.f32 %v1069, %v1139
      %v1168 = vadd.f32 %v1070, %v1144
      %v1169 = vadd.f32 %v1071, %v1147
      %v1170 = vadd.f32 %v1072, %v1152
      %v1171 = vadd.f32 %v1073, %v1155
      %v1172 = vadd.f32 %v1074, %v1160
      %v1173 = vadd.f32 %v1075, %v1163
      %s1174 = scalar_lea.vmem %s1, 96
      %v1175 = vld [vmem:[%s1174] sm:$0xf]
      %v1176 = vld [vmem:[%s1174 + $0x4] sm:$0xf]
      %v1177 = vld [vmem:[%s1174 + $0x8] sm:$0xf]
      %v1178 = vld [vmem:[%s1174 + $0xc] sm:$0xf]
      %v1183 = vunpack.c.l.b16 %v1175
      %v1184 = vunpack.c.l.b16 %v1176
      %v1185 = vunpack.c.l.b16 %v1177
      %v1186 = vunpack.c.l.b16 %v1178
      %v1187 = vpack.c.b16 %v1184, %v1183
      %v1188 = vpack.c.b16 %v1186, %v1185
      %v1192 = vsel %vm593, %v521, 0
      %1194 = vmatprep.subr.bf16.mxu0 0
      %1195 = vmatpush1.bf16.msra.mxu0 %v1187
      %1196 = vmatprep.subr.bf16.mxu0 0
      %1197 = vmatpush1.bf16.msra.mxu0 %v1188
      %1198 = vmatprep.subr.bf16.mxu0 0
      %1199 = vmatpush1.bf16.msra.mxu0 0
      %1200 = vmatprep.subr.bf16.mxu0 0
      %1201 = vmatpush1.bf16.msra.mxu0 0
      %1202 = vmatprep.subr.bf16.mxu0 0
      %1203 = vmatpush1.bf16.msra.mxu0 0
      %1204 = vmatprep.subr.bf16.mxu0 0
      %1205 = vmatpush1.bf16.msra.mxu0 0
      %1206 = vmatprep.subr.bf16.mxu0 0
      %1207 = vmatpush1.bf16.msra.mxu0 0
      %1208 = vmatprep.subr.bf16.mxu0 0
      %1209 = vmatpush1.bf16.msra.mxu0 0
      %1210 = vmatprep.subr.bf16.mxu0 0
      %1211 = vmatpush1.bf16.msra.mxu0 0
      %1212 = vmatprep.subr.bf16.mxu0 0
      %1213 = vmatpush1.bf16.msra.mxu0 0
      %1214 = vmatprep.subr.bf16.mxu0 0
      %1215 = vmatpush1.bf16.msra.mxu0 0
      %1216 = vmatprep.subr.bf16.mxu0 0
      %1217 = vmatpush1.bf16.msra.mxu0 0
      %1218 = vmatprep.subr.bf16.mxu0 0
      %1219 = vmatpush1.bf16.msra.mxu0 0
      %1220 = vmatprep.subr.bf16.mxu0 0
      %1221 = vmatpush1.bf16.msra.mxu0 0
      %1222 = vmatprep.subr.bf16.mxu0 0
      %1223 = vmatpush1.bf16.msra.mxu0 0
      %1224 = vmatprep.subr.bf16.mxu0 0
      %1225 = vmatpush1.bf16.msra.mxu0 0
      %1226 = vmatprep.mubr.bf16.mxu0 0
      %1227 = vmatmul.mubr.bf16.gmra.mrb[0].mxu0 %v687
      %v1228 = vpop.f32.mrb[0].mxu0
      %v1229 = vadd.f32 0.0, %v1228
      %v1230 = vpop.f32.mrb[0].mxu0
      %v1231 = vpop.f32.mrb[0].mxu0
      %v1232 = vadd.f32 0.0, %v1231
      %v1233 = vpop.f32.mrb[0].mxu0
      %1234 = vmatprep.mubr.bf16.mxu0 0
      %1235 = vmatmul.mubr.bf16.gmra.mrb[0].mxu0 %v689
      %v1236 = vpop.f32.mrb[0].mxu0
      %v1237 = vadd.f32 0.0, %v1236
      %v1238 = vpop.f32.mrb[0].mxu0
      %v1239 = vpop.f32.mrb[0].mxu0
      %v1240 = vadd.f32 0.0, %v1239
      %v1241 = vpop.f32.mrb[0].mxu0
      %1242 = vmatprep.mubr.bf16.mxu0 0
      %1243 = vmatmul.mubr.bf16.gmra.mrb[0].mxu0 %v897
      %v1244 = vpop.f32.mrb[0].mxu0
      %v1245 = vadd.f32 0.0, %v1244
      %v1246 = vpop.f32.mrb[0].mxu0
      %v1247 = vpop.f32.mrb[0].mxu0
      %v1248 = vadd.f32 0.0, %v1247
      %v1249 = vpop.f32.mrb[0].mxu0
      %1250 = vmatprep.mubr.bf16.mxu0 0
      %1251 = vmatmul.mubr.bf16.gmra.mrb[0].mxu0 %v1192
      %v1252 = vpop.f32.mrb[0].mxu0
      %v1253 = vadd.f32 0.0, %v1252
      %v1254 = vpop.f32.mrb[0].mxu0
      %v1255 = vpop.f32.mrb[0].mxu0
      %v1256 = vadd.f32 0.0, %v1255
      %v1257 = vpop.f32.mrb[0].mxu0
      %1258 = vdwg.mxu0
      %v1259 = vadd.f32 %v1166, %v1229
      %v1260 = vadd.f32 %v1167, %v1232
      %v1261 = vadd.f32 %v1168, %v1237
      %v1262 = vadd.f32 %v1169, %v1240
      %v1263 = vadd.f32 %v1170, %v1245
      %v1264 = vadd.f32 %v1171, %v1248
      %v1265 = vadd.f32 %v1172, %v1253
      %v1266 = vadd.f32 %v1173, %v1256
      %v1267 = vshrl.u32 %v521, 16
      %v1269 = vshll.u32 %v521, 16
      %v1271 = vrot.slane %v1269, 1
      %v1272 = vor.u32 %v1267, %v1271
      %v1274 = vshll.u32 %v522, 16
      %v1276 = vrot.slane %v1274, 1
      %v1277 = vsel %vm527, %v1272, %v1276
      %s1278 = scalar_lea.vmem %s1, 112
      %v1279 = vld [vmem:[%s1278] sm:$0xf]
      %v1280 = vld [vmem:[%s1278 + $0x4] sm:$0xf]
      %v1281 = vld [vmem:[%s1278 + $0x8] sm:$0xf]
      %v1282 = vld [vmem:[%s1278 + $0xc] sm:$0xf]
      %v1287 = vunpack.c.l.b16 %v1279
      %v1288 = vunpack.c.l.b16 %v1280
      %v1289 = vunpack.c.l.b16 %v1281
      %v1290 = vunpack.c.l.b16 %v1282
      %v1291 = vpack.c.b16 %v1288, %v1287
      %v1292 = vpack.c.b16 %v1290, %v1289
      %v1296 = vsel %vm593, %v1277, 0
      %1298 = vmatprep.subr.bf16.mxu0 0
      %1299 = vmatpush1.bf16.msra.mxu0 %v1291
      %1300 = vmatprep.subr.bf16.mxu0 0
      %1301 = vmatpush1.bf16.msra.mxu0 %v1292
      %1302 = vmatprep.subr.bf16.mxu0 0
      %1303 = vmatpush1.bf16.msra.mxu0 0
      %1304 = vmatprep.subr.bf16.mxu0 0
      %1305 = vmatpush1.bf16.msra.mxu0 0
      %1306 = vmatprep.subr.bf16.mxu0 0
      %1307 = vmatpush1.bf16.msra.mxu0 0
      %1308 = vmatprep.subr.bf16.mxu0 0
      %1309 = vmatpush1.bf16.msra.mxu0 0
      %1310 = vmatprep.subr.bf16.mxu0 0
      %1311 = vmatpush1.bf16.msra.mxu0 0
      %1312 = vmatprep.subr.bf16.mxu0 0
      %1313 = vmatpush1.bf16.msra.mxu0 0
      %1314 = vmatprep.subr.bf16.mxu0 0
      %1315 = vmatpush1.bf16.msra.mxu0 0
      %1316 = vmatprep.subr.bf16.mxu0 0
      %1317 = vmatpush1.bf16.msra.mxu0 0
      %1318 = vmatprep.subr.bf16.mxu0 0
      %1319 = vmatpush1.bf16.msra.mxu0 0
      %1320 = vmatprep.subr.bf16.mxu0 0
      %1321 = vmatpush1.bf16.msra.mxu0 0
      %1322 = vmatprep.subr.bf16.mxu0 0
      %1323 = vmatpush1.bf16.msra.mxu0 0
      %1324 = vmatprep.subr.bf16.mxu0 0
      %1325 = vmatpush1.bf16.msra.mxu0 0
      %1326 = vmatprep.subr.bf16.mxu0 0
      %1327 = vmatpush1.bf16.msra.mxu0 0
      %1328 = vmatprep.subr.bf16.mxu0 0
      %1329 = vmatpush1.bf16.msra.mxu0 0
      %1330 = vmatprep.mubr.bf16.mxu0 0
      %1331 = vmatmul.mubr.bf16.gmra.mrb[0].mxu0 %v601
      %v1332 = vpop.f32.mrb[0].mxu0
      %v1333 = vadd.f32 0.0, %v1332
      %v1334 = vpop.f32.mrb[0].mxu0
      %v1335 = vpop.f32.mrb[0].mxu0
      %v1336 = vadd.f32 0.0, %v1335
      %v1337 = vpop.f32.mrb[0].mxu0
      %1338 = vmatprep.mubr.bf16.mxu0 0
      %1339 = vmatmul.mubr.bf16.gmra.mrb[0].mxu0 %v604
      %v1340 = vpop.f32.mrb[0].mxu0
      %v1341 = vadd.f32 0.0, %v1340
      %v1342 = vpop.f32.mrb[0].mxu0
      %v1343 = vpop.f32.mrb[0].mxu0
      %v1344 = vadd.f32 0.0, %v1343
      %v1345 = vpop.f32.mrb[0].mxu0
      %1346 = vmatprep.mubr.bf16.mxu0 0
      %1347 = vmatmul.mubr.bf16.gmra.mrb[0].mxu0 %v1001
      %v1348 = vpop.f32.mrb[0].mxu0
      %v1349 = vadd.f32 0.0, %v1348
      %v1350 = vpop.f32.mrb[0].mxu0
      %v1351 = vpop.f32.mrb[0].mxu0
      %v1352 = vadd.f32 0.0, %v1351
      %v1353 = vpop.f32.mrb[0].mxu0
      %1354 = vmatprep.mubr.bf16.mxu0 0
      %1355 = vmatmul.mubr.bf16.gmra.mrb[0].mxu0 %v1296
      %v1356 = vpop.f32.mrb[0].mxu0
      %v1357 = vadd.f32 0.0, %v1356
      %v1358 = vpop.f32.mrb[0].mxu0
      %v1359 = vpop.f32.mrb[0].mxu0
      %v1360 = vadd.f32 0.0, %v1359
      %v1361 = vpop.f32.mrb[0].mxu0
      %1362 = vdwg.mxu0
      %v1363 = vadd.f32 %v1259, %v1333
      %v1364 = vadd.f32 %v1260, %v1336
      %v1365 = vadd.f32 %v1261, %v1341
      %v1366 = vadd.f32 %v1262, %v1344
      %v1367 = vadd.f32 %v1263, %v1349
      %v1368 = vadd.f32 %v1264, %v1352
      %v1369 = vadd.f32 %v1265, %v1357
      %v1370 = vadd.f32 %v1266, %v1360
      %v1373 = vrot.slane %v521, 1
      %v1374 = vrot.slane %v522, 1
      %v1375 = vsel %vm764, %v1373, %v1374
      %s1376 = scalar_lea.vmem %s1, 128
      %v1377 = vld [vmem:[%s1376] sm:$0xf]
      %v1378 = vld [vmem:[%s1376 + $0x4] sm:$0xf]
      %v1379 = vld [vmem:[%s1376 + $0x8] sm:$0xf]
      %v1380 = vld [vmem:[%s1376 + $0xc] sm:$0xf]
      %v1385 = vunpack.c.l.b16 %v1377
      %v1386 = vunpack.c.l.b16 %v1378
      %v1387 = vunpack.c.l.b16 %v1379
      %v1388 = vunpack.c.l.b16 %v1380
      %v1389 = vpack.c.b16 %v1386, %v1385
      %v1390 = vpack.c.b16 %v1388, %v1387
      %v1394 = vsel %vm593, %v1375, 0
      %1396 = vmatprep.subr.bf16.mxu0 0
      %1397 = vmatpush1.bf16.msra.mxu0 %v1389
      %1398 = vmatprep.subr.bf16.mxu0 0
      %1399 = vmatpush1.bf16.msra.mxu0 %v1390
      %1400 = vmatprep.subr.bf16.mxu0 0
      %1401 = vmatpush1.bf16.msra.mxu0 0
      %1402 = vmatprep.subr.bf16.mxu0 0
      %1403 = vmatpush1.bf16.msra.mxu0 0
      %1404 = vmatprep.subr.bf16.mxu0 0
      %1405 = vmatpush1.bf16.msra.mxu0 0
      %1406 = vmatprep.subr.bf16.mxu0 0
      %1407 = vmatpush1.bf16.msra.mxu0 0
      %1408 = vmatprep.subr.bf16.mxu0 0
      %1409 = vmatpush1.bf16.msra.mxu0 0
      %1410 = vmatprep.subr.bf16.mxu0 0
      %1411 = vmatpush1.bf16.msra.mxu0 0
      %1412 = vmatprep.subr.bf16.mxu0 0
      %1413 = vmatpush1.bf16.msra.mxu0 0
      %1414 = vmatprep.subr.bf16.mxu0 0
      %1415 = vmatpush1.bf16.msra.mxu0 0
      %1416 = vmatprep.subr.bf16.mxu0 0
      %1417 = vmatpush1.bf16.msra.mxu0 0
      %1418 = vmatprep.subr.bf16.mxu0 0
      %1419 = vmatpush1.bf16.msra.mxu0 0
      %1420 = vmatprep.subr.bf16.mxu0 0
      %1421 = vmatpush1.bf16.msra.mxu0 0
      %1422 = vmatprep.subr.bf16.mxu0 0
      %1423 = vmatpush1.bf16.msra.mxu0 0
      %1424 = vmatprep.subr.bf16.mxu0 0
      %1425 = vmatpush1.bf16.msra.mxu0 0
      %1426 = vmatprep.subr.bf16.mxu0 0
      %1427 = vmatpush1.bf16.msra.mxu0 0
      %1428 = vmatprep.mubr.bf16.mxu0 0
      %1429 = vmatmul.mubr.bf16.gmra.mrb[0].mxu0 %v801
      %v1430 = vpop.f32.mrb[0].mxu0
      %v1431 = vadd.f32 0.0, %v1430
      %v1432 = vpop.f32.mrb[0].mxu0
      %v1433 = vpop.f32.mrb[0].mxu0
      %v1434 = vadd.f32 0.0, %v1433
      %v1435 = vpop.f32.mrb[0].mxu0
      %1436 = vmatprep.mubr.bf16.mxu0 0
      %1437 = vmatmul.mubr.bf16.gmra.mrb[0].mxu0 %v804
      %v1438 = vpop.f32.mrb[0].mxu0
      %v1439 = vadd.f32 0.0, %v1438
      %v1440 = vpop.f32.mrb[0].mxu0
      %v1441 = vpop.f32.mrb[0].mxu0
      %v1442 = vadd.f32 0.0, %v1441
      %v1443 = vpop.f32.mrb[0].mxu0
      %1444 = vmatprep.mubr.bf16.mxu0 0
      %1445 = vmatmul.mubr.bf16.gmra.mrb[0].mxu0 %v1099
      %v1446 = vpop.f32.mrb[0].mxu0
      %v1447 = vadd.f32 0.0, %v1446
      %v1448 = vpop.f32.mrb[0].mxu0
      %v1449 = vpop.f32.mrb[0].mxu0
      %v1450 = vadd.f32 0.0, %v1449
      %v1451 = vpop.f32.mrb[0].mxu0
      %1452 = vmatprep.mubr.bf16.mxu0 0
      %1453 = vmatmul.mubr.bf16.gmra.mrb[0].mxu0 %v1394
      %v1454 = vpop.f32.mrb[0].mxu0
      %v1455 = vadd.f32 0.0, %v1454
      %v1456 = vpop.f32.mrb[0].mxu0
      %v1457 = vpop.f32.mrb[0].mxu0
      %v1458 = vadd.f32 0.0, %v1457
      %v1459 = vpop.f32.mrb[0].mxu0
      %1460 = vdwg.mxu0
      %v1461 = vadd.f32 %v1363, %v1431
      %v1462 = vadd.f32 %v1364, %v1434
      %v1463 = vadd.f32 %v1365, %v1439
      %v1464 = vadd.f32 %v1366, %v1442
      %v1465 = vadd.f32 %v1367, %v1447
      %v1466 = vadd.f32 %v1368, %v1450
      %v1467 = vadd.f32 %v1369, %v1455
      %v1468 = vadd.f32 %v1370, %v1458
      %v1469 = vpack.c.bf16 %v1462, %v1461
      %v1470 = vpack.c.bf16 %v1464, %v1463
      %v1471 = vpack.c.bf16 %v1466, %v1465
      %v1472 = vpack.c.bf16 %v1468, %v1467
      %v1477 = vunpack.c.l.b16 %v1469
      %v1478 = vunpack.c.h.b16 %v1469
      %v1479 = vunpack.c.l.b16 %v1470
      %v1480 = vunpack.c.h.b16 %v1470
      %v1481 = vunpack.c.l.b16 %v1471
      %v1482 = vunpack.c.h.b16 %v1471
      %v1483 = vunpack.c.l.b16 %v1472
      %v1484 = vunpack.c.h.b16 %v1472
      %v1485 = vpack.c.b16 %v1477, %v1477
      %v1486 = vpack.c.b16 %v1478, %v1478
      %v1487 = vpack.c.b16 %v1479, %v1479
      %v1488 = vpack.c.b16 %v1480, %v1480
      %v1489 = vpack.c.b16 %v1481, %v1481
      %v1490 = vpack.c.b16 %v1482, %v1482
      %v1491 = vpack.c.b16 %v1483, %v1483
      %v1492 = vpack.c.b16 %v1484, %v1484
      %vm1501 = vcmask 257024
      %1502 = vst.msk [vmem:[%s298] sm:$0xf] %vm1501, %v1485
      %1503 = vst.msk [vmem:[%s298 + $0x4] sm:$0xf] %vm1501, %v1486
      %1504 = vst.msk [vmem:[%s298 + $0x8] sm:$0xf] %vm1501, %v1487
      %1505 = vst.msk [vmem:[%s298 + $0xc] sm:$0xf] %vm1501, %v1488
      %1506 = vst.msk [vmem:[%s298 + $0x10] sm:$0xf] %vm1501, %v1489
      %1507 = vst.msk [vmem:[%s298 + $0x14] sm:$0xf] %vm1501, %v1490
      %1508 = vst.msk [vmem:[%s298 + $0x18] sm:$0xf] %vm1501, %v1491
      %1509 = vst.msk [vmem:[%s298 + $0x1c] sm:$0xf] %vm1501, %v1492
      %v1510 = vsel %vm593, %v1461, 0.0
      %v1511 = vsel %vm593, %v1462, 0.0
      %v1512 = vadd.f32 %v1510, %v1511
      %v1513 = vsel %vm593, %v1463, 0.0
      %v1514 = vadd.f32 %v1512, %v1513
      %v1515 = vsel %vm593, %v1464, 0.0
      %v1516 = vadd.f32 %v1514, %v1515
      %v1517 = vsel %vm593, %v1465, 0.0
      %v1518 = vadd.f32 %v1516, %v1517
      %v1519 = vsel %vm593, %v1466, 0.0
      %v1520 = vadd.f32 %v1518, %v1519
      %v1521 = vsel %vm593, %v1467, 0.0
      %v1522 = vadd.f32 %v1520, %v1521
      %v1523 = vsel %vm593, %v1468, 0.0
      %v1524 = vadd.f32 %v1522, %v1523
      %v1525 = vrot.slane %v1524, 4
      %v1526 = vadd.f32 %v1524, %v1525
      %v1527 = vrot.slane %v1526, 2
      %v1528 = vadd.f32 %v1526, %v1527
      %v1529 = vrot.slane %v1528, 1
      %v1530 = vadd.f32 %v1528, %v1529
      %vm1531 = vcmask 253952
      %1532 = vst.msk [vmem:[%s304] sm:$0x1] %vm1531, %v1530
      %v1533 = vmul.f32 %v1461, %v1461
      %v1534 = vmul.f32 %v1462, %v1462
      %v1535 = vmul.f32 %v1463, %v1463
      %v1536 = vmul.f32 %v1464, %v1464
      %v1537 = vmul.f32 %v1465, %v1465
      %v1538 = vmul.f32 %v1466, %v1466
      %v1539 = vmul.f32 %v1467, %v1467
      %v1540 = vmul.f32 %v1468, %v1468
      %v1541 = vsel %vm593, %v1533, 0.0
      %v1542 = vsel %vm593, %v1534, 0.0
      %v1543 = vadd.f32 %v1541, %v1542
      %v1544 = vsel %vm593, %v1535, 0.0
      %v1545 = vadd.f32 %v1543, %v1544
      %v1546 = vsel %vm593, %v1536, 0.0
      %v1547 = vadd.f32 %v1545, %v1546
      %v1548 = vsel %vm593, %v1537, 0.0
      %v1549 = vadd.f32 %v1547, %v1548
      %v1550 = vsel %vm593, %v1538, 0.0
      %v1551 = vadd.f32 %v1549, %v1550
      %v1552 = vsel %vm593, %v1539, 0.0
      %v1553 = vadd.f32 %v1551, %v1552
      %v1554 = vsel %vm593, %v1540, 0.0
      %v1555 = vadd.f32 %v1553, %v1554
      %v1556 = vrot.slane %v1555, 4
      %v1557 = vadd.f32 %v1555, %v1556
      %v1558 = vrot.slane %v1557, 2
      %v1559 = vadd.f32 %v1557, %v1558
      %v1560 = vrot.slane %v1559, 1
      %v1561 = vadd.f32 %v1559, %v1560
      %1562 = vst.msk [vmem:[%s311] sm:$0x1] %vm1531, %v1561
      %s1563 = smul.u32 4, %s23
      %p1564 = scmp.lt.s32.totalorder %s22, 1
      %s1565 = scalar_select %p1564, %s22, 1
      %p1566 = scmp.lt.s32.totalorder %s1563, 15
      %s1567 = scalar_select %p1566, %s1563, 15
      %s1568 = smul.addr %s1567, 2
      %s1569 = smul.addr %s1565, 32
      %s1570 = sadd.s32 %s1568, %s1569
      %s1571 = smul.addr %s1570, 4
      %s1572 = scalar_lea.vmem %s4, %s1571
      %s1573 = smul.u32 %s22, 4
      %s1574 = sadd.s32 %s1573, %s23
      %p1575 = scmp.lt.s32.totalorder %s1574, 7
      %s1576 = scalar_select %p1575, %s1574, 7
      %s1577 = scalar_lea.vmem %s5, %s1576
      %s1578 = smul.u32 %s22, 4
      %s1579 = sadd.s32 %s1578, %s23
      %p1580 = scmp.lt.s32.totalorder %s1579, 7
      %s1581 = scalar_select %p1580, %s1579, 7
      %s1582 = scalar_lea.vmem %s6, %s1581
      // Predicated region
      $region37: #{_lambda_.5} parent=35 // pred_check
        %p1583 = pneg %p139
      $region38: #{_lambda_.5} parent=35 // pred_check_branch
        %1585 = sbr.rel (%p1583) target = $region40
      $region39: #{_lambda_.5} parent=35 // pred_region
        %s1586 = smul.u32 4, %s23
      $region40: #{_lambda_.5} parent=35 // pred_fallthru
        _
      // Predicated region
      $region41: #{_lambda_.5} parent=35 // pred_check
        %p1587 = pneg %p169
      $region42: #{_lambda_.5} parent=35 // pred_check_branch
        %1589 = sbr.rel (%p1587) target = $region44
      $region43: #{_lambda_.5} parent=35 // pred_region
        %s1590 = smul.u32 %s22, 4
        %s1591 = sadd.s32 %s1590, %s23
      $region44: #{_lambda_.5} parent=35 // pred_fallthru
        _
      // Predicated region
      $region45: #{_lambda_.5} parent=35 // pred_check
        %p1592 = pneg %p199
      $region46: #{_lambda_.5} parent=35 // pred_check_branch
        %1594 = sbr.rel (%p1592) target = $region48
      $region47: #{_lambda_.5} parent=35 // pred_region
        %s1595 = smul.u32 %s22, 4
        %s1596 = sadd.s32 %s1595, %s23
      $region48: #{_lambda_.5} parent=35 // pred_fallthru
        _
    $region36: #{_lambda_.5} parent=5 // pred_fallthru
      _
    %p1597 = scmp.le.s32.totalorder 2, %s13
    // Predicated region
    $region49: #{_lambda_.5} parent=5 // pred_check
      %p1598 = pneg %p1597
    $region50: #{_lambda_.5} parent=5 // pred_check_branch
      %1600 = sbr.rel (%p1598) target = $region52
    $region51: #{_lambda_.5} parent=5 // pred_region
      %s1601 = ssub.s32 %s13, 2
      // Predicated region
      $region53: #{_lambda_.5} parent=51 // pred_check
        %p1602 = pneg %p145
      $region54: #{_lambda_.5} parent=51 // pred_check_branch
        %1604 = sbr.rel (%p1602) target = $region56
      $region55: #{_lambda_.5} parent=51 // pred_region
        %s1605 = smul.u32 4, %s25
        %p1606 = scmp.lt.s32.totalorder %s24, 1
        %s1607 = scalar_select %p1606, %s24, 1
        %p1608 = scmp.lt.s32.totalorder %s1605, 15
        %s1609 = scalar_select %p1608, %s1605, 15
        %s1610 = smul.addr %s1609, 2
        %s1611 = smul.addr %s1607, 32
        %s1612 = sadd.s32 %s1610, %s1611
        %s1613 = smul.addr %s1612, 4
        %s1614 = scalar_lea.vmem %s4, %s1613
      $region56: #{_lambda_.5} parent=51 // pred_fallthru
        _
      // Predicated region
      $region57: #{_lambda_.5} parent=51 // pred_check
        %p1615 = pneg %p175
      $region58: #{_lambda_.5} parent=51 // pred_check_branch
        %1617 = sbr.rel (%p1615) target = $region60
      $region59: #{_lambda_.5} parent=51 // pred_region
        %s1618 = smul.u32 %s24, 4
        %s1619 = sadd.s32 %s1618, %s25
        %p1620 = scmp.lt.s32.totalorder %s1619, 7
        %s1621 = scalar_select %p1620, %s1619, 7
        %s1622 = scalar_lea.vmem %s5, %s1621
      $region60: #{_lambda_.5} parent=51 // pred_fallthru
        _
      // Predicated region
      $region61: #{_lambda_.5} parent=51 // pred_check
        %p1623 = pneg %p205
      $region62: #{_lambda_.5} parent=51 // pred_check_branch
        %1625 = sbr.rel (%p1623) target = $region64
      $region63: #{_lambda_.5} parent=51 // pred_region
        %s1626 = smul.u32 %s24, 4
        %s1627 = sadd.s32 %s1626, %s25
        %p1628 = scmp.lt.s32.totalorder %s1627, 7
        %s1629 = scalar_select %p1628, %s1627, 7
        %s1630 = scalar_lea.vmem %s6, %s1629
      $region64: #{_lambda_.5} parent=51 // pred_fallthru
        _
    $region52: #{_lambda_.5} parent=5 // pred_fallthru
      _
  $region6: #{_lambda_.5} parent=0 // loop_footer
    %s17 = sadd.s32 1, %s13
  $region7: #{_lambda_.5} parent=0 // loop_footer_branch
    %12 = sbr.rel target = $region3
  $region8: #{_lambda_.5} parent=0 // loop_exit
    _

</llo_original>
